<compile_context>
chip_gen: v7x
topology: tpu7x:2x2x1
jax: 0.10.0
libtpu: 0.0.40
codegen_flags: <defaults>
</compile_context>

<pallas_src>
import functools

import jax
import jax.numpy as jnp
from jax import lax
from jax.experimental import pallas as pl
from jax.experimental.pallas import tpu as pltpu

LANE = 128
SUBLANE = 8
VMEM_LIMIT = 48 * 1024 * 1024  # safe on v5e/v6e (128 MiB) and v7x (64 MiB)


def _round_up(x, m):
    return ((x + m - 1) // m) * m


# ---------------------------------------------------------------------------
# Fused bottleneck kernel (one image per grid step)
# ---------------------------------------------------------------------------
def _bottleneck_kernel(xp_ref, w1_ref, w2_ref, b2_ref, w3_ref, b3_ref, ws_ref,
                       o_ref, ap_ref, *, h, w):
    hp, wp, cin_a = xp_ref.shape          # spatially padded tile, cin_a = cin + 1
    mid = w1_ref.shape[1]
    cout = w3_ref.shape[1]

    # conv1 (1x1) + folded BN + ReLU over the padded tile.  The appended
    # interior-indicator channel carries the BN bias, so halo rows are exactly
    # zero (relu(0) = 0) -- no masking needed.
    xp_flat = xp_ref[...].reshape(hp * wp, cin_a)
    a1 = jnp.maximum(
        jnp.dot(xp_flat, w1_ref[...], preferred_element_type=jnp.float32), 0.0)
    ap_ref[...] = a1.reshape(hp, wp, mid).astype(ap_ref.dtype)

    # conv2 (3x3, stride 1, pad 1) + folded BN + ReLU: nine accumulating MXU
    # dots over shifted windows of the padded VMEM scratch (no im2col).
    acc = jnp.zeros((h * w, mid), jnp.float32)
    for kh in range(3):
        for kw in range(3):
            win = ap_ref[kh:kh + h, kw:kw + w, :].reshape(h * w, mid)
            acc = acc + jnp.dot(win, w2_ref[kh * 3 + kw],
                                preferred_element_type=jnp.float32)
    a2 = jnp.maximum(acc + b2_ref[...], 0.0).astype(jnp.bfloat16)

    # conv3 (1x1) + BN  plus  shortcut (1x1) + BN (bias via indicator channel),
    # residual add and final ReLU -- all in-register, single HBM store.
    x_int = xp_ref[1:h + 1, 1:w + 1, :].reshape(h * w, cin_a)
    main = jnp.dot(a2, w3_ref[...],
                   preferred_element_type=jnp.float32) + b3_ref[...]
    sc = jnp.dot(x_int, ws_ref[...], preferred_element_type=jnp.float32)
    y = jnp.maximum(main + sc, 0.0)
    o_ref[...] = y.reshape(h, w, cout).astype(o_ref.dtype)


def bottleneck_fused(xp, w1a, w2, b2, w3, b3, wsa, *, h, w):
    """xp: (N, H+2, Wp, cin+1) bf16 (Wp = round_up(W+2, 8), halo zeroed).
    Returns (N, H, W, cout_p) bf16."""
    n, hp, wp, cin_a = xp.shape
    mid_p = w2.shape[-1]
    cout_p = w3.shape[-1]
    kern = functools.partial(_bottleneck_kernel, h=h, w=w)
    return pl.pallas_call(
        kern,
        out_shape=jax.ShapeDtypeStruct((n, h, w, cout_p), jnp.bfloat16),
        grid=(n,),
        in_specs=[
            pl.BlockSpec((None, hp, wp, cin_a), lambda b: (b, 0, 0, 0)),
            pl.BlockSpec((cin_a, mid_p), lambda b: (0, 0)),
            pl.BlockSpec((9, mid_p, mid_p), lambda b: (0, 0, 0)),
            pl.BlockSpec((1, mid_p), lambda b: (0, 0)),
            pl.BlockSpec((mid_p, cout_p), lambda b: (0, 0)),
            pl.BlockSpec((1, cout_p), lambda b: (0, 0)),
            pl.BlockSpec((cin_a, cout_p), lambda b: (0, 0)),
        ],
        out_specs=pl.BlockSpec((None, h, w, cout_p), lambda b: (b, 0, 0, 0)),
        scratch_shapes=[pltpu.VMEM((hp, wp, mid_p), jnp.bfloat16)],
        compiler_params=pltpu.CompilerParams(
            dimension_semantics=("parallel",),
            vmem_limit_bytes=VMEM_LIMIT),
    )(xp, w1a, w2, b2, w3, b3, wsa)


# ---------------------------------------------------------------------------
# Parameter construction (mirrors the PyTorch __init__ shapes, eval-mode BN)
# ---------------------------------------------------------------------------
def make_bn_params(key, c):
    k1, k2, k3, k4 = jax.random.split(key, 4)
    gamma = 1.0 + 0.1 * jax.random.normal(k1, (c,), jnp.float32)
    beta = 0.1 * jax.random.normal(k2, (c,), jnp.float32)
    mean = 0.1 * jax.random.normal(k3, (c,), jnp.float32)
    var = jnp.abs(jax.random.normal(k4, (c,), jnp.float32)) + 0.5
    eps = 1e-5
    scale = gamma / jnp.sqrt(var + eps)     # folded BN (eval mode)
    bias = beta - mean * scale
    return scale, bias


def make_bottleneck_params(key, in_channels, out_channels):
    mid = out_channels // 4
    ks = jax.random.split(key, 8)
    p = {}
    # conv weights, PyTorch layout (O, I, kH, kW), no bias
    p["w1"] = 0.2 * jax.random.normal(ks[0], (mid, in_channels, 1, 1), jnp.float32)
    p["w2"] = 0.2 * jax.random.normal(ks[1], (mid, mid, 3, 3), jnp.float32)
    p["w3"] = 0.2 * jax.random.normal(ks[2], (out_channels, mid, 1, 1), jnp.float32)
    p["ws"] = 0.2 * jax.random.normal(ks[3], (out_channels, in_channels, 1, 1), jnp.float32)
    p["s1"], p["b1"] = make_bn_params(ks[4], mid)
    p["s2"], p["b2"] = make_bn_params(ks[5], mid)
    p["s3"], p["b3"] = make_bn_params(ks[6], out_channels)
    p["ss"], p["bs"] = make_bn_params(ks[7], out_channels)
    return p


def prepare_bottleneck(params):
    """One-time host prep: fold BN scales into weights, fold conv1/shortcut BN
    biases as an extra input-channel row (driven by the interior-indicator
    channel), zero-pad channel dims to multiples of 128 (padded outputs are
    exactly 0), transpose to (K, N) matmul layout, cast weights to bf16."""
    mid, cin = params["w1"].shape[:2]
    cout = params["w3"].shape[0]
    mid_p = _round_up(mid, LANE)
    cout_p = _round_up(cout, LANE)

    def fold_1x1_with_bias_row(w, scale, bias, n_pad):
        o, i = w.shape[:2]
        wm = w.reshape(o, i).T * scale[None, :]                       # (I, O)
        wa = jnp.concatenate([wm, bias[None, :]], axis=0)             # (I+1, O)
        wa = jnp.pad(wa, ((0, 0), (0, n_pad - o)))
        return wa.astype(jnp.bfloat16)

    w1a = fold_1x1_with_bias_row(params["w1"], params["s1"], params["b1"], mid_p)
    wsa = fold_1x1_with_bias_row(params["ws"], params["ss"], params["bs"], cout_p)

    # (O, I, 3, 3) -> (3, 3, I, O), fold BN scale over O, pad, -> (9, I_p, O_p)
    w2 = jnp.transpose(params["w2"], (2, 3, 1, 0)) * params["s2"][None, None, None, :]
    w2 = jnp.pad(w2, ((0, 0), (0, 0), (0, mid_p - mid), (0, mid_p - mid)))
    w2 = w2.reshape(9, mid_p, mid_p).astype(jnp.bfloat16)
    b2 = jnp.pad(params["b2"], (0, mid_p - mid)).reshape(1, mid_p).astype(jnp.float32)

    w3 = params["w3"].reshape(cout, mid).T * params["s3"][None, :]     # (mid, cout)
    w3 = jnp.pad(w3, ((0, mid_p - mid), (0, cout_p - cout))).astype(jnp.bfloat16)
    b3 = jnp.pad(params["b3"], (0, cout_p - cout)).reshape(1, cout_p).astype(jnp.float32)

    wts = dict(w1a=w1a, w2=w2, b2=b2, w3=w3, b3=b3, wsa=wsa)
    meta = dict(cin=cin, mid=mid, cout=cout, mid_p=mid_p, cout_p=cout_p)
    return wts, meta


# ---------------------------------------------------------------------------
# Bottleneck forward (Pallas path)
# ---------------------------------------------------------------------------
def bottleneck_forward_pallas(x_nchw, wts, *, meta):
    n, cin, h, w = x_nchw.shape
    cout, cout_p = meta["cout"], meta["cout_p"]
    hp = h + 2
    wp = _round_up(w + 2, SUBLANE)   # keep in-kernel reshapes sublane-aligned

    # NCHW -> NHWC once, append the interior-indicator channel (carries the
    # folded BN bias through the matmuls), spatially zero-pad, cast bf16.
    x_nhwc = jnp.transpose(x_nchw, (0, 2, 3, 1))
    ones = jnp.ones((n, h, w, 1), x_nhwc.dtype)
    x_aug = jnp.concatenate([x_nhwc, ones], axis=-1)                   # (n,h,w,cin+1)
    xp = jnp.pad(x_aug, ((0, 0), (1, 1), (1, wp - w - 1), (0, 0))).astype(jnp.bfloat16)

    y = bottleneck_fused(xp, wts["w1a"], wts["w2"], wts["b2"],
                         wts["w3"], wts["b3"], wts["wsa"], h=h, w=w)    # (n,h,w,cout_p)

    y = y[..., :cout]                                                   # drop channel padding
    return jnp.transpose(y, (0, 3, 1, 2)).astype(jnp.float32)           # back to NCHW


# ---------------------------------------------------------------------------
# Pure-JAX reference (fp32, eval-mode BN)
# ---------------------------------------------------------------------------
def _conv_bn_ref(x, w, scale, bias, pad, relu):
    y = lax.conv_general_dilated(
        x, w, window_strides=(1, 1),
        padding=[(pad, pad), (pad, pad)],
        dimension_numbers=("NCHW", "OIHW", "NCHW"))
    y = y * scale[None, :, None, None] + bias[None, :, None, None]
    return jnp.maximum(y, 0.0) if relu else y


def bottleneck_forward_ref(x, p):
    a = _conv_bn_ref(x, p["w1"], p["s1"], p["b1"], 0, True)
    a = _conv_bn_ref(a, p["w2"], p["s2"], p["b2"], 1, True)
    a = _conv_bn_ref(a, p["w3"], p["s3"], p["b3"], 0, False)
    s = _conv_bn_ref(x, p["ws"], p["ss"], p["bs"], 0, False)
    return jnp.maximum(a + s, 0.0)


# ---------------------------------------------------------------------------
if __name__ == "__main__":
    key = jax.random.PRNGKey(0)
    k_x, k_p = jax.random.split(key)

    N, CIN, H, W = 2, 4, 16, 16
    COUT = 8                      # in_channels != out_channels -> conv shortcut
    x = jax.random.normal(k_x, (N, CIN, H, W), jnp.float32)     # NCHW, like PyTorch
    params = make_bottleneck_params(k_p, CIN, COUT)

    wts, meta = prepare_bottleneck(params)
    fwd = jax.jit(functools.partial(bottleneck_forward_pallas, meta=meta))

    out = jax.block_until_ready(fwd(x, wts))
    ref = jax.block_until_ready(bottleneck_forward_ref(x, params))

    assert out.shape == (N, COUT, H, W), out.shape
    max_err = float(jnp.max(jnp.abs(out - ref)))
    # bf16 activations/weights with fp32 accumulation -> loosened tolerance
    assert jnp.allclose(out, ref, rtol=5e-2, atol=5e-2), max_err

    print("KERNEL_OK")
</pallas_src>

<mosaic_0001>
module attributes {stable_mosaic.version = 11 : i64} {
  func.func @_bottleneck_kernel(%arg0: i32, %arg1: memref<1x18x24x5xbf16, #tpu.memory_space<vmem>>, %arg2: memref<5x128xbf16, #tpu.memory_space<vmem>>, %arg3: memref<9x128x128xbf16, #tpu.memory_space<vmem>>, %arg4: memref<1x128xf32, #tpu.memory_space<vmem>>, %arg5: memref<128x128xbf16, #tpu.memory_space<vmem>>, %arg6: memref<1x128xf32, #tpu.memory_space<vmem>>, %arg7: memref<5x128xbf16, #tpu.memory_space<vmem>>, %arg8: memref<1x16x16x128xbf16, #tpu.memory_space<vmem>>, %arg9: memref<18x24x128xbf16, #tpu.memory_space<vmem>>) attributes {dimension_semantics = [#tpu.dimension_semantics<parallel>], iteration_bounds = array<i64: 2>, scalar_prefetch = 0 : i64, scratch_operands = 1 : i64, tpu.core_type = #tpu.core_type<tc>, window_params = [{transform_indices = @transform_0, window_bounds = array<i64: 1, 18, 24, 5>}, {pipeline_mode = #tpu.pipeline_mode<synchronous>, transform_indices = @transform_1, window_bounds = array<i64: 5, 128>}, {pipeline_mode = #tpu.pipeline_mode<synchronous>, transform_indices = @transform_2, window_bounds = array<i64: 9, 128, 128>}, {pipeline_mode = #tpu.pipeline_mode<synchronous>, transform_indices = @transform_3, window_bounds = array<i64: 1, 128>}, {pipeline_mode = #tpu.pipeline_mode<synchronous>, transform_indices = @transform_4, window_bounds = array<i64: 128, 128>}, {pipeline_mode = #tpu.pipeline_mode<synchronous>, transform_indices = @transform_5, window_bounds = array<i64: 1, 128>}, {pipeline_mode = #tpu.pipeline_mode<synchronous>, transform_indices = @transform_6, window_bounds = array<i64: 5, 128>}, {transform_indices = @transform_7, window_bounds = array<i64: 1, 16, 16, 128>}]} {
    %c0 = arith.constant 0 : index
    %c0_0 = arith.constant 0 : index
    %c0_1 = arith.constant 0 : index
    %c0_2 = arith.constant 0 : index
    %0 = vector.load %arg1[%c0, %c0_0, %c0_1, %c0_2] : memref<1x18x24x5xbf16, #tpu.memory_space<vmem>>, vector<1x18x24x5xbf16>
    %1 = vector.shape_cast %0 : vector<1x18x24x5xbf16> to vector<18x24x5xbf16>
    %2 = vector.shape_cast %1 : vector<18x24x5xbf16> to vector<432x5xbf16>
    %c0_3 = arith.constant 0 : index
    %c0_4 = arith.constant 0 : index
    %3 = vector.load %arg2[%c0_3, %c0_4] : memref<5x128xbf16, #tpu.memory_space<vmem>>, vector<5x128xbf16>
    %cst = arith.constant dense<0.000000e+00> : vector<432x128xf32>
    %4 = tpu.matmul %2, %3, %cst {dimension_numbers = #tpu.dot_dimension_numbers<[1], [0], [0], [1], [0, 0, 1, 1], [], []>} : vector<432x5xbf16>, vector<5x128xbf16>, vector<432x128xf32> -> vector<432x128xf32>
    %cst_5 = arith.constant 0.000000e+00 : f32
    %5 = vector.broadcast %cst_5 : f32 to vector<432x128xf32>
    %6 = arith.maximumf %4, %5 : vector<432x128xf32>
    %7 = vector.shape_cast %6 : vector<432x128xf32> to vector<18x24x128xf32>
    %8 = arith.truncf %7 : vector<18x24x128xf32> to vector<18x24x128xbf16>
    %c0_6 = arith.constant 0 : index
    %c0_7 = arith.constant 0 : index
    %c0_8 = arith.constant 0 : index
    %9 = vector.load %arg9[%c0_6, %c0_7, %c0_8] : memref<18x24x128xbf16, #tpu.memory_space<vmem>>, vector<18x24x128xbf16>
    tpu.vector_store %arg9[%c0_6, %c0_7, %c0_8], %8 {strides = array<i32>} : memref<18x24x128xbf16, #tpu.memory_space<vmem>>, vector<18x24x128xbf16>,
    %cst_9 = arith.constant 0.000000e+00 : f32
    %10 = vector.broadcast %cst_9 : f32 to vector<256x128xf32>
    %c0_10 = arith.constant 0 : index
    %c0_11 = arith.constant 0 : index
    %c0_12 = arith.constant 0 : index
    %11 = vector.load %arg9[%c0_10, %c0_11, %c0_12] : memref<18x24x128xbf16, #tpu.memory_space<vmem>>, vector<16x16x128xbf16>
    %12 = vector.shape_cast %11 : vector<16x16x128xbf16> to vector<256x128xbf16>
    %c0_13 = arith.constant 0 : index
    %c0_14 = arith.constant 0 : index
    %c0_15 = arith.constant 0 : index
    %13 = vector.load %arg3[%c0_13, %c0_14, %c0_15] : memref<9x128x128xbf16, #tpu.memory_space<vmem>>, vector<1x128x128xbf16>
    %14 = vector.shape_cast %13 : vector<1x128x128xbf16> to vector<128x128xbf16>
    %cst_16 = arith.constant dense<0.000000e+00> : vector<256x128xf32>
    %15 = tpu.matmul %12, %14, %cst_16 {dimension_numbers = #tpu.dot_dimension_numbers<[1], [0], [0], [1], [0, 0, 1, 1], [], []>} : vector<256x128xbf16>, vector<128x128xbf16>, vector<256x128xf32> -> vector<256x128xf32>
    %16 = arith.addf %10, %15 : vector<256x128xf32>
    %c0_17 = arith.constant 0 : index
    %c1 = arith.constant 1 : index
    %c0_18 = arith.constant 0 : index
    %17 = vector.load %arg9[%c0_17, %c1, %c0_18] : memref<18x24x128xbf16, #tpu.memory_space<vmem>>, vector<16x16x128xbf16>
    %18 = vector.shape_cast %17 : vector<16x16x128xbf16> to vector<256x128xbf16>
    %c1_19 = arith.constant 1 : index
    %c0_20 = arith.constant 0 : index
    %c0_21 = arith.constant 0 : index
    %19 = vector.load %arg3[%c1_19, %c0_20, %c0_21] : memref<9x128x128xbf16, #tpu.memory_space<vmem>>, vector<1x128x128xbf16>
    %20 = vector.shape_cast %19 : vector<1x128x128xbf16> to vector<128x128xbf16>
    %cst_22 = arith.constant dense<0.000000e+00> : vector<256x128xf32>
    %21 = tpu.matmul %18, %20, %cst_22 {dimension_numbers = #tpu.dot_dimension_numbers<[1], [0], [0], [1], [0, 0, 1, 1], [], []>} : vector<256x128xbf16>, vector<128x128xbf16>, vector<256x128xf32> -> vector<256x128xf32>
    %22 = arith.addf %16, %21 : vector<256x128xf32>
    %c0_23 = arith.constant 0 : index
    %c2 = arith.constant 2 : index
    %c0_24 = arith.constant 0 : index
    %23 = vector.load %arg9[%c0_23, %c2, %c0_24] : memref<18x24x128xbf16, #tpu.memory_space<vmem>>, vector<16x16x128xbf16>
    %24 = vector.shape_cast %23 : vector<16x16x128xbf16> to vector<256x128xbf16>
    %c2_25 = arith.constant 2 : index
    %c0_26 = arith.constant 0 : index
    %c0_27 = arith.constant 0 : index
    %25 = vector.load %arg3[%c2_25, %c0_26, %c0_27] : memref<9x128x128xbf16, #tpu.memory_space<vmem>>, vector<1x128x128xbf16>
    %26 = vector.shape_cast %25 : vector<1x128x128xbf16> to vector<128x128xbf16>
    %cst_28 = arith.constant dense<0.000000e+00> : vector<256x128xf32>
    %27 = tpu.matmul %24, %26, %cst_28 {dimension_numbers = #tpu.dot_dimension_numbers<[1], [0], [0], [1], [0, 0, 1, 1], [], []>} : vector<256x128xbf16>, vector<128x128xbf16>, vector<256x128xf32> -> vector<256x128xf32>
    %28 = arith.addf %22, %27 : vector<256x128xf32>
    %c1_29 = arith.constant 1 : index
    %c0_30 = arith.constant 0 : index
    %c0_31 = arith.constant 0 : index
    %29 = vector.load %arg9[%c1_29, %c0_30, %c0_31] : memref<18x24x128xbf16, #tpu.memory_space<vmem>>, vector<16x16x128xbf16>
    %30 = vector.shape_cast %29 : vector<16x16x128xbf16> to vector<256x128xbf16>
    %c3 = arith.constant 3 : index
    %c0_32 = arith.constant 0 : index
    %c0_33 = arith.constant 0 : index
    %31 = vector.load %arg3[%c3, %c0_32, %c0_33] : memref<9x128x128xbf16, #tpu.memory_space<vmem>>, vector<1x128x128xbf16>
    %32 = vector.shape_cast %31 : vector<1x128x128xbf16> to vector<128x128xbf16>
    %cst_34 = arith.constant dense<0.000000e+00> : vector<256x128xf32>
    %33 = tpu.matmul %30, %32, %cst_34 {dimension_numbers = #tpu.dot_dimension_numbers<[1], [0], [0], [1], [0, 0, 1, 1], [], []>} : vector<256x128xbf16>, vector<128x128xbf16>, vector<256x128xf32> -> vector<256x128xf32>
    %34 = arith.addf %28, %33 : vector<256x128xf32>
    %c1_35 = arith.constant 1 : index
    %c1_36 = arith.constant 1 : index
    %c0_37 = arith.constant 0 : index
    %35 = vector.load %arg9[%c1_35, %c1_36, %c0_37] : memref<18x24x128xbf16, #tpu.memory_space<vmem>>, vector<16x16x128xbf16>
    %36 = vector.shape_cast %35 : vector<16x16x128xbf16> to vector<256x128xbf16>
    %c4 = arith.constant 4 : index
    %c0_38 = arith.constant 0 : index
    %c0_39 = arith.constant 0 : index
    %37 = vector.load %arg3[%c4, %c0_38, %c0_39] : memref<9x128x128xbf16, #tpu.memory_space<vmem>>, vector<1x128x128xbf16>
    %38 = vector.shape_cast %37 : vector<1x128x128xbf16> to vector<128x128xbf16>
    %cst_40 = arith.constant dense<0.000000e+00> : vector<256x128xf32>
    %39 = tpu.matmul %36, %38, %cst_40 {dimension_numbers = #tpu.dot_dimension_numbers<[1], [0], [0], [1], [0, 0, 1, 1], [], []>} : vector<256x128xbf16>, vector<128x128xbf16>, vector<256x128xf32> -> vector<256x128xf32>
    %40 = arith.addf %34, %39 : vector<256x128xf32>
    %c1_41 = arith.constant 1 : index
    %c2_42 = arith.constant 2 : index
    %c0_43 = arith.constant 0 : index
    %41 = vector.load %arg9[%c1_41, %c2_42, %c0_43] : memref<18x24x128xbf16, #tpu.memory_space<vmem>>, vector<16x16x128xbf16>
    %42 = vector.shape_cast %41 : vector<16x16x128xbf16> to vector<256x128xbf16>
    %c5 = arith.constant 5 : index
    %c0_44 = arith.constant 0 : index
    %c0_45 = arith.constant 0 : index
    %43 = vector.load %arg3[%c5, %c0_44, %c0_45] : memref<9x128x128xbf16, #tpu.memory_space<vmem>>, vector<1x128x128xbf16>
    %44 = vector.shape_cast %43 : vector<1x128x128xbf16> to vector<128x128xbf16>
    %cst_46 = arith.constant dense<0.000000e+00> : vector<256x128xf32>
    %45 = tpu.matmul %42, %44, %cst_46 {dimension_numbers = #tpu.dot_dimension_numbers<[1], [0], [0], [1], [0, 0, 1, 1], [], []>} : vector<256x128xbf16>, vector<128x128xbf16>, vector<256x128xf32> -> vector<256x128xf32>
    %46 = arith.addf %40, %45 : vector<256x128xf32>
    %c2_47 = arith.constant 2 : index
    %c0_48 = arith.constant 0 : index
    %c0_49 = arith.constant 0 : index
    %47 = vector.load %arg9[%c2_47, %c0_48, %c0_49] : memref<18x24x128xbf16, #tpu.memory_space<vmem>>, vector<16x16x128xbf16>
    %48 = vector.shape_cast %47 : vector<16x16x128xbf16> to vector<256x128xbf16>
    %c6 = arith.constant 6 : index
    %c0_50 = arith.constant 0 : index
    %c0_51 = arith.constant 0 : index
    %49 = vector.load %arg3[%c6, %c0_50, %c0_51] : memref<9x128x128xbf16, #tpu.memory_space<vmem>>, vector<1x128x128xbf16>
    %50 = vector.shape_cast %49 : vector<1x128x128xbf16> to vector<128x128xbf16>
    %cst_52 = arith.constant dense<0.000000e+00> : vector<256x128xf32>
    %51 = tpu.matmul %48, %50, %cst_52 {dimension_numbers = #tpu.dot_dimension_numbers<[1], [0], [0], [1], [0, 0, 1, 1], [], []>} : vector<256x128xbf16>, vector<128x128xbf16>, vector<256x128xf32> -> vector<256x128xf32>
    %52 = arith.addf %46, %51 : vector<256x128xf32>
    %c2_53 = arith.constant 2 : index
    %c1_54 = arith.constant 1 : index
    %c0_55 = arith.constant 0 : index
    %53 = vector.load %arg9[%c2_53, %c1_54, %c0_55] : memref<18x24x128xbf16, #tpu.memory_space<vmem>>, vector<16x16x128xbf16>
    %54 = vector.shape_cast %53 : vector<16x16x128xbf16> to vector<256x128xbf16>
    %c7 = arith.constant 7 : index
    %c0_56 = arith.constant 0 : index
    %c0_57 = arith.constant 0 : index
    %55 = vector.load %arg3[%c7, %c0_56, %c0_57] : memref<9x128x128xbf16, #tpu.memory_space<vmem>>, vector<1x128x128xbf16>
    %56 = vector.shape_cast %55 : vector<1x128x128xbf16> to vector<128x128xbf16>
    %cst_58 = arith.constant dense<0.000000e+00> : vector<256x128xf32>
    %57 = tpu.matmul %54, %56, %cst_58 {dimension_numbers = #tpu.dot_dimension_numbers<[1], [0], [0], [1], [0, 0, 1, 1], [], []>} : vector<256x128xbf16>, vector<128x128xbf16>, vector<256x128xf32> -> vector<256x128xf32>
    %58 = arith.addf %52, %57 : vector<256x128xf32>
    %c2_59 = arith.constant 2 : index
    %c2_60 = arith.constant 2 : index
    %c0_61 = arith.constant 0 : index
    %59 = vector.load %arg9[%c2_59, %c2_60, %c0_61] : memref<18x24x128xbf16, #tpu.memory_space<vmem>>, vector<16x16x128xbf16>
    %60 = vector.shape_cast %59 : vector<16x16x128xbf16> to vector<256x128xbf16>
    %c8 = arith.constant 8 : index
    %c0_62 = arith.constant 0 : index
    %c0_63 = arith.constant 0 : index
    %61 = vector.load %arg3[%c8, %c0_62, %c0_63] : memref<9x128x128xbf16, #tpu.memory_space<vmem>>, vector<1x128x128xbf16>
    %62 = vector.shape_cast %61 : vector<1x128x128xbf16> to vector<128x128xbf16>
    %cst_64 = arith.constant dense<0.000000e+00> : vector<256x128xf32>
    %63 = tpu.matmul %60, %62, %cst_64 {dimension_numbers = #tpu.dot_dimension_numbers<[1], [0], [0], [1], [0, 0, 1, 1], [], []>} : vector<256x128xbf16>, vector<128x128xbf16>, vector<256x128xf32> -> vector<256x128xf32>
    %64 = arith.addf %58, %63 : vector<256x128xf32>
    %c0_65 = arith.constant 0 : index
    %c0_66 = arith.constant 0 : index
    %65 = vector.load %arg4[%c0_65, %c0_66] : memref<1x128xf32, #tpu.memory_space<vmem>>, vector<1x128xf32>
    %66 = vector.broadcast %65 : vector<1x128xf32> to vector<256x128xf32>
    %67 = arith.addf %64, %66 : vector<256x128xf32>
    %cst_67 = arith.constant 0.000000e+00 : f32
    %68 = vector.broadcast %cst_67 : f32 to vector<256x128xf32>
    %69 = arith.maximumf %67, %68 : vector<256x128xf32>
    %70 = arith.truncf %69 : vector<256x128xf32> to vector<256x128xbf16>
    %c0_68 = arith.constant 0 : index
    %c1_69 = arith.constant 1 : index
    %c1_70 = arith.constant 1 : index
    %c0_71 = arith.constant 0 : index
    %71 = vector.load %arg1[%c0_68, %c1_69, %c1_70, %c0_71] : memref<1x18x24x5xbf16, #tpu.memory_space<vmem>>, vector<1x16x16x5xbf16>
    %72 = vector.shape_cast %71 : vector<1x16x16x5xbf16> to vector<16x16x5xbf16>
    %73 = vector.shape_cast %72 : vector<16x16x5xbf16> to vector<256x5xbf16>
    %c0_72 = arith.constant 0 : index
    %c0_73 = arith.constant 0 : index
    %74 = vector.load %arg5[%c0_72, %c0_73] : memref<128x128xbf16, #tpu.memory_space<vmem>>, vector<128x128xbf16>
    %cst_74 = arith.constant dense<0.000000e+00> : vector<256x128xf32>
    %75 = tpu.matmul %70, %74, %cst_74 {dimension_numbers = #tpu.dot_dimension_numbers<[1], [0], [0], [1], [0, 0, 1, 1], [], []>} : vector<256x128xbf16>, vector<128x128xbf16>, vector<256x128xf32> -> vector<256x128xf32>
    %c0_75 = arith.constant 0 : index
    %c0_76 = arith.constant 0 : index
    %76 = vector.load %arg6[%c0_75, %c0_76] : memref<1x128xf32, #tpu.memory_space<vmem>>, vector<1x128xf32>
    %77 = vector.broadcast %76 : vector<1x128xf32> to vector<256x128xf32>
    %78 = arith.addf %75, %77 : vector<256x128xf32>
    %c0_77 = arith.constant 0 : index
    %c0_78 = arith.constant 0 : index
    %79 = vector.load %arg7[%c0_77, %c0_78] : memref<5x128xbf16, #tpu.memory_space<vmem>>, vector<5x128xbf16>
    %cst_79 = arith.constant dense<0.000000e+00> : vector<256x128xf32>
    %80 = tpu.matmul %73, %79, %cst_79 {dimension_numbers = #tpu.dot_dimension_numbers<[1], [0], [0], [1], [0, 0, 1, 1], [], []>} : vector<256x5xbf16>, vector<5x128xbf16>, vector<256x128xf32> -> vector<256x128xf32>
    %81 = arith.addf %78, %80 : vector<256x128xf32>
    %cst_80 = arith.constant 0.000000e+00 : f32
    %82 = vector.broadcast %cst_80 : f32 to vector<256x128xf32>
    %83 = arith.maximumf %81, %82 : vector<256x128xf32>
    %84 = vector.shape_cast %83 : vector<256x128xf32> to vector<16x16x128xf32>
    %85 = arith.truncf %84 : vector<16x16x128xf32> to vector<16x16x128xbf16>
    %c0_81 = arith.constant 0 : index
    %c0_82 = arith.constant 0 : index
    %c0_83 = arith.constant 0 : index
    %c0_84 = arith.constant 0 : index
    %86 = vector.load %arg8[%c0_81, %c0_82, %c0_83, %c0_84] : memref<1x16x16x128xbf16, #tpu.memory_space<vmem>>, vector<1x16x16x128xbf16>
    %87 = vector.shape_cast %86 : vector<1x16x16x128xbf16> to vector<16x16x128xbf16>
    %88 = vector.shape_cast %85 : vector<16x16x128xbf16> to vector<1x16x16x128xbf16>
    tpu.vector_store %arg8[%c0_81, %c0_82, %c0_83, %c0_84], %88 {strides = array<i32>} : memref<1x16x16x128xbf16, #tpu.memory_space<vmem>>, vector<1x16x16x128xbf16>,
    return
  }
  func.func @transform_0(%arg0: i32) -> (i32, i32, i32, i32) {
    %c0_i32 = arith.constant 0 : i32
    %c0_i32_0 = arith.constant 0 : i32
    %c0_i32_1 = arith.constant 0 : i32
    %c0_i32_2 = arith.constant 0 : i32
    return %arg0, %c0_i32, %c0_i32_0, %c0_i32_1 : i32, i32, i32, i32
  }
  func.func @transform_1(%arg0: i32) -> (i32, i32) {
    %c0_i32 = arith.constant 0 : i32
    %c0_i32_0 = arith.constant 0 : i32
    %c0_i32_1 = arith.constant 0 : i32
    return %c0_i32, %c0_i32_0 : i32, i32
  }
  func.func @transform_2(%arg0: i32) -> (i32, i32, i32) {
    %c0_i32 = arith.constant 0 : i32
    %c0_i32_0 = arith.constant 0 : i32
    %c0_i32_1 = arith.constant 0 : i32
    %c0_i32_2 = arith.constant 0 : i32
    return %c0_i32, %c0_i32_0, %c0_i32_1 : i32, i32, i32
  }
  func.func @transform_3(%arg0: i32) -> (i32, i32) {
    %c0_i32 = arith.constant 0 : i32
    %c0_i32_0 = arith.constant 0 : i32
    %c0_i32_1 = arith.constant 0 : i32
    return %c0_i32, %c0_i32_0 : i32, i32
  }
  func.func @transform_4(%arg0: i32) -> (i32, i32) {
    %c0_i32 = arith.constant 0 : i32
    %c0_i32_0 = arith.constant 0 : i32
    %c0_i32_1 = arith.constant 0 : i32
    return %c0_i32, %c0_i32_0 : i32, i32
  }
  func.func @transform_5(%arg0: i32) -> (i32, i32) {
    %c0_i32 = arith.constant 0 : i32
    %c0_i32_0 = arith.constant 0 : i32
    %c0_i32_1 = arith.constant 0 : i32
    return %c0_i32, %c0_i32_0 : i32, i32
  }
  func.func @transform_6(%arg0: i32) -> (i32, i32) {
    %c0_i32 = arith.constant 0 : i32
    %c0_i32_0 = arith.constant 0 : i32
    %c0_i32_1 = arith.constant 0 : i32
    return %c0_i32, %c0_i32_0 : i32, i32
  }
  func.func @transform_7(%arg0: i32) -> (i32, i32, i32, i32) {
    %c0_i32 = arith.constant 0 : i32
    %c0_i32_0 = arith.constant 0 : i32
    %c0_i32_1 = arith.constant 0 : i32
    %c0_i32_2 = arith.constant 0 : i32
    return %arg0, %c0_i32, %c0_i32_0, %c0_i32_1 : i32, i32, i32, i32
  }
}

</mosaic_0001>

<llo_original>
// kernel: bottleneck_forward_pallas.1
$region0: #{bottleneck_forward_pallas.1}
  #allocation0 [shape = 'u32[]', space=smem, size = 0x4, offset = 0x4, fixed_abs, tag = 'smem constant byte address 0x4 - core index']
  #allocation1 [shape = 'u32[144,128]{1,0:T(1,128)}', space=vmem, size = 0x12000, scoped, tag = 'internal scratch']
  #allocation2 [shape = 'bf16[18,24,128]{2,1,0:T(8,128)(2,1)}', space=vmem, size = 0x1b000, scoped, tag = 'scratch operand']
  %s0 = inlined_call_operand.vmem [shape: bf16[2,18,24,5], index: 0, kind: input, shape index: {}]
  %s1 = inlined_call_operand.vmem [shape: bf16[5,128], index: 1, kind: input, shape index: {}]
  %s2 = inlined_call_operand.vmem [shape: bf16[9,128,128], index: 2, kind: input, shape index: {}]
  %s3 = inlined_call_operand.vmem [shape: f32[1,128], index: 3, kind: input, shape index: {}]
  %s4 = inlined_call_operand.vmem [shape: bf16[128,128], index: 4, kind: input, shape index: {}]
  %s5 = inlined_call_operand.vmem [shape: f32[1,128], index: 5, kind: input, shape index: {}]
  %s6 = inlined_call_operand.vmem [shape: bf16[5,128], index: 6, kind: input, shape index: {}]
  %s7 = inlined_call_operand.vmem [shape: bf16[2,16,16,128], index: 7, kind: output, shape index: {}]
  %s8 = sld [smem:[#allocation0]]
  $region61: #{bottleneck_forward_pallas.1} parent=0
    _
  %s10 = ssub.s32 1, %s8
  %s11 = scalar_select 0, %s10, %s8
  loop: start=0, step=1, limit=4
  $region2: #{bottleneck_forward_pallas.1} parent=0 // loop_pre_header
    _
  $region3: #{bottleneck_forward_pallas.1} parent=0 // loop_header
    %s13 = sphi 0, %s17
    %p14 = scmp.ge.s32.totalorder %s13, 4
    %s23 = sphi 0, %s25
    %s26 = sphi 0, %s23
    %s27 = sphi 0, %s26
    %s43 = sphi 0, %s27
    %s47 = sphi 0, %s47
    %s49 = sphi 0, %s47
    %s50 = sphi 0, %s49
    %s64 = sphi 0, %s50
    %s68 = sphi 0, %s68
    %s70 = sphi 0, %s68
    %s71 = sphi 0, %s70
    %s85 = sphi 0, %s71
    %s89 = sphi 0, %s89
    %s91 = sphi 0, %s89
    %s92 = sphi 0, %s91
    %s106 = sphi 0, %s92
    %s110 = sphi 0, %s110
    %s112 = sphi 0, %s110
    %s113 = sphi 0, %s112
    %s127 = sphi 0, %s113
    %s131 = sphi 0, %s131
    %s133 = sphi 0, %s131
    %s134 = sphi 0, %s133
    %s148 = sphi 0, %s134
    %s152 = sphi 0, %s152
    %s154 = sphi 0, %s152
    %s155 = sphi 0, %s154
    %s169 = sphi 0, %s155
    %s175 = sphi 0, %s177
    %s178 = sphi 0, %s175
    %s179 = sphi 0, %s178
    %s195 = sphi 0, %s179
  $region4: #{bottleneck_forward_pallas.1} parent=0 // loop_header_branch
    %16 = sbr.rel (%p14) target = $region8
  $region5: #{bottleneck_forward_pallas.1} parent=0 // loop_body
    %s18 = ssub.s32 %s13, 1
    %s19 = ssub.s32 %s13, 2
    %s20 = sadd.s32 %s13, 1
    %s21 = ssub.s32 %s13, %s20
    %p22 = scmp.eq.s32.totalorder %s21, 0
    %s24 = sadd.s32 %s23, 1
    %s25 = scalar_select %p22, %s23, %s24
    %p28 = pneg %p22
    %p29 = scmp.eq.s32.totalorder %s13, 1
    %p30 = por %p28, %p29
    %p31 = scmp.ne.s32.totalorder %s23, %s26
    %p32 = scmp.eq.s32.totalorder %s13, 0
    %p33 = por %p31, %p32
    %p34 = scmp.ne.s32.totalorder %s23, %s26
    %p35 = scmp.eq.s32.totalorder %s18, 1
    %p36 = por %p34, %p35
    %p37 = scmp.ne.s32.totalorder %s26, %s27
    %p38 = scmp.eq.s32.totalorder %s18, 0
    %p39 = por %p37, %p38
    %p40 = scmp.ne.s32.totalorder %s26, %s27
    %p41 = scmp.eq.s32.totalorder %s19, 1
    %p42 = por %p40, %p41
    %p44 = scmp.ne.s32.totalorder %s27, %s43
    %p45 = scmp.eq.s32.totalorder %s19, 0
    %p46 = por %p44, %p45
    %s48 = sadd.s32 %s47, 1
    %p51 = scmp.eq.s32.totalorder %s13, 1
    %p52 = scmp.ne.s32.totalorder %s47, %s49
    %p53 = scmp.eq.s32.totalorder %s13, 0
    %p54 = por %p52, %p53
    %p55 = scmp.ne.s32.totalorder %s47, %s49
    %p56 = scmp.eq.s32.totalorder %s18, 1
    %p57 = por %p55, %p56
    %p58 = scmp.ne.s32.totalorder %s49, %s50
    %p59 = scmp.eq.s32.totalorder %s18, 0
    %p60 = por %p58, %p59
    %p61 = scmp.ne.s32.totalorder %s49, %s50
    %p62 = scmp.eq.s32.totalorder %s19, 1
    %p63 = por %p61, %p62
    %p65 = scmp.ne.s32.totalorder %s50, %s64
    %p66 = scmp.eq.s32.totalorder %s19, 0
    %p67 = por %p65, %p66
    %s69 = sadd.s32 %s68, 1
    %p72 = scmp.eq.s32.totalorder %s13, 1
    %p73 = scmp.ne.s32.totalorder %s68, %s70
    %p74 = scmp.eq.s32.totalorder %s13, 0
    %p75 = por %p73, %p74
    %p76 = scmp.ne.s32.totalorder %s68, %s70
    %p77 = scmp.eq.s32.totalorder %s18, 1
    %p78 = por %p76, %p77
    %p79 = scmp.ne.s32.totalorder %s70, %s71
    %p80 = scmp.eq.s32.totalorder %s18, 0
    %p81 = por %p79, %p80
    %p82 = scmp.ne.s32.totalorder %s70, %s71
    %p83 = scmp.eq.s32.totalorder %s19, 1
    %p84 = por %p82, %p83
    %p86 = scmp.ne.s32.totalorder %s71, %s85
    %p87 = scmp.eq.s32.totalorder %s19, 0
    %p88 = por %p86, %p87
    %s90 = sadd.s32 %s89, 1
    %p93 = scmp.eq.s32.totalorder %s13, 1
    %p94 = scmp.ne.s32.totalorder %s89, %s91
    %p95 = scmp.eq.s32.totalorder %s13, 0
    %p96 = por %p94, %p95
    %p97 = scmp.ne.s32.totalorder %s89, %s91
    %p98 = scmp.eq.s32.totalorder %s18, 1
    %p99 = por %p97, %p98
    %p100 = scmp.ne.s32.totalorder %s91, %s92
    %p101 = scmp.eq.s32.totalorder %s18, 0
    %p102 = por %p100, %p101
    %p103 = scmp.ne.s32.totalorder %s91, %s92
    %p104 = scmp.eq.s32.totalorder %s19, 1
    %p105 = por %p103, %p104
    %p107 = scmp.ne.s32.totalorder %s92, %s106
    %p108 = scmp.eq.s32.totalorder %s19, 0
    %p109 = por %p107, %p108
    %s111 = sadd.s32 %s110, 1
    %p114 = scmp.eq.s32.totalorder %s13, 1
    %p115 = scmp.ne.s32.totalorder %s110, %s112
    %p116 = scmp.eq.s32.totalorder %s13, 0
    %p117 = por %p115, %p116
    %p118 = scmp.ne.s32.totalorder %s110, %s112
    %p119 = scmp.eq.s32.totalorder %s18, 1
    %p120 = por %p118, %p119
    %p121 = scmp.ne.s32.totalorder %s112, %s113
    %p122 = scmp.eq.s32.totalorder %s18, 0
    %p123 = por %p121, %p122
    %p124 = scmp.ne.s32.totalorder %s112, %s113
    %p125 = scmp.eq.s32.totalorder %s19, 1
    %p126 = por %p124, %p125
    %p128 = scmp.ne.s32.totalorder %s113, %s127
    %p129 = scmp.eq.s32.totalorder %s19, 0
    %p130 = por %p128, %p129
    %s132 = sadd.s32 %s131, 1
    %p135 = scmp.eq.s32.totalorder %s13, 1
    %p136 = scmp.ne.s32.totalorder %s131, %s133
    %p137 = scmp.eq.s32.totalorder %s13, 0
    %p138 = por %p136, %p137
    %p139 = scmp.ne.s32.totalorder %s131, %s133
    %p140 = scmp.eq.s32.totalorder %s18, 1
    %p141 = por %p139, %p140
    %p142 = scmp.ne.s32.totalorder %s133, %s134
    %p143 = scmp.eq.s32.totalorder %s18, 0
    %p144 = por %p142, %p143
    %p145 = scmp.ne.s32.totalorder %s133, %s134
    %p146 = scmp.eq.s32.totalorder %s19, 1
    %p147 = por %p145, %p146
    %p149 = scmp.ne.s32.totalorder %s134, %s148
    %p150 = scmp.eq.s32.totalorder %s19, 0
    %p151 = por %p149, %p150
    %s153 = sadd.s32 %s152, 1
    %p156 = scmp.eq.s32.totalorder %s13, 1
    %p157 = scmp.ne.s32.totalorder %s152, %s154
    %p158 = scmp.eq.s32.totalorder %s13, 0
    %p159 = por %p157, %p158
    %p160 = scmp.ne.s32.totalorder %s152, %s154
    %p161 = scmp.eq.s32.totalorder %s18, 1
    %p162 = por %p160, %p161
    %p163 = scmp.ne.s32.totalorder %s154, %s155
    %p164 = scmp.eq.s32.totalorder %s18, 0
    %p165 = por %p163, %p164
    %p166 = scmp.ne.s32.totalorder %s154, %s155
    %p167 = scmp.eq.s32.totalorder %s19, 1
    %p168 = por %p166, %p167
    %p170 = scmp.ne.s32.totalorder %s155, %s169
    %p171 = scmp.eq.s32.totalorder %s19, 0
    %p172 = por %p170, %p171
    %s173 = ssub.s32 %s13, %s20
    %p174 = scmp.eq.s32.totalorder %s173, 0
    %s176 = sadd.s32 %s175, 1
    %s177 = scalar_select %p174, %s175, %s176
    %p180 = pneg %p174
    %p181 = scmp.eq.s32.totalorder %s13, 1
    %p182 = por %p180, %p181
    %p183 = scmp.ne.s32.totalorder %s175, %s178
    %p184 = scmp.eq.s32.totalorder %s13, 0
    %p185 = por %p183, %p184
    %p186 = scmp.ne.s32.totalorder %s175, %s178
    %p187 = scmp.eq.s32.totalorder %s18, 1
    %p188 = por %p186, %p187
    %p189 = scmp.ne.s32.totalorder %s178, %s179
    %p190 = scmp.eq.s32.totalorder %s18, 0
    %p191 = por %p189, %p190
    %p192 = scmp.ne.s32.totalorder %s178, %s179
    %p193 = scmp.eq.s32.totalorder %s19, 1
    %p194 = por %p192, %p193
    %p196 = scmp.ne.s32.totalorder %s179, %s195
    %p197 = scmp.eq.s32.totalorder %s19, 0
    %p198 = por %p196, %p197
    %p199 = scmp.le.s32.totalorder 1, %s13
    %p200 = scmp.lt.s32.totalorder %s13, 3
    %p201 = pnand %p199, %p200
    %p202 = pneg %p201
    // Predicated region
    $region9: #{bottleneck_forward_pallas.1} parent=5 // pred_check
      _
    $region10: #{bottleneck_forward_pallas.1} parent=5 // pred_check_branch
      %204 = sbr.rel (%p201) target = $region12
    $region11: #{bottleneck_forward_pallas.1} parent=5 // pred_region
      %s205 = ssub.s32 %s13, 1
      // Predicated region
      $region13: #{bottleneck_forward_pallas.1} parent=11 // pred_check
        %p206 = pneg %p60
      $region14: #{bottleneck_forward_pallas.1} parent=11 // pred_check_branch
        %208 = sbr.rel (%p206) target = $region16
      $region15: #{bottleneck_forward_pallas.1} parent=11 // pred_region
        _
      $region16: #{bottleneck_forward_pallas.1} parent=11 // pred_fallthru
        _
      // Predicated region
      $region17: #{bottleneck_forward_pallas.1} parent=11 // pred_check
        %p209 = pneg %p81
      $region18: #{bottleneck_forward_pallas.1} parent=11 // pred_check_branch
        %211 = sbr.rel (%p209) target = $region20
      $region19: #{bottleneck_forward_pallas.1} parent=11 // pred_region
        _
      $region20: #{bottleneck_forward_pallas.1} parent=11 // pred_fallthru
        _
      // Predicated region
      $region21: #{bottleneck_forward_pallas.1} parent=11 // pred_check
        %p212 = pneg %p102
      $region22: #{bottleneck_forward_pallas.1} parent=11 // pred_check_branch
        %214 = sbr.rel (%p212) target = $region24
      $region23: #{bottleneck_forward_pallas.1} parent=11 // pred_region
        _
      $region24: #{bottleneck_forward_pallas.1} parent=11 // pred_fallthru
        _
      // Predicated region
      $region25: #{bottleneck_forward_pallas.1} parent=11 // pred_check
        %p215 = pneg %p123
      $region26: #{bottleneck_forward_pallas.1} parent=11 // pred_check_branch
        %217 = sbr.rel (%p215) target = $region28
      $region27: #{bottleneck_forward_pallas.1} parent=11 // pred_region
        _
      $region28: #{bottleneck_forward_pallas.1} parent=11 // pred_fallthru
        _
      // Predicated region
      $region29: #{bottleneck_forward_pallas.1} parent=11 // pred_check
        %p218 = pneg %p144
      $region30: #{bottleneck_forward_pallas.1} parent=11 // pred_check_branch
        %220 = sbr.rel (%p218) target = $region32
      $region31: #{bottleneck_forward_pallas.1} parent=11 // pred_region
        _
      $region32: #{bottleneck_forward_pallas.1} parent=11 // pred_fallthru
        _
      // Predicated region
      $region33: #{bottleneck_forward_pallas.1} parent=11 // pred_check
        %p221 = pneg %p165
      $region34: #{bottleneck_forward_pallas.1} parent=11 // pred_check_branch
        %223 = sbr.rel (%p221) target = $region36
      $region35: #{bottleneck_forward_pallas.1} parent=11 // pred_region
        _
      $region36: #{bottleneck_forward_pallas.1} parent=11 // pred_fallthru
        _
    $region12: #{bottleneck_forward_pallas.1} parent=5 // pred_fallthru
      _
    %p224 = scmp.lt.s32.totalorder %s13, 2
    // Predicated region
    $region37: #{bottleneck_forward_pallas.1} parent=5 // pred_check
      %p225 = pneg %p224
    $region38: #{bottleneck_forward_pallas.1} parent=5 // pred_check_branch
      %227 = sbr.rel (%p225) target = $region40
    $region39: #{bottleneck_forward_pallas.1} parent=5 // pred_region
      // Predicated region
      $region41: #{bottleneck_forward_pallas.1} parent=39 // pred_check
        %p228 = pneg %p33
      $region42: #{bottleneck_forward_pallas.1} parent=39 // pred_check_branch
        %230 = sbr.rel (%p228) target = $region44
      $region43: #{bottleneck_forward_pallas.1} parent=39 // pred_region
        %p231 = scmp.lt.s32.totalorder %s13, 1
        %s232 = scalar_select %p231, %s13, 1
        %s233 = smul.addr %s232, 54
        %s234 = smul.addr %s233, 4
        %s235 = scalar_lea.vmem %s0, %s234
      $region44: #{bottleneck_forward_pallas.1} parent=39 // pred_fallthru
        _
    $region40: #{bottleneck_forward_pallas.1} parent=5 // pred_fallthru
      _
    %p236 = scmp.le.s32.totalorder 1, %s13
    %p237 = scmp.lt.s32.totalorder %s13, 3
    %p238 = pnand %p236, %p237
    %p239 = pneg %p238
    // Predicated region
    $region45: #{bottleneck_forward_pallas.1} parent=5 // pred_check
      _
    $region46: #{bottleneck_forward_pallas.1} parent=5 // pred_check_branch
      %241 = sbr.rel (%p238) target = $region48
    $region47: #{bottleneck_forward_pallas.1} parent=5 // pred_region
      %s242 = ssub.s32 %s13, 1
      %p243 = scmp.lt.s32.totalorder %s18, 1
      %s244 = scalar_select %p243, %s18, 1
      %s245 = smul.addr %s244, 54
      %s246 = smul.addr %s245, 4
      %s247 = scalar_lea.vmem %s0, %s246
      %p248 = pneg %p39
      %p249 = pneg %p36
      %p250 = pneg %p60
      %p251 = pneg %p57
      %p252 = pneg %p81
      %p253 = pneg %p78
      %p254 = pneg %p102
      %p255 = pneg %p99
      %p256 = pneg %p123
      %p257 = pneg %p120
      %p258 = pneg %p144
      %p259 = pneg %p141
      %p260 = pneg %p165
      %p261 = pneg %p162
      %p262 = pneg %p191
      %p263 = pneg %p188
      %p264 = scmp.lt.s32.totalorder %s18, 1
      %s265 = scalar_select %p264, %s18, 1
      %s266 = smul.addr %s265, 32
      %s267 = smul.addr %s266, 4
      %s268 = scalar_lea.vmem %s7, %s267
      %p269 = scmp.lt.s32.totalorder %s18, 1
      %s270 = scalar_select %p269, %s18, 1
      %s271 = smul.addr %s270, 54
      %s272 = smul.addr %s271, 4
      %s273 = scalar_lea.vmem %s0, %s272
      %p274 = scmp.lt.s32.totalorder %s18, 1
      %s275 = scalar_select %p274, %s18, 1
      %s276 = smul.addr %s275, 32
      %s277 = smul.addr %s276, 4
      %s278 = scalar_lea.vmem %s7, %s277
      %v280 = vld [vmem:[%s273] sm:$0xf]
      %v281 = vld [vmem:[%s273 + $0x4] sm:$0xf]
      %v282 = vld [vmem:[%s273 + $0x8] sm:$0xf]
      %v283 = vld [vmem:[%s273 + $0xc] sm:$0xf]
      %v284 = vld [vmem:[%s273 + $0x10] sm:$0xf]
      %v285 = vld [vmem:[%s273 + $0x14] sm:$0xf]
      %v286 = vld [vmem:[%s273 + $0x18] sm:$0xf]
      %v287 = vld [vmem:[%s273 + $0x1c] sm:$0xf]
      %v288 = vld [vmem:[%s273 + $0x20] sm:$0xf]
      %v289 = vld [vmem:[%s273 + $0x24] sm:$0xf]
      %v290 = vld [vmem:[%s273 + $0x28] sm:$0xf]
      %v291 = vld [vmem:[%s273 + $0x2c] sm:$0xf]
      %v292 = vld [vmem:[%s273 + $0x30] sm:$0xf]
      %v293 = vld [vmem:[%s273 + $0x34] sm:$0xf]
      %v294 = vld [vmem:[%s273 + $0x38] sm:$0xf]
      %v295 = vld [vmem:[%s273 + $0x3c] sm:$0xf]
      %v296 = vld [vmem:[%s273 + $0x40] sm:$0xf]
      %v297 = vld [vmem:[%s273 + $0x44] sm:$0xf]
      %v298 = vld [vmem:[%s273 + $0x48] sm:$0xf]
      %v299 = vld [vmem:[%s273 + $0x4c] sm:$0xf]
      %v300 = vld [vmem:[%s273 + $0x50] sm:$0xf]
      %v301 = vld [vmem:[%s273 + $0x54] sm:$0xf]
      %v302 = vld [vmem:[%s273 + $0x58] sm:$0xf]
      %v303 = vld [vmem:[%s273 + $0x5c] sm:$0xf]
      %v304 = vld [vmem:[%s273 + $0x60] sm:$0xf]
      %v305 = vld [vmem:[%s273 + $0x64] sm:$0xf]
      %v306 = vld [vmem:[%s273 + $0x68] sm:$0xf]
      %v307 = vld [vmem:[%s273 + $0x6c] sm:$0xf]
      %v308 = vld [vmem:[%s273 + $0x70] sm:$0xf]
      %v309 = vld [vmem:[%s273 + $0x74] sm:$0xf]
      %v310 = vld [vmem:[%s273 + $0x78] sm:$0xf]
      %v311 = vld [vmem:[%s273 + $0x7c] sm:$0xf]
      %v312 = vld [vmem:[%s273 + $0x80] sm:$0xf]
      %v313 = vld [vmem:[%s273 + $0x84] sm:$0xf]
      %v314 = vld [vmem:[%s273 + $0x88] sm:$0xf]
      %v315 = vld [vmem:[%s273 + $0x8c] sm:$0xf]
      %v316 = vld [vmem:[%s273 + $0x90] sm:$0xf]
      %v317 = vld [vmem:[%s273 + $0x94] sm:$0xf]
      %v318 = vld [vmem:[%s273 + $0x98] sm:$0xf]
      %v319 = vld [vmem:[%s273 + $0x9c] sm:$0xf]
      %v320 = vld [vmem:[%s273 + $0xa0] sm:$0xf]
      %v321 = vld [vmem:[%s273 + $0xa4] sm:$0xf]
      %v322 = vld [vmem:[%s273 + $0xa8] sm:$0xf]
      %v323 = vld [vmem:[%s273 + $0xac] sm:$0xf]
      %v324 = vld [vmem:[%s273 + $0xb0] sm:$0xf]
      %v325 = vld [vmem:[%s273 + $0xb4] sm:$0xf]
      %v326 = vld [vmem:[%s273 + $0xb8] sm:$0xf]
      %v327 = vld [vmem:[%s273 + $0xbc] sm:$0xf]
      %v328 = vld [vmem:[%s273 + $0xc0] sm:$0xf]
      %v329 = vld [vmem:[%s273 + $0xc4] sm:$0xf]
      %v330 = vld [vmem:[%s273 + $0xc8] sm:$0xf]
      %v331 = vld [vmem:[%s273 + $0xcc] sm:$0xf]
      %v332 = vld [vmem:[%s273 + $0xd0] sm:$0xf]
      %v333 = vld [vmem:[%s273 + $0xd4] sm:$0xf]
      %v334 = vld [vmem:[%s1] sm:$0x7]
      %v389 = vunpack.c.l.b16 %v280
      %v390 = vunpack.c.l.b16 %v281
      %v391 = vunpack.c.l.b16 %v282
      %v392 = vunpack.c.l.b16 %v283
      %v393 = vunpack.c.l.b16 %v284
      %v394 = vunpack.c.l.b16 %v285
      %v395 = vunpack.c.l.b16 %v286
      %v396 = vunpack.c.l.b16 %v287
      %v397 = vunpack.c.l.b16 %v288
      %v398 = vunpack.c.l.b16 %v289
      %v399 = vunpack.c.l.b16 %v290
      %v400 = vunpack.c.l.b16 %v291
      %v401 = vunpack.c.l.b16 %v292
      %v402 = vunpack.c.l.b16 %v293
      %v403 = vunpack.c.l.b16 %v294
      %v404 = vunpack.c.l.b16 %v295
      %v405 = vunpack.c.l.b16 %v296
      %v406 = vunpack.c.l.b16 %v297
      %v407 = vunpack.c.l.b16 %v298
      %v408 = vunpack.c.l.b16 %v299
      %v409 = vunpack.c.l.b16 %v300
      %v410 = vunpack.c.l.b16 %v301
      %v411 = vunpack.c.l.b16 %v302
      %v412 = vunpack.c.l.b16 %v303
      %v413 = vunpack.c.l.b16 %v304
      %v414 = vunpack.c.l.b16 %v305
      %v415 = vunpack.c.l.b16 %v306
      %v416 = vunpack.c.l.b16 %v307
      %v417 = vunpack.c.l.b16 %v308
      %v418 = vunpack.c.l.b16 %v309
      %v419 = vunpack.c.l.b16 %v310
      %v420 = vunpack.c.l.b16 %v311
      %v421 = vunpack.c.l.b16 %v312
      %v422 = vunpack.c.l.b16 %v313
      %v423 = vunpack.c.l.b16 %v314
      %v424 = vunpack.c.l.b16 %v315
      %v425 = vunpack.c.l.b16 %v316
      %v426 = vunpack.c.l.b16 %v317
      %v427 = vunpack.c.l.b16 %v318
      %v428 = vunpack.c.l.b16 %v319
      %v429 = vunpack.c.l.b16 %v320
      %v430 = vunpack.c.l.b16 %v321
      %v431 = vunpack.c.l.b16 %v322
      %v432 = vunpack.c.l.b16 %v323
      %v433 = vunpack.c.l.b16 %v324
      %v434 = vunpack.c.l.b16 %v325
      %v435 = vunpack.c.l.b16 %v326
      %v436 = vunpack.c.l.b16 %v327
      %v437 = vunpack.c.l.b16 %v328
      %v438 = vunpack.c.l.b16 %v329
      %v439 = vunpack.c.l.b16 %v330
      %v440 = vunpack.c.l.b16 %v331
      %v441 = vunpack.c.l.b16 %v332
      %v442 = vunpack.c.l.b16 %v333
      %v443 = vpack.c.b16 %v390, %v389
      %v444 = vpack.c.b16 %v392, %v391
      %v445 = vpack.c.b16 %v394, %v393
      %v446 = vpack.c.b16 %v396, %v395
      %v447 = vpack.c.b16 %v398, %v397
      %v448 = vpack.c.b16 %v400, %v399
      %v449 = vpack.c.b16 %v402, %v401
      %v450 = vpack.c.b16 %v404, %v403
      %v451 = vpack.c.b16 %v406, %v405
      %v452 = vpack.c.b16 %v408, %v407
      %v453 = vpack.c.b16 %v410, %v409
      %v454 = vpack.c.b16 %v412, %v411
      %v455 = vpack.c.b16 %v414, %v413
      %v456 = vpack.c.b16 %v416, %v415
      %v457 = vpack.c.b16 %v418, %v417
      %v458 = vpack.c.b16 %v420, %v419
      %v459 = vpack.c.b16 %v422, %v421
      %v460 = vpack.c.b16 %v424, %v423
      %v461 = vpack.c.b16 %v426, %v425
      %v462 = vpack.c.b16 %v428, %v427
      %v463 = vpack.c.b16 %v430, %v429
      %v464 = vpack.c.b16 %v432, %v431
      %v465 = vpack.c.b16 %v434, %v433
      %v466 = vpack.c.b16 %v436, %v435
      %v467 = vpack.c.b16 %v438, %v437
      %v468 = vpack.c.b16 %v440, %v439
      %v469 = vpack.c.b16 %v442, %v441
      %vm470 = vcmask 39936
      %v472 = vsel %vm470, %v443, 0
      %v475 = vsel %vm470, %v444, 0
      %v478 = vsel %vm470, %v445, 0
      %v481 = vsel %vm470, %v446, 0
      %v484 = vsel %vm470, %v447, 0
      %v487 = vsel %vm470, %v448, 0
      %v490 = vsel %vm470, %v449, 0
      %v493 = vsel %vm470, %v450, 0
      %v496 = vsel %vm470, %v451, 0
      %v499 = vsel %vm470, %v452, 0
      %v502 = vsel %vm470, %v453, 0
      %v505 = vsel %vm470, %v454, 0
      %v508 = vsel %vm470, %v455, 0
      %v511 = vsel %vm470, %v456, 0
      %v514 = vsel %vm470, %v457, 0
      %v517 = vsel %vm470, %v458, 0
      %v520 = vsel %vm470, %v459, 0
      %v523 = vsel %vm470, %v460, 0
      %v526 = vsel %vm470, %v461, 0
      %v529 = vsel %vm470, %v462, 0
      %v532 = vsel %vm470, %v463, 0
      %v535 = vsel %vm470, %v464, 0
      %v538 = vsel %vm470, %v465, 0
      %v541 = vsel %vm470, %v466, 0
      %v544 = vsel %vm470, %v467, 0
      %v547 = vsel %vm470, %v468, 0
      %v550 = vsel %vm470, %v469, 0
      %vm552 = vcmask 1041408
      %vm553 = vcmask 1042432
      %v554 = vsel %vm552, 4294967295, 65535
      %v555 = vsel %vm553, %v554, 0
      %v557 = vand.u32 %v334, %v555
      %559 = vmatprep.subr.bf16.mxu0 0
      %560 = vmatpush1.bf16.msra.mxu0 %v557
      %561 = vmatprep.subr.bf16.mxu0 0
      %562 = vmatpush1.bf16.msra.mxu0 0
      %563 = vmatprep.subr.bf16.mxu0 0
      %564 = vmatpush1.bf16.msra.mxu0 0
      %565 = vmatprep.subr.bf16.mxu0 0
      %566 = vmatpush1.bf16.msra.mxu0 0
      %567 = vmatprep.subr.bf16.mxu0 0
      %568 = vmatpush1.bf16.msra.mxu0 0
      %569 = vmatprep.subr.bf16.mxu0 0
      %570 = vmatpush1.bf16.msra.mxu0 0
      %571 = vmatprep.subr.bf16.mxu0 0
      %572 = vmatpush1.bf16.msra.mxu0 0
      %573 = vmatprep.subr.bf16.mxu0 0
      %574 = vmatpush1.bf16.msra.mxu0 0
      %575 = vmatprep.subr.bf16.mxu0 0
      %576 = vmatpush1.bf16.msra.mxu0 0
      %577 = vmatprep.subr.bf16.mxu0 0
      %578 = vmatpush1.bf16.msra.mxu0 0
      %579 = vmatprep.subr.bf16.mxu0 0
      %580 = vmatpush1.bf16.msra.mxu0 0
      %581 = vmatprep.subr.bf16.mxu0 0
      %582 = vmatpush1.bf16.msra.mxu0 0
      %583 = vmatprep.subr.bf16.mxu0 0
      %584 = vmatpush1.bf16.msra.mxu0 0
      %585 = vmatprep.subr.bf16.mxu0 0
      %586 = vmatpush1.bf16.msra.mxu0 0
      %587 = vmatprep.subr.bf16.mxu0 0
      %588 = vmatpush1.bf16.msra.mxu0 0
      %589 = vmatprep.subr.bf16.mxu0 0
      %590 = vmatpush1.bf16.msra.mxu0 0
      %591 = vmatprep.mubr.bf16.mxu0 0
      %592 = vmatmul.mubr.bf16.gmra.mrb[0].mxu0 %v472
      %v593 = vpop.f32.mrb[0].mxu0
      %v594 = vadd.f32 0.0, %v593
      %v595 = vpop.f32.mrb[0].mxu0
      %v596 = vpop.f32.mrb[0].mxu0
      %v597 = vadd.f32 0.0, %v596
      %v598 = vpop.f32.mrb[0].mxu0
      %599 = vmatprep.mubr.bf16.mxu0 0
      %600 = vmatmul.mubr.bf16.gmra.mrb[0].mxu0 %v475
      %v601 = vpop.f32.mrb[0].mxu0
      %v602 = vadd.f32 0.0, %v601
      %v603 = vpop.f32.mrb[0].mxu0
      %v604 = vpop.f32.mrb[0].mxu0
      %v605 = vadd.f32 0.0, %v604
      %v606 = vpop.f32.mrb[0].mxu0
      %607 = vmatprep.mubr.bf16.mxu0 0
      %608 = vmatmul.mubr.bf16.gmra.mrb[0].mxu0 %v478
      %v609 = vpop.f32.mrb[0].mxu0
      %v610 = vadd.f32 0.0, %v609
      %v611 = vpop.f32.mrb[0].mxu0
      %v612 = vpop.f32.mrb[0].mxu0
      %v613 = vadd.f32 0.0, %v612
      %v614 = vpop.f32.mrb[0].mxu0
      %615 = vmatprep.mubr.bf16.mxu0 0
      %616 = vmatmul.mubr.bf16.gmra.mrb[0].mxu0 %v481
      %v617 = vpop.f32.mrb[0].mxu0
      %v618 = vadd.f32 0.0, %v617
      %v619 = vpop.f32.mrb[0].mxu0
      %v620 = vpop.f32.mrb[0].mxu0
      %v621 = vadd.f32 0.0, %v620
      %v622 = vpop.f32.mrb[0].mxu0
      %623 = vmatprep.mubr.bf16.mxu0 0
      %624 = vmatmul.mubr.bf16.gmra.mrb[0].mxu0 %v484
      %v625 = vpop.f32.mrb[0].mxu0
      %v626 = vadd.f32 0.0, %v625
      %v627 = vpop.f32.mrb[0].mxu0
      %v628 = vpop.f32.mrb[0].mxu0
      %v629 = vadd.f32 0.0, %v628
      %v630 = vpop.f32.mrb[0].mxu0
      %631 = vmatprep.mubr.bf16.mxu0 0
      %632 = vmatmul.mubr.bf16.gmra.mrb[0].mxu0 %v487
      %v633 = vpop.f32.mrb[0].mxu0
      %v634 = vadd.f32 0.0, %v633
      %v635 = vpop.f32.mrb[0].mxu0
      %v636 = vpop.f32.mrb[0].mxu0
      %v637 = vadd.f32 0.0, %v636
      %v638 = vpop.f32.mrb[0].mxu0
      %639 = vmatprep.mubr.bf16.mxu0 0
      %640 = vmatmul.mubr.bf16.gmra.mrb[0].mxu0 %v490
      %v641 = vpop.f32.mrb[0].mxu0
      %v642 = vadd.f32 0.0, %v641
      %v643 = vpop.f32.mrb[0].mxu0
      %v644 = vpop.f32.mrb[0].mxu0
      %v645 = vadd.f32 0.0, %v644
      %v646 = vpop.f32.mrb[0].mxu0
      %647 = vmatprep.mubr.bf16.mxu0 0
      %648 = vmatmul.mubr.bf16.gmra.mrb[0].mxu0 %v493
      %v649 = vpop.f32.mrb[0].mxu0
      %v650 = vadd.f32 0.0, %v649
      %v651 = vpop.f32.mrb[0].mxu0
      %v652 = vpop.f32.mrb[0].mxu0
      %v653 = vadd.f32 0.0, %v652
      %v654 = vpop.f32.mrb[0].mxu0
      %655 = vmatprep.mubr.bf16.mxu0 0
      %656 = vmatmul.mubr.bf16.gmra.mrb[0].mxu0 %v496
      %v657 = vpop.f32.mrb[0].mxu0
      %v658 = vadd.f32 0.0, %v657
      %v659 = vpop.f32.mrb[0].mxu0
      %v660 = vpop.f32.mrb[0].mxu0
      %v661 = vadd.f32 0.0, %v660
      %v662 = vpop.f32.mrb[0].mxu0
      %663 = vmatprep.mubr.bf16.mxu0 0
      %664 = vmatmul.mubr.bf16.gmra.mrb[0].mxu0 %v499
      %v665 = vpop.f32.mrb[0].mxu0
      %v666 = vadd.f32 0.0, %v665
      %v667 = vpop.f32.mrb[0].mxu0
      %v668 = vpop.f32.mrb[0].mxu0
      %v669 = vadd.f32 0.0, %v668
      %v670 = vpop.f32.mrb[0].mxu0
      %671 = vmatprep.mubr.bf16.mxu0 0
      %672 = vmatmul.mubr.bf16.gmra.mrb[0].mxu0 %v502
      %v673 = vpop.f32.mrb[0].mxu0
      %v674 = vadd.f32 0.0, %v673
      %v675 = vpop.f32.mrb[0].mxu0
      %v676 = vpop.f32.mrb[0].mxu0
      %v677 = vadd.f32 0.0, %v676
      %v678 = vpop.f32.mrb[0].mxu0
      %679 = vmatprep.mubr.bf16.mxu0 0
      %680 = vmatmul.mubr.bf16.gmra.mrb[0].mxu0 %v505
      %v681 = vpop.f32.mrb[0].mxu0
      %v682 = vadd.f32 0.0, %v681
      %v683 = vpop.f32.mrb[0].mxu0
      %v684 = vpop.f32.mrb[0].mxu0
      %v685 = vadd.f32 0.0, %v684
      %v686 = vpop.f32.mrb[0].mxu0
      %687 = vmatprep.mubr.bf16.mxu0 0
      %688 = vmatmul.mubr.bf16.gmra.mrb[0].mxu0 %v508
      %v689 = vpop.f32.mrb[0].mxu0
      %v690 = vadd.f32 0.0, %v689
      %v691 = vpop.f32.mrb[0].mxu0
      %v692 = vpop.f32.mrb[0].mxu0
      %v693 = vadd.f32 0.0, %v692
      %v694 = vpop.f32.mrb[0].mxu0
      %695 = vmatprep.mubr.bf16.mxu0 0
      %696 = vmatmul.mubr.bf16.gmra.mrb[0].mxu0 %v511
      %v697 = vpop.f32.mrb[0].mxu0
      %v698 = vadd.f32 0.0, %v697
      %v699 = vpop.f32.mrb[0].mxu0
      %v700 = vpop.f32.mrb[0].mxu0
      %v701 = vadd.f32 0.0, %v700
      %v702 = vpop.f32.mrb[0].mxu0
      %703 = vmatprep.mubr.bf16.mxu0 0
      %704 = vmatmul.mubr.bf16.gmra.mrb[0].mxu0 %v514
      %v705 = vpop.f32.mrb[0].mxu0
      %v706 = vadd.f32 0.0, %v705
      %v707 = vpop.f32.mrb[0].mxu0
      %v708 = vpop.f32.mrb[0].mxu0
      %v709 = vadd.f32 0.0, %v708
      %v710 = vpop.f32.mrb[0].mxu0
      %711 = vmatprep.mubr.bf16.mxu0 0
      %712 = vmatmul.mubr.bf16.gmra.mrb[0].mxu0 %v517
      %v713 = vpop.f32.mrb[0].mxu0
      %v714 = vadd.f32 0.0, %v713
      %v715 = vpop.f32.mrb[0].mxu0
      %v716 = vpop.f32.mrb[0].mxu0
      %v717 = vadd.f32 0.0, %v716
      %v718 = vpop.f32.mrb[0].mxu0
      %719 = vmatprep.mubr.bf16.mxu0 0
      %720 = vmatmul.mubr.bf16.gmra.mrb[0].mxu0 %v520
      %v721 = vpop.f32.mrb[0].mxu0
      %v722 = vadd.f32 0.0, %v721
      %v723 = vpop.f32.mrb[0].mxu0
      %v724 = vpop.f32.mrb[0].mxu0
      %v725 = vadd.f32 0.0, %v724
      %v726 = vpop.f32.mrb[0].mxu0
      %727 = vmatprep.mubr.bf16.mxu0 0
      %728 = vmatmul.mubr.bf16.gmra.mrb[0].mxu0 %v523
      %v729 = vpop.f32.mrb[0].mxu0
      %v730 = vadd.f32 0.0, %v729
      %v731 = vpop.f32.mrb[0].mxu0
      %v732 = vpop.f32.mrb[0].mxu0
      %v733 = vadd.f32 0.0, %v732
      %v734 = vpop.f32.mrb[0].mxu0
      %735 = vmatprep.mubr.bf16.mxu0 0
      %736 = vmatmul.mubr.bf16.gmra.mrb[0].mxu0 %v526
      %v737 = vpop.f32.mrb[0].mxu0
      %v738 = vadd.f32 0.0, %v737
      %v739 = vpop.f32.mrb[0].mxu0
      %v740 = vpop.f32.mrb[0].mxu0
      %v741 = vadd.f32 0.0, %v740
      %v742 = vpop.f32.mrb[0].mxu0
      %743 = vmatprep.mubr.bf16.mxu0 0
      %744 = vmatmul.mubr.bf16.gmra.mrb[0].mxu0 %v529
      %v745 = vpop.f32.mrb[0].mxu0
      %v746 = vadd.f32 0.0, %v745
      %v747 = vpop.f32.mrb[0].mxu0
      %v748 = vpop.f32.mrb[0].mxu0
      %v749 = vadd.f32 0.0, %v748
      %v750 = vpop.f32.mrb[0].mxu0
      %751 = vmatprep.mubr.bf16.mxu0 0
      %752 = vmatmul.mubr.bf16.gmra.mrb[0].mxu0 %v532
      %v753 = vpop.f32.mrb[0].mxu0
      %v754 = vadd.f32 0.0, %v753
      %v755 = vpop.f32.mrb[0].mxu0
      %v756 = vpop.f32.mrb[0].mxu0
      %v757 = vadd.f32 0.0, %v756
      %v758 = vpop.f32.mrb[0].mxu0
      %759 = vmatprep.mubr.bf16.mxu0 0
      %760 = vmatmul.mubr.bf16.gmra.mrb[0].mxu0 %v535
      %v761 = vpop.f32.mrb[0].mxu0
      %v762 = vadd.f32 0.0, %v761
      %v763 = vpop.f32.mrb[0].mxu0
      %v764 = vpop.f32.mrb[0].mxu0
      %v765 = vadd.f32 0.0, %v764
      %v766 = vpop.f32.mrb[0].mxu0
      %767 = vmatprep.mubr.bf16.mxu0 0
      %768 = vmatmul.mubr.bf16.gmra.mrb[0].mxu0 %v538
      %v769 = vpop.f32.mrb[0].mxu0
      %v770 = vadd.f32 0.0, %v769
      %v771 = vpop.f32.mrb[0].mxu0
      %v772 = vpop.f32.mrb[0].mxu0
      %v773 = vadd.f32 0.0, %v772
      %v774 = vpop.f32.mrb[0].mxu0
      %775 = vmatprep.mubr.bf16.mxu0 0
      %776 = vmatmul.mubr.bf16.gmra.mrb[0].mxu0 %v541
      %v777 = vpop.f32.mrb[0].mxu0
      %v778 = vadd.f32 0.0, %v777
      %v779 = vpop.f32.mrb[0].mxu0
      %v780 = vpop.f32.mrb[0].mxu0
      %v781 = vadd.f32 0.0, %v780
      %v782 = vpop.f32.mrb[0].mxu0
      %783 = vmatprep.mubr.bf16.mxu0 0
      %784 = vmatmul.mubr.bf16.gmra.mrb[0].mxu0 %v544
      %v785 = vpop.f32.mrb[0].mxu0
      %v786 = vadd.f32 0.0, %v785
      %v787 = vpop.f32.mrb[0].mxu0
      %v788 = vpop.f32.mrb[0].mxu0
      %v789 = vadd.f32 0.0, %v788
      %v790 = vpop.f32.mrb[0].mxu0
      %791 = vmatprep.mubr.bf16.mxu0 0
      %792 = vmatmul.mubr.bf16.gmra.mrb[0].mxu0 %v547
      %v793 = vpop.f32.mrb[0].mxu0
      %v794 = vadd.f32 0.0, %v793
      %v795 = vpop.f32.mrb[0].mxu0
      %v796 = vpop.f32.mrb[0].mxu0
      %v797 = vadd.f32 0.0, %v796
      %v798 = vpop.f32.mrb[0].mxu0
      %799 = vmatprep.mubr.bf16.mxu0 0
      %800 = vmatmul.mubr.bf16.gmra.mrb[0].mxu0 %v550
      %v801 = vpop.f32.mrb[0].mxu0
      %v802 = vadd.f32 0.0, %v801
      %v803 = vpop.f32.mrb[0].mxu0
      %v804 = vpop.f32.mrb[0].mxu0
      %v805 = vadd.f32 0.0, %v804
      %v806 = vpop.f32.mrb[0].mxu0
      %807 = vdwg.mxu0
      %v808 = vmax.f32 %v594, 0.0
      %v809 = vmax.f32 %v597, 0.0
      %v810 = vmax.f32 %v602, 0.0
      %v811 = vmax.f32 %v605, 0.0
      %v812 = vmax.f32 %v610, 0.0
      %v813 = vmax.f32 %v613, 0.0
      %v814 = vmax.f32 %v618, 0.0
      %v815 = vmax.f32 %v621, 0.0
      %v816 = vmax.f32 %v626, 0.0
      %v817 = vmax.f32 %v629, 0.0
      %v818 = vmax.f32 %v634, 0.0
      %v819 = vmax.f32 %v637, 0.0
      %v820 = vmax.f32 %v642, 0.0
      %v821 = vmax.f32 %v645, 0.0
      %v822 = vmax.f32 %v650, 0.0
      %v823 = vmax.f32 %v653, 0.0
      %v824 = vmax.f32 %v658, 0.0
      %v825 = vmax.f32 %v661, 0.0
      %v826 = vmax.f32 %v666, 0.0
      %v827 = vmax.f32 %v669, 0.0
      %v828 = vmax.f32 %v674, 0.0
      %v829 = vmax.f32 %v677, 0.0
      %v830 = vmax.f32 %v682, 0.0
      %v831 = vmax.f32 %v685, 0.0
      %v832 = vmax.f32 %v690, 0.0
      %v833 = vmax.f32 %v693, 0.0
      %v834 = vmax.f32 %v698, 0.0
      %v835 = vmax.f32 %v701, 0.0
      %v836 = vmax.f32 %v706, 0.0
      %v837 = vmax.f32 %v709, 0.0
      %v838 = vmax.f32 %v714, 0.0
      %v839 = vmax.f32 %v717, 0.0
      %v840 = vmax.f32 %v722, 0.0
      %v841 = vmax.f32 %v725, 0.0
      %v842 = vmax.f32 %v730, 0.0
      %v843 = vmax.f32 %v733, 0.0
      %v844 = vmax.f32 %v738, 0.0
      %v845 = vmax.f32 %v741, 0.0
      %v846 = vmax.f32 %v746, 0.0
      %v847 = vmax.f32 %v749, 0.0
      %v848 = vmax.f32 %v754, 0.0
      %v849 = vmax.f32 %v757, 0.0
      %v850 = vmax.f32 %v762, 0.0
      %v851 = vmax.f32 %v765, 0.0
      %v852 = vmax.f32 %v770, 0.0
      %v853 = vmax.f32 %v773, 0.0
      %v854 = vmax.f32 %v778, 0.0
      %v855 = vmax.f32 %v781, 0.0
      %v856 = vmax.f32 %v786, 0.0
      %v857 = vmax.f32 %v789, 0.0
      %v858 = vmax.f32 %v794, 0.0
      %v859 = vmax.f32 %v797, 0.0
      %v860 = vmax.f32 %v802, 0.0
      %v861 = vmax.f32 %v805, 0.0
      %v862 = vpack.c.bf16 %v809, %v808
      %v863 = vpack.c.bf16 %v810, %v810
      %v864 = vpack.c.bf16 %v812, %v811
      %v865 = vpack.c.bf16 %v813, %v813
      %v866 = vpack.c.bf16 %v815, %v814
      %v867 = vpack.c.bf16 %v816, %v816
      %v868 = vpack.c.bf16 %v818, %v817
      %v869 = vpack.c.bf16 %v819, %v819
      %v870 = vpack.c.bf16 %v821, %v820
      %v871 = vpack.c.bf16 %v822, %v822
      %v872 = vpack.c.bf16 %v824, %v823
      %v873 = vpack.c.bf16 %v825, %v825
      %v874 = vpack.c.bf16 %v827, %v826
      %v875 = vpack.c.bf16 %v828, %v828
      %v876 = vpack.c.bf16 %v830, %v829
      %v877 = vpack.c.bf16 %v831, %v831
      %v878 = vpack.c.bf16 %v833, %v832
      %v879 = vpack.c.bf16 %v834, %v834
      %v880 = vpack.c.bf16 %v836, %v835
      %v881 = vpack.c.bf16 %v837, %v837
      %v882 = vpack.c.bf16 %v839, %v838
      %v883 = vpack.c.bf16 %v840, %v840
      %v884 = vpack.c.bf16 %v842, %v841
      %v885 = vpack.c.bf16 %v843, %v843
      %v886 = vpack.c.bf16 %v845, %v844
      %v887 = vpack.c.bf16 %v846, %v846
      %v888 = vpack.c.bf16 %v848, %v847
      %v889 = vpack.c.bf16 %v849, %v849
      %v890 = vpack.c.bf16 %v851, %v850
      %v891 = vpack.c.bf16 %v852, %v852
      %v892 = vpack.c.bf16 %v854, %v853
      %v893 = vpack.c.bf16 %v855, %v855
      %v894 = vpack.c.bf16 %v857, %v856
      %v895 = vpack.c.bf16 %v858, %v858
      %v896 = vpack.c.bf16 %v860, %v859
      %v897 = vpack.c.bf16 %v861, %v861
      %v934 = vunpack.c.l.b16 %v862
      %v935 = vunpack.c.h.b16 %v862
      %v936 = vunpack.c.l.b16 %v863
      %v937 = vunpack.c.l.b16 %v864
      %v938 = vunpack.c.h.b16 %v864
      %v939 = vunpack.c.l.b16 %v865
      %v940 = vunpack.c.l.b16 %v866
      %v941 = vunpack.c.h.b16 %v866
      %v942 = vunpack.c.l.b16 %v867
      %v943 = vunpack.c.l.b16 %v868
      %v944 = vunpack.c.h.b16 %v868
      %v945 = vunpack.c.l.b16 %v869
      %v946 = vunpack.c.l.b16 %v870
      %v947 = vunpack.c.h.b16 %v870
      %v948 = vunpack.c.l.b16 %v871
      %v949 = vunpack.c.l.b16 %v872
      %v950 = vunpack.c.h.b16 %v872
      %v951 = vunpack.c.l.b16 %v873
      %v952 = vunpack.c.l.b16 %v874
      %v953 = vunpack.c.h.b16 %v874
      %v954 = vunpack.c.l.b16 %v875
      %v955 = vunpack.c.l.b16 %v876
      %v956 = vunpack.c.h.b16 %v876
      %v957 = vunpack.c.l.b16 %v877
      %v958 = vunpack.c.l.b16 %v878
      %v959 = vunpack.c.h.b16 %v878
      %v960 = vunpack.c.l.b16 %v879
      %v961 = vunpack.c.l.b16 %v880
      %v962 = vunpack.c.h.b16 %v880
      %v963 = vunpack.c.l.b16 %v881
      %v964 = vunpack.c.l.b16 %v882
      %v965 = vunpack.c.h.b16 %v882
      %v966 = vunpack.c.l.b16 %v883
      %v967 = vunpack.c.l.b16 %v884
      %v968 = vunpack.c.h.b16 %v884
      %v969 = vunpack.c.l.b16 %v885
      %v970 = vunpack.c.l.b16 %v886
      %v971 = vunpack.c.h.b16 %v886
      %v972 = vunpack.c.l.b16 %v887
      %v973 = vunpack.c.l.b16 %v888
      %v974 = vunpack.c.h.b16 %v888
      %v975 = vunpack.c.l.b16 %v889
      %v976 = vunpack.c.l.b16 %v890
      %v977 = vunpack.c.h.b16 %v890
      %v978 = vunpack.c.l.b16 %v891
      %v979 = vunpack.c.l.b16 %v892
      %v980 = vunpack.c.h.b16 %v892
      %v981 = vunpack.c.l.b16 %v893
      %v982 = vunpack.c.l.b16 %v894
      %v983 = vunpack.c.h.b16 %v894
      %v984 = vunpack.c.l.b16 %v895
      %v985 = vunpack.c.l.b16 %v896
      %v986 = vunpack.c.h.b16 %v896
      %v987 = vunpack.c.l.b16 %v897
      %v988 = vpack.c.b16 %v934, %v934
      %v989 = vpack.c.b16 %v935, %v935
      %v990 = vpack.c.b16 %v936, %v936
      %v991 = vpack.c.b16 %v937, %v937
      %v992 = vpack.c.b16 %v938, %v938
      %v993 = vpack.c.b16 %v939, %v939
      %v994 = vpack.c.b16 %v940, %v940
      %v995 = vpack.c.b16 %v941, %v941
      %v996 = vpack.c.b16 %v942, %v942
      %v997 = vpack.c.b16 %v943, %v943
      %v998 = vpack.c.b16 %v944, %v944
      %v999 = vpack.c.b16 %v945, %v945
      %v1000 = vpack.c.b16 %v946, %v946
      %v1001 = vpack.c.b16 %v947, %v947
      %v1002 = vpack.c.b16 %v948, %v948
      %v1003 = vpack.c.b16 %v949, %v949
      %v1004 = vpack.c.b16 %v950, %v950
      %v1005 = vpack.c.b16 %v951, %v951
      %v1006 = vpack.c.b16 %v952, %v952
      %v1007 = vpack.c.b16 %v953, %v953
      %v1008 = vpack.c.b16 %v954, %v954
      %v1009 = vpack.c.b16 %v955, %v955
      %v1010 = vpack.c.b16 %v956, %v956
      %v1011 = vpack.c.b16 %v957, %v957
      %v1012 = vpack.c.b16 %v958, %v958
      %v1013 = vpack.c.b16 %v959, %v959
      %v1014 = vpack.c.b16 %v960, %v960
      %v1015 = vpack.c.b16 %v961, %v961
      %v1016 = vpack.c.b16 %v962, %v962
      %v1017 = vpack.c.b16 %v963, %v963
      %v1018 = vpack.c.b16 %v964, %v964
      %v1019 = vpack.c.b16 %v965, %v965
      %v1020 = vpack.c.b16 %v966, %v966
      %v1021 = vpack.c.b16 %v967, %v967
      %v1022 = vpack.c.b16 %v968, %v968
      %v1023 = vpack.c.b16 %v969, %v969
      %v1024 = vpack.c.b16 %v970, %v970
      %v1025 = vpack.c.b16 %v971, %v971
      %v1026 = vpack.c.b16 %v972, %v972
      %v1027 = vpack.c.b16 %v973, %v973
      %v1028 = vpack.c.b16 %v974, %v974
      %v1029 = vpack.c.b16 %v975, %v975
      %v1030 = vpack.c.b16 %v976, %v976
      %v1031 = vpack.c.b16 %v977, %v977
      %v1032 = vpack.c.b16 %v978, %v978
      %v1033 = vpack.c.b16 %v979, %v979
      %v1034 = vpack.c.b16 %v980, %v980
      %v1035 = vpack.c.b16 %v981, %v981
      %v1036 = vpack.c.b16 %v982, %v982
      %v1037 = vpack.c.b16 %v983, %v983
      %v1038 = vpack.c.b16 %v984, %v984
      %v1039 = vpack.c.b16 %v985, %v985
      %v1040 = vpack.c.b16 %v986, %v986
      %v1041 = vpack.c.b16 %v987, %v987
      %1096 = vst [vmem:[#allocation2] sm:$0xf] %v988
      %1097 = vst [vmem:[#allocation2 + $0x4] sm:$0xf] %v989
      %1098 = vst [vmem:[#allocation2 + $0x8] sm:$0xf] %v990
      %1099 = vst [vmem:[#allocation2 + $0xc] sm:$0xf] %v991
      %1100 = vst [vmem:[#allocation2 + $0x10] sm:$0xf] %v992
      %1101 = vst [vmem:[#allocation2 + $0x14] sm:$0xf] %v993
      %1102 = vst [vmem:[#allocation2 + $0x18] sm:$0xf] %v994
      %1103 = vst [vmem:[#allocation2 + $0x1c] sm:$0xf] %v995
      %1104 = vst [vmem:[#allocation2 + $0x20] sm:$0xf] %v996
      %1105 = vst [vmem:[#allocation2 + $0x24] sm:$0xf] %v997
      %1106 = vst [vmem:[#allocation2 + $0x28] sm:$0xf] %v998
      %1107 = vst [vmem:[#allocation2 + $0x2c] sm:$0xf] %v999
      %1108 = vst [vmem:[#allocation2 + $0x30] sm:$0xf] %v1000
      %1109 = vst [vmem:[#allocation2 + $0x34] sm:$0xf] %v1001
      %1110 = vst [vmem:[#allocation2 + $0x38] sm:$0xf] %v1002
      %1111 = vst [vmem:[#allocation2 + $0x3c] sm:$0xf] %v1003
      %1112 = vst [vmem:[#allocation2 + $0x40] sm:$0xf] %v1004
      %1113 = vst [vmem:[#allocation2 + $0x44] sm:$0xf] %v1005
      %1114 = vst [vmem:[#allocation2 + $0x48] sm:$0xf] %v1006
      %1115 = vst [vmem:[#allocation2 + $0x4c] sm:$0xf] %v1007
      %1116 = vst [vmem:[#allocation2 + $0x50] sm:$0xf] %v1008
      %1117 = vst [vmem:[#allocation2 + $0x54] sm:$0xf] %v1009
      %1118 = vst [vmem:[#allocation2 + $0x58] sm:$0xf] %v1010
      %1119 = vst [vmem:[#allocation2 + $0x5c] sm:$0xf] %v1011
      %1120 = vst [vmem:[#allocation2 + $0x60] sm:$0xf] %v1012
      %1121 = vst [vmem:[#allocation2 + $0x64] sm:$0xf] %v1013
      %1122 = vst [vmem:[#allocation2 + $0x68] sm:$0xf] %v1014
      %1123 = vst [vmem:[#allocation2 + $0x6c] sm:$0xf] %v1015
      %1124 = vst [vmem:[#allocation2 + $0x70] sm:$0xf] %v1016
      %1125 = vst [vmem:[#allocation2 + $0x74] sm:$0xf] %v1017
      %1126 = vst [vmem:[#allocation2 + $0x78] sm:$0xf] %v1018
      %1127 = vst [vmem:[#allocation2 + $0x7c] sm:$0xf] %v1019
      %1128 = vst [vmem:[#allocation2 + $0x80] sm:$0xf] %v1020
      %1129 = vst [vmem:[#allocation2 + $0x84] sm:$0xf] %v1021
      %1130 = vst [vmem:[#allocation2 + $0x88] sm:$0xf] %v1022
      %1131 = vst [vmem:[#allocation2 + $0x8c] sm:$0xf] %v1023
      %1132 = vst [vmem:[#allocation2 + $0x90] sm:$0xf] %v1024
      %1133 = vst [vmem:[#allocation2 + $0x94] sm:$0xf] %v1025
      %1134 = vst [vmem:[#allocation2 + $0x98] sm:$0xf] %v1026
      %1135 = vst [vmem:[#allocation2 + $0x9c] sm:$0xf] %v1027
      %1136 = vst [vmem:[#allocation2 + $0xa0] sm:$0xf] %v1028
      %1137 = vst [vmem:[#allocation2 + $0xa4] sm:$0xf] %v1029
      %1138 = vst [vmem:[#allocation2 + $0xa8] sm:$0xf] %v1030
      %1139 = vst [vmem:[#allocation2 + $0xac] sm:$0xf] %v1031
      %1140 = vst [vmem:[#allocation2 + $0xb0] sm:$0xf] %v1032
      %1141 = vst [vmem:[#allocation2 + $0xb4] sm:$0xf] %v1033
      %1142 = vst [vmem:[#allocation2 + $0xb8] sm:$0xf] %v1034
      %1143 = vst [vmem:[#allocation2 + $0xbc] sm:$0xf] %v1035
      %1144 = vst [vmem:[#allocation2 + $0xc0] sm:$0xf] %v1036
      %1145 = vst [vmem:[#allocation2 + $0xc4] sm:$0xf] %v1037
      %1146 = vst [vmem:[#allocation2 + $0xc8] sm:$0xf] %v1038
      %1147 = vst [vmem:[#allocation2 + $0xcc] sm:$0xf] %v1039
      %1148 = vst [vmem:[#allocation2 + $0xd0] sm:$0xf] %v1040
      %1149 = vst [vmem:[#allocation2 + $0xd4] sm:$0xf] %v1041
      %v1150 = vld [vmem:[#allocation2] sm:$0xf]
      %v1151 = vld [vmem:[#allocation2 + $0x4] sm:$0xf]
      %v1152 = vld [vmem:[#allocation2 + $0xc] sm:$0xf]
      %v1153 = vld [vmem:[#allocation2 + $0x10] sm:$0xf]
      %v1154 = vld [vmem:[#allocation2 + $0x18] sm:$0xf]
      %v1155 = vld [vmem:[#allocation2 + $0x1c] sm:$0xf]
      %v1156 = vld [vmem:[#allocation2 + $0x24] sm:$0xf]
      %v1157 = vld [vmem:[#allocation2 + $0x28] sm:$0xf]
      %v1158 = vld [vmem:[#allocation2 + $0x30] sm:$0xf]
      %v1159 = vld [vmem:[#allocation2 + $0x34] sm:$0xf]
      %v1160 = vld [vmem:[#allocation2 + $0x3c] sm:$0xf]
      %v1161 = vld [vmem:[#allocation2 + $0x40] sm:$0xf]
      %v1162 = vld [vmem:[#allocation2 + $0x48] sm:$0xf]
      %v1163 = vld [vmem:[#allocation2 + $0x4c] sm:$0xf]
      %v1164 = vld [vmem:[#allocation2 + $0x54] sm:$0xf]
      %v1165 = vld [vmem:[#allocation2 + $0x58] sm:$0xf]
      %v1166 = vld [vmem:[#allocation2 + $0x60] sm:$0xf]
      %v1167 = vld [vmem:[#allocation2 + $0x64] sm:$0xf]
      %v1168 = vld [vmem:[#allocation2 + $0x6c] sm:$0xf]
      %v1169 = vld [vmem:[#allocation2 + $0x70] sm:$0xf]
      %v1170 = vld [vmem:[#allocation2 + $0x78] sm:$0xf]
      %v1171 = vld [vmem:[#allocation2 + $0x7c] sm:$0xf]
      %v1172 = vld [vmem:[#allocation2 + $0x84] sm:$0xf]
      %v1173 = vld [vmem:[#allocation2 + $0x88] sm:$0xf]
      %v1174 = vld [vmem:[#allocation2 + $0x90] sm:$0xf]
      %v1175 = vld [vmem:[#allocation2 + $0x94] sm:$0xf]
      %v1176 = vld [vmem:[#allocation2 + $0x9c] sm:$0xf]
      %v1177 = vld [vmem:[#allocation2 + $0xa0] sm:$0xf]
      %v1178 = vld [vmem:[#allocation2 + $0xa8] sm:$0xf]
      %v1179 = vld [vmem:[#allocation2 + $0xac] sm:$0xf]
      %v1180 = vld [vmem:[#allocation2 + $0xb4] sm:$0xf]
      %v1181 = vld [vmem:[#allocation2 + $0xb8] sm:$0xf]
      %v1182 = vld [vmem:[%s2] sm:$0xf]
      %v1183 = vld [vmem:[%s2 + $0x4] sm:$0xf]
      %v1184 = vld [vmem:[%s2 + $0x8] sm:$0xf]
      %v1185 = vld [vmem:[%s2 + $0xc] sm:$0xf]
      %v1186 = vld [vmem:[%s2 + $0x10] sm:$0xf]
      %v1187 = vld [vmem:[%s2 + $0x14] sm:$0xf]
      %v1188 = vld [vmem:[%s2 + $0x18] sm:$0xf]
      %v1189 = vld [vmem:[%s2 + $0x1c] sm:$0xf]
      %v1190 = vld [vmem:[%s2 + $0x20] sm:$0xf]
      %v1191 = vld [vmem:[%s2 + $0x24] sm:$0xf]
      %v1192 = vld [vmem:[%s2 + $0x28] sm:$0xf]
      %v1193 = vld [vmem:[%s2 + $0x2c] sm:$0xf]
      %v1194 = vld [vmem:[%s2 + $0x30] sm:$0xf]
      %v1195 = vld [vmem:[%s2 + $0x34] sm:$0xf]
      %v1196 = vld [vmem:[%s2 + $0x38] sm:$0xf]
      %v1197 = vld [vmem:[%s2 + $0x3c] sm:$0xf]
      %v1198 = vld [vmem:[#allocation2 + $0x8] sm:$0x1]
      %v1199 = vld [vmem:[#allocation2 + $0x14] sm:$0x1]
      %v1200 = vld [vmem:[#allocation2 + $0x20] sm:$0x1]
      %v1201 = vld [vmem:[#allocation2 + $0x2c] sm:$0x1]
      %v1202 = vld [vmem:[#allocation2 + $0x38] sm:$0x1]
      %v1203 = vld [vmem:[#allocation2 + $0x44] sm:$0x1]
      %v1204 = vld [vmem:[#allocation2 + $0x50] sm:$0x1]
      %v1205 = vld [vmem:[#allocation2 + $0x5c] sm:$0x1]
      %v1206 = vld [vmem:[#allocation2 + $0x68] sm:$0x1]
      %v1207 = vld [vmem:[#allocation2 + $0x74] sm:$0x1]
      %v1208 = vld [vmem:[#allocation2 + $0x80] sm:$0x1]
      %v1209 = vld [vmem:[#allocation2 + $0x8c] sm:$0x1]
      %v1210 = vld [vmem:[#allocation2 + $0x98] sm:$0x1]
      %v1211 = vld [vmem:[#allocation2 + $0xa4] sm:$0x1]
      %v1212 = vld [vmem:[#allocation2 + $0xb0] sm:$0x1]
      %v1213 = vld [vmem:[#allocation2 + $0xbc] sm:$0x1]
      %vm1214 = vsmask.f32 3328
      %vm1215 = vsmask.f32 7440
      %vm1216 = vmor %vm1214, %vm1215
      %v1218 = vshrl.u32 %v1150, 16
      %v1220 = vrot.slane %v1218, 4
      %v1221 = vshll.u32 %v1150, 16
      %v1223 = vrot.slane %v1221, 5
      %v1224 = vor.u32 %v1220, %v1223
      %v1225 = vrot.slane %v1224, 4
      %v1227 = vshll.u32 %v1151, 16
      %v1229 = vrot.slane %v1227, 5
      %v1230 = vsel %vm1216, %v1225, %v1229
      %v1231 = vshrl.u32 %v1151, 16
      %v1233 = vrot.slane %v1231, 4
      %v1234 = vor.u32 %v1233, %v1229
      %v1235 = vrot.slane %v1234, 4
      %v1237 = vshll.u32 %v1198, 16
      %v1239 = vrot.slane %v1237, 5
      %v1240 = vsel %vm1216, %v1235, %v1239
      %v1242 = vshrl.u32 %v1152, 16
      %v1244 = vrot.slane %v1242, 4
      %v1245 = vshll.u32 %v1152, 16
      %v1247 = vrot.slane %v1245, 5
      %v1248 = vor.u32 %v1244, %v1247
      %v1249 = vrot.slane %v1248, 4
      %v1251 = vshll.u32 %v1153, 16
      %v1253 = vrot.slane %v1251, 5
      %v1254 = vsel %vm1216, %v1249, %v1253
      %v1255 = vshrl.u32 %v1153, 16
      %v1257 = vrot.slane %v1255, 4
      %v1258 = vor.u32 %v1257, %v1253
      %v1259 = vrot.slane %v1258, 4
      %v1261 = vshll.u32 %v1199, 16
      %v1263 = vrot.slane %v1261, 5
      %v1264 = vsel %vm1216, %v1259, %v1263
      %v1266 = vshrl.u32 %v1154, 16
      %v1268 = vrot.slane %v1266, 4
      %v1269 = vshll.u32 %v1154, 16
      %v1271 = vrot.slane %v1269, 5
      %v1272 = vor.u32 %v1268, %v1271
      %v1273 = vrot.slane %v1272, 4
      %v1275 = vshll.u32 %v1155, 16
      %v1277 = vrot.slane %v1275, 5
      %v1278 = vsel %vm1216, %v1273, %v1277
      %v1279 = vshrl.u32 %v1155, 16
      %v1281 = vrot.slane %v1279, 4
      %v1282 = vor.u32 %v1281, %v1277
      %v1283 = vrot.slane %v1282, 4
      %v1285 = vshll.u32 %v1200, 16
      %v1287 = vrot.slane %v1285, 5
      %v1288 = vsel %vm1216, %v1283, %v1287
      %v1290 = vshrl.u32 %v1156, 16
      %v1292 = vrot.slane %v1290, 4
      %v1293 = vshll.u32 %v1156, 16
      %v1295 = vrot.slane %v1293, 5
      %v1296 = vor.u32 %v1292, %v1295
      %v1297 = vrot.slane %v1296, 4
      %v1299 = vshll.u32 %v1157, 16
      %v1301 = vrot.slane %v1299, 5
      %v1302 = vsel %vm1216, %v1297, %v1301
      %v1303 = vshrl.u32 %v1157, 16
      %v1305 = vrot.slane %v1303, 4
      %v1306 = vor.u32 %v1305, %v1301
      %v1307 = vrot.slane %v1306, 4
      %v1309 = vshll.u32 %v1201, 16
      %v1311 = vrot.slane %v1309, 5
      %v1312 = vsel %vm1216, %v1307, %v1311
      %v1314 = vshrl.u32 %v1158, 16
      %v1316 = vrot.slane %v1314, 4
      %v1317 = vshll.u32 %v1158, 16
      %v1319 = vrot.slane %v1317, 5
      %v1320 = vor.u32 %v1316, %v1319
      %v1321 = vrot.slane %v1320, 4
      %v1323 = vshll.u32 %v1159, 16
      %v1325 = vrot.slane %v1323, 5
      %v1326 = vsel %vm1216, %v1321, %v1325
      %v1327 = vshrl.u32 %v1159, 16
      %v1329 = vrot.slane %v1327, 4
      %v1330 = vor.u32 %v1329, %v1325
      %v1331 = vrot.slane %v1330, 4
      %v1333 = vshll.u32 %v1202, 16
      %v1335 = vrot.slane %v1333, 5
      %v1336 = vsel %vm1216, %v1331, %v1335
      %v1338 = vshrl.u32 %v1160, 16
      %v1340 = vrot.slane %v1338, 4
      %v1341 = vshll.u32 %v1160, 16
      %v1343 = vrot.slane %v1341, 5
      %v1344 = vor.u32 %v1340, %v1343
      %v1345 = vrot.slane %v1344, 4
      %v1347 = vshll.u32 %v1161, 16
      %v1349 = vrot.slane %v1347, 5
      %v1350 = vsel %vm1216, %v1345, %v1349
      %v1351 = vshrl.u32 %v1161, 16
      %v1353 = vrot.slane %v1351, 4
      %v1354 = vor.u32 %v1353, %v1349
      %v1355 = vrot.slane %v1354, 4
      %v1357 = vshll.u32 %v1203, 16
      %v1359 = vrot.slane %v1357, 5
      %v1360 = vsel %vm1216, %v1355, %v1359
      %v1362 = vshrl.u32 %v1162, 16
      %v1364 = vrot.slane %v1362, 4
      %v1365 = vshll.u32 %v1162, 16
      %v1367 = vrot.slane %v1365, 5
      %v1368 = vor.u32 %v1364, %v1367
      %v1369 = vrot.slane %v1368, 4
      %v1371 = vshll.u32 %v1163, 16
      %v1373 = vrot.slane %v1371, 5
      %v1374 = vsel %vm1216, %v1369, %v1373
      %v1375 = vshrl.u32 %v1163, 16
      %v1377 = vrot.slane %v1375, 4
      %v1378 = vor.u32 %v1377, %v1373
      %v1379 = vrot.slane %v1378, 4
      %v1381 = vshll.u32 %v1204, 16
      %v1383 = vrot.slane %v1381, 5
      %v1384 = vsel %vm1216, %v1379, %v1383
      %v1386 = vshrl.u32 %v1164, 16
      %v1388 = vrot.slane %v1386, 4
      %v1389 = vshll.u32 %v1164, 16
      %v1391 = vrot.slane %v1389, 5
      %v1392 = vor.u32 %v1388, %v1391
      %v1393 = vrot.slane %v1392, 4
      %v1395 = vshll.u32 %v1165, 16
      %v1397 = vrot.slane %v1395, 5
      %v1398 = vsel %vm1216, %v1393, %v1397
      %v1399 = vshrl.u32 %v1165, 16
      %v1401 = vrot.slane %v1399, 4
      %v1402 = vor.u32 %v1401, %v1397
      %v1403 = vrot.slane %v1402, 4
      %v1405 = vshll.u32 %v1205, 16
      %v1407 = vrot.slane %v1405, 5
      %v1408 = vsel %vm1216, %v1403, %v1407
      %v1410 = vshrl.u32 %v1166, 16
      %v1412 = vrot.slane %v1410, 4
      %v1413 = vshll.u32 %v1166, 16
      %v1415 = vrot.slane %v1413, 5
      %v1416 = vor.u32 %v1412, %v1415
      %v1417 = vrot.slane %v1416, 4
      %v1419 = vshll.u32 %v1167, 16
      %v1421 = vrot.slane %v1419, 5
      %v1422 = vsel %vm1216, %v1417, %v1421
      %v1423 = vshrl.u32 %v1167, 16
      %v1425 = vrot.slane %v1423, 4
      %v1426 = vor.u32 %v1425, %v1421
      %v1427 = vrot.slane %v1426, 4
      %v1429 = vshll.u32 %v1206, 16
      %v1431 = vrot.slane %v1429, 5
      %v1432 = vsel %vm1216, %v1427, %v1431
      %v1434 = vshrl.u32 %v1168, 16
      %v1436 = vrot.slane %v1434, 4
      %v1437 = vshll.u32 %v1168, 16
      %v1439 = vrot.slane %v1437, 5
      %v1440 = vor.u32 %v1436, %v1439
      %v1441 = vrot.slane %v1440, 4
      %v1443 = vshll.u32 %v1169, 16
      %v1445 = vrot.slane %v1443, 5
      %v1446 = vsel %vm1216, %v1441, %v1445
      %v1447 = vshrl.u32 %v1169, 16
      %v1449 = vrot.slane %v1447, 4
      %v1450 = vor.u32 %v1449, %v1445
      %v1451 = vrot.slane %v1450, 4
      %v1453 = vshll.u32 %v1207, 16
      %v1455 = vrot.slane %v1453, 5
      %v1456 = vsel %vm1216, %v1451, %v1455
      %v1458 = vshrl.u32 %v1170, 16
      %v1460 = vrot.slane %v1458, 4
      %v1461 = vshll.u32 %v1170, 16
      %v1463 = vrot.slane %v1461, 5
      %v1464 = vor.u32 %v1460, %v1463
      %v1465 = vrot.slane %v1464, 4
      %v1467 = vshll.u32 %v1171, 16
      %v1469 = vrot.slane %v1467, 5
      %v1470 = vsel %vm1216, %v1465, %v1469
      %v1471 = vshrl.u32 %v1171, 16
      %v1473 = vrot.slane %v1471, 4
      %v1474 = vor.u32 %v1473, %v1469
      %v1475 = vrot.slane %v1474, 4
      %v1477 = vshll.u32 %v1208, 16
      %v1479 = vrot.slane %v1477, 5
      %v1480 = vsel %vm1216, %v1475, %v1479
      %v1482 = vshrl.u32 %v1172, 16
      %v1484 = vrot.slane %v1482, 4
      %v1485 = vshll.u32 %v1172, 16
      %v1487 = vrot.slane %v1485, 5
      %v1488 = vor.u32 %v1484, %v1487
      %v1489 = vrot.slane %v1488, 4
      %v1491 = vshll.u32 %v1173, 16
      %v1493 = vrot.slane %v1491, 5
      %v1494 = vsel %vm1216, %v1489, %v1493
      %v1495 = vshrl.u32 %v1173, 16
      %v1497 = vrot.slane %v1495, 4
      %v1498 = vor.u32 %v1497, %v1493
      %v1499 = vrot.slane %v1498, 4
      %v1501 = vshll.u32 %v1209, 16
      %v1503 = vrot.slane %v1501, 5
      %v1504 = vsel %vm1216, %v1499, %v1503
      %v1506 = vshrl.u32 %v1174, 16
      %v1508 = vrot.slane %v1506, 4
      %v1509 = vshll.u32 %v1174, 16
      %v1511 = vrot.slane %v1509, 5
      %v1512 = vor.u32 %v1508, %v1511
      %v1513 = vrot.slane %v1512, 4
      %v1515 = vshll.u32 %v1175, 16
      %v1517 = vrot.slane %v1515, 5
      %v1518 = vsel %vm1216, %v1513, %v1517
      %v1519 = vshrl.u32 %v1175, 16
      %v1521 = vrot.slane %v1519, 4
      %v1522 = vor.u32 %v1521, %v1517
      %v1523 = vrot.slane %v1522, 4
      %v1525 = vshll.u32 %v1210, 16
      %v1527 = vrot.slane %v1525, 5
      %v1528 = vsel %vm1216, %v1523, %v1527
      %v1530 = vshrl.u32 %v1176, 16
      %v1532 = vrot.slane %v1530, 4
      %v1533 = vshll.u32 %v1176, 16
      %v1535 = vrot.slane %v1533, 5
      %v1536 = vor.u32 %v1532, %v1535
      %v1537 = vrot.slane %v1536, 4
      %v1539 = vshll.u32 %v1177, 16
      %v1541 = vrot.slane %v1539, 5
      %v1542 = vsel %vm1216, %v1537, %v1541
      %v1543 = vshrl.u32 %v1177, 16
      %v1545 = vrot.slane %v1543, 4
      %v1546 = vor.u32 %v1545, %v1541
      %v1547 = vrot.slane %v1546, 4
      %v1549 = vshll.u32 %v1211, 16
      %v1551 = vrot.slane %v1549, 5
      %v1552 = vsel %vm1216, %v1547, %v1551
      %v1554 = vshrl.u32 %v1178, 16
      %v1556 = vrot.slane %v1554, 4
      %v1557 = vshll.u32 %v1178, 16
      %v1559 = vrot.slane %v1557, 5
      %v1560 = vor.u32 %v1556, %v1559
      %v1561 = vrot.slane %v1560, 4
      %v1563 = vshll.u32 %v1179, 16
      %v1565 = vrot.slane %v1563, 5
      %v1566 = vsel %vm1216, %v1561, %v1565
      %v1567 = vshrl.u32 %v1179, 16
      %v1569 = vrot.slane %v1567, 4
      %v1570 = vor.u32 %v1569, %v1565
      %v1571 = vrot.slane %v1570, 4
      %v1573 = vshll.u32 %v1212, 16
      %v1575 = vrot.slane %v1573, 5
      %v1576 = vsel %vm1216, %v1571, %v1575
      %v1578 = vshrl.u32 %v1180, 16
      %v1580 = vrot.slane %v1578, 4
      %v1581 = vshll.u32 %v1180, 16
      %v1583 = vrot.slane %v1581, 5
      %v1584 = vor.u32 %v1580, %v1583
      %v1585 = vrot.slane %v1584, 4
      %v1587 = vshll.u32 %v1181, 16
      %v1589 = vrot.slane %v1587, 5
      %v1590 = vsel %vm1216, %v1585, %v1589
      %v1591 = vshrl.u32 %v1181, 16
      %v1593 = vrot.slane %v1591, 4
      %v1594 = vor.u32 %v1593, %v1589
      %v1595 = vrot.slane %v1594, 4
      %v1597 = vshll.u32 %v1213, 16
      %v1599 = vrot.slane %v1597, 5
      %v1600 = vsel %vm1216, %v1595, %v1599
      %s1601 = scalar_lea.vmem %s2, 64
      %v1602 = vld [vmem:[%s1601] sm:$0xf]
      %v1603 = vld [vmem:[%s1601 + $0x4] sm:$0xf]
      %v1604 = vld [vmem:[%s1601 + $0x8] sm:$0xf]
      %v1605 = vld [vmem:[%s1601 + $0xc] sm:$0xf]
      %v1606 = vld [vmem:[%s1601 + $0x10] sm:$0xf]
      %v1607 = vld [vmem:[%s1601 + $0x14] sm:$0xf]
      %v1608 = vld [vmem:[%s1601 + $0x18] sm:$0xf]
      %v1609 = vld [vmem:[%s1601 + $0x1c] sm:$0xf]
      %v1610 = vld [vmem:[%s1601 + $0x20] sm:$0xf]
      %v1611 = vld [vmem:[%s1601 + $0x24] sm:$0xf]
      %v1612 = vld [vmem:[%s1601 + $0x28] sm:$0xf]
      %v1613 = vld [vmem:[%s1601 + $0x2c] sm:$0xf]
      %v1614 = vld [vmem:[%s1601 + $0x30] sm:$0xf]
      %v1615 = vld [vmem:[%s1601 + $0x34] sm:$0xf]
      %v1616 = vld [vmem:[%s1601 + $0x38] sm:$0xf]
      %v1617 = vld [vmem:[%s1601 + $0x3c] sm:$0xf]
      %v1618 = vunpack.c.l.b16 %v1230
      %v1619 = vunpack.c.l.b16 %v1240
      %v1620 = vunpack.c.l.b16 %v1254
      %v1621 = vunpack.c.l.b16 %v1264
      %v1622 = vunpack.c.l.b16 %v1278
      %v1623 = vunpack.c.l.b16 %v1288
      %v1624 = vunpack.c.l.b16 %v1302
      %v1625 = vunpack.c.l.b16 %v1312
      %v1626 = vunpack.c.l.b16 %v1326
      %v1627 = vunpack.c.l.b16 %v1336
      %v1628 = vunpack.c.l.b16 %v1350
      %v1629 = vunpack.c.l.b16 %v1360
      %v1630 = vunpack.c.l.b16 %v1374
      %v1631 = vunpack.c.l.b16 %v1384
      %v1632 = vunpack.c.l.b16 %v1398
      %v1633 = vunpack.c.l.b16 %v1408
      %v1634 = vunpack.c.l.b16 %v1422
      %v1635 = vunpack.c.l.b16 %v1432
      %v1636 = vunpack.c.l.b16 %v1446
      %v1637 = vunpack.c.l.b16 %v1456
      %v1638 = vunpack.c.l.b16 %v1470
      %v1639 = vunpack.c.l.b16 %v1480
      %v1640 = vunpack.c.l.b16 %v1494
      %v1641 = vunpack.c.l.b16 %v1504
      %v1642 = vunpack.c.l.b16 %v1518
      %v1643 = vunpack.c.l.b16 %v1528
      %v1644 = vunpack.c.l.b16 %v1542
      %v1645 = vunpack.c.l.b16 %v1552
      %v1646 = vunpack.c.l.b16 %v1566
      %v1647 = vunpack.c.l.b16 %v1576
      %v1648 = vunpack.c.l.b16 %v1590
      %v1649 = vunpack.c.l.b16 %v1600
      %v1650 = vpack.c.b16 %v1619, %v1618
      %v1651 = vpack.c.b16 %v1621, %v1620
      %v1652 = vpack.c.b16 %v1623, %v1622
      %v1653 = vpack.c.b16 %v1625, %v1624
      %v1654 = vpack.c.b16 %v1627, %v1626
      %v1655 = vpack.c.b16 %v1629, %v1628
      %v1656 = vpack.c.b16 %v1631, %v1630
      %v1657 = vpack.c.b16 %v1633, %v1632
      %v1658 = vpack.c.b16 %v1635, %v1634
      %v1659 = vpack.c.b16 %v1637, %v1636
      %v1660 = vpack.c.b16 %v1639, %v1638
      %v1661 = vpack.c.b16 %v1641, %v1640
      %v1662 = vpack.c.b16 %v1643, %v1642
      %v1663 = vpack.c.b16 %v1645, %v1644
      %v1664 = vpack.c.b16 %v1647, %v1646
      %v1665 = vpack.c.b16 %v1649, %v1648
      %v1698 = vunpack.c.l.b16 %v1602
      %v1699 = vunpack.c.l.b16 %v1603
      %v1700 = vunpack.c.l.b16 %v1604
      %v1701 = vunpack.c.l.b16 %v1605
      %v1702 = vunpack.c.l.b16 %v1606
      %v1703 = vunpack.c.l.b16 %v1607
      %v1704 = vunpack.c.l.b16 %v1608
      %v1705 = vunpack.c.l.b16 %v1609
      %v1706 = vunpack.c.l.b16 %v1610
      %v1707 = vunpack.c.l.b16 %v1611
      %v1708 = vunpack.c.l.b16 %v1612
      %v1709 = vunpack.c.l.b16 %v1613
      %v1710 = vunpack.c.l.b16 %v1614
      %v1711 = vunpack.c.l.b16 %v1615
      %v1712 = vunpack.c.l.b16 %v1616
      %v1713 = vunpack.c.l.b16 %v1617
      %v1714 = vpack.c.b16 %v1699, %v1698
      %v1715 = vpack.c.b16 %v1701, %v1700
      %v1716 = vpack.c.b16 %v1703, %v1702
      %v1717 = vpack.c.b16 %v1705, %v1704
      %v1718 = vpack.c.b16 %v1707, %v1706
      %v1719 = vpack.c.b16 %v1709, %v1708
      %v1720 = vpack.c.b16 %v1711, %v1710
      %v1721 = vpack.c.b16 %v1713, %v1712
      %1730 = vmatprep.subr.bf16.mxu0 0
      %1731 = vmatpush1.bf16.msra.mxu0 %v1714
      %1732 = vmatprep.subr.bf16.mxu0 0
      %1733 = vmatpush1.bf16.msra.mxu0 %v1715
      %1734 = vmatprep.subr.bf16.mxu0 0
      %1735 = vmatpush1.bf16.msra.mxu0 %v1716
      %1736 = vmatprep.subr.bf16.mxu0 0
      %1737 = vmatpush1.bf16.msra.mxu0 %v1717
      %1738 = vmatprep.subr.bf16.mxu0 0
      %1739 = vmatpush1.bf16.msra.mxu0 %v1718
      %1740 = vmatprep.subr.bf16.mxu0 0
      %1741 = vmatpush1.bf16.msra.mxu0 %v1719
      %1742 = vmatprep.subr.bf16.mxu0 0
      %1743 = vmatpush1.bf16.msra.mxu0 %v1720
      %1744 = vmatprep.subr.bf16.mxu0 0
      %1745 = vmatpush1.bf16.msra.mxu0 %v1721
      %1746 = vmatprep.subr.bf16.mxu0 0
      %1747 = vmatpush1.bf16.msra.mxu0 0
      %1748 = vmatprep.subr.bf16.mxu0 0
      %1749 = vmatpush1.bf16.msra.mxu0 0
      %1750 = vmatprep.subr.bf16.mxu0 0
      %1751 = vmatpush1.bf16.msra.mxu0 0
      %1752 = vmatprep.subr.bf16.mxu0 0
      %1753 = vmatpush1.bf16.msra.mxu0 0
      %1754 = vmatprep.subr.bf16.mxu0 0
      %1755 = vmatpush1.bf16.msra.mxu0 0
      %1756 = vmatprep.subr.bf16.mxu0 0
      %1757 = vmatpush1.bf16.msra.mxu0 0
      %1758 = vmatprep.subr.bf16.mxu0 0
      %1759 = vmatpush1.bf16.msra.mxu0 0
      %1760 = vmatprep.subr.bf16.mxu0 0
      %1761 = vmatpush1.bf16.msra.mxu0 0
      %1762 = vmatprep.mubr.bf16.mxu0 0
      %1763 = vmatmul.mubr.bf16.gmra.mrb[0].mxu0 %v1650
      %v1764 = vpop.f32.mrb[0].mxu0
      %v1765 = vadd.f32 0.0, %v1764
      %v1766 = vpop.f32.mrb[0].mxu0
      %v1767 = vpop.f32.mrb[0].mxu0
      %v1768 = vadd.f32 0.0, %v1767
      %v1769 = vpop.f32.mrb[0].mxu0
      %1770 = vmatprep.mubr.bf16.mxu0 0
      %1771 = vmatmul.mubr.bf16.gmra.mrb[0].mxu0 %v1651
      %v1772 = vpop.f32.mrb[0].mxu0
      %v1773 = vadd.f32 0.0, %v1772
      %v1774 = vpop.f32.mrb[0].mxu0
      %v1775 = vpop.f32.mrb[0].mxu0
      %v1776 = vadd.f32 0.0, %v1775
      %v1777 = vpop.f32.mrb[0].mxu0
      %1778 = vmatprep.mubr.bf16.mxu0 0
      %1779 = vmatmul.mubr.bf16.gmra.mrb[0].mxu0 %v1652
      %v1780 = vpop.f32.mrb[0].mxu0
      %v1781 = vadd.f32 0.0, %v1780
      %v1782 = vpop.f32.mrb[0].mxu0
      %v1783 = vpop.f32.mrb[0].mxu0
      %v1784 = vadd.f32 0.0, %v1783
      %v1785 = vpop.f32.mrb[0].mxu0
      %1786 = vmatprep.mubr.bf16.mxu0 0
      %1787 = vmatmul.mubr.bf16.gmra.mrb[0].mxu0 %v1653
      %v1788 = vpop.f32.mrb[0].mxu0
      %v1789 = vadd.f32 0.0, %v1788
      %v1790 = vpop.f32.mrb[0].mxu0
      %v1791 = vpop.f32.mrb[0].mxu0
      %v1792 = vadd.f32 0.0, %v1791
      %v1793 = vpop.f32.mrb[0].mxu0
      %1794 = vmatprep.mubr.bf16.mxu0 0
      %1795 = vmatmul.mubr.bf16.gmra.mrb[0].mxu0 %v1654
      %v1796 = vpop.f32.mrb[0].mxu0
      %v1797 = vadd.f32 0.0, %v1796
      %v1798 = vpop.f32.mrb[0].mxu0
      %v1799 = vpop.f32.mrb[0].mxu0
      %v1800 = vadd.f32 0.0, %v1799
      %v1801 = vpop.f32.mrb[0].mxu0
      %1802 = vmatprep.mubr.bf16.mxu0 0
      %1803 = vmatmul.mubr.bf16.gmra.mrb[0].mxu0 %v1655
      %v1804 = vpop.f32.mrb[0].mxu0
      %v1805 = vadd.f32 0.0, %v1804
      %v1806 = vpop.f32.mrb[0].mxu0
      %v1807 = vpop.f32.mrb[0].mxu0
      %v1808 = vadd.f32 0.0, %v1807
      %v1809 = vpop.f32.mrb[0].mxu0
      %1810 = vmatprep.mubr.bf16.mxu0 0
      %1811 = vmatmul.mubr.bf16.gmra.mrb[0].mxu0 %v1656
      %v1812 = vpop.f32.mrb[0].mxu0
      %v1813 = vadd.f32 0.0, %v1812
      %v1814 = vpop.f32.mrb[0].mxu0
      %v1815 = vpop.f32.mrb[0].mxu0
      %v1816 = vadd.f32 0.0, %v1815
      %v1817 = vpop.f32.mrb[0].mxu0
      %1818 = vmatprep.mubr.bf16.mxu0 0
      %1819 = vmatmul.mubr.bf16.gmra.mrb[0].mxu0 %v1657
      %v1820 = vpop.f32.mrb[0].mxu0
      %v1821 = vadd.f32 0.0, %v1820
      %v1822 = vpop.f32.mrb[0].mxu0
      %v1823 = vpop.f32.mrb[0].mxu0
      %v1824 = vadd.f32 0.0, %v1823
      %v1825 = vpop.f32.mrb[0].mxu0
      %1826 = vmatprep.mubr.bf16.mxu0 0
      %1827 = vmatmul.mubr.bf16.gmra.mrb[0].mxu0 %v1658
      %v1828 = vpop.f32.mrb[0].mxu0
      %v1829 = vadd.f32 0.0, %v1828
      %v1830 = vpop.f32.mrb[0].mxu0
      %v1831 = vpop.f32.mrb[0].mxu0
      %v1832 = vadd.f32 0.0, %v1831
      %v1833 = vpop.f32.mrb[0].mxu0
      %1834 = vmatprep.mubr.bf16.mxu0 0
      %1835 = vmatmul.mubr.bf16.gmra.mrb[0].mxu0 %v1659
      %v1836 = vpop.f32.mrb[0].mxu0
      %v1837 = vadd.f32 0.0, %v1836
      %v1838 = vpop.f32.mrb[0].mxu0
      %v1839 = vpop.f32.mrb[0].mxu0
      %v1840 = vadd.f32 0.0, %v1839
      %v1841 = vpop.f32.mrb[0].mxu0
      %1842 = vmatprep.mubr.bf16.mxu0 0
      %1843 = vmatmul.mubr.bf16.gmra.mrb[0].mxu0 %v1660
      %v1844 = vpop.f32.mrb[0].mxu0
      %v1845 = vadd.f32 0.0, %v1844
      %v1846 = vpop.f32.mrb[0].mxu0
      %v1847 = vpop.f32.mrb[0].mxu0
      %v1848 = vadd.f32 0.0, %v1847
      %v1849 = vpop.f32.mrb[0].mxu0
      %1850 = vmatprep.mubr.bf16.mxu0 0
      %1851 = vmatmul.mubr.bf16.gmra.mrb[0].mxu0 %v1661
      %v1852 = vpop.f32.mrb[0].mxu0
      %v1853 = vadd.f32 0.0, %v1852
      %v1854 = vpop.f32.mrb[0].mxu0
      %v1855 = vpop.f32.mrb[0].mxu0
      %v1856 = vadd.f32 0.0, %v1855
      %v1857 = vpop.f32.mrb[0].mxu0
      %1858 = vmatprep.mubr.bf16.mxu0 0
      %1859 = vmatmul.mubr.bf16.gmra.mrb[0].mxu0 %v1662
      %v1860 = vpop.f32.mrb[0].mxu0
      %v1861 = vadd.f32 0.0, %v1860
      %v1862 = vpop.f32.mrb[0].mxu0
      %v1863 = vpop.f32.mrb[0].mxu0
      %v1864 = vadd.f32 0.0, %v1863
      %v1865 = vpop.f32.mrb[0].mxu0
      %1866 = vmatprep.mubr.bf16.mxu0 0
      %1867 = vmatmul.mubr.bf16.gmra.mrb[0].mxu0 %v1663
      %v1868 = vpop.f32.mrb[0].mxu0
      %v1869 = vadd.f32 0.0, %v1868
      %v1870 = vpop.f32.mrb[0].mxu0
      %v1871 = vpop.f32.mrb[0].mxu0
      %v1872 = vadd.f32 0.0, %v1871
      %v1873 = vpop.f32.mrb[0].mxu0
      %1874 = vmatprep.mubr.bf16.mxu0 0
      %1875 = vmatmul.mubr.bf16.gmra.mrb[0].mxu0 %v1664
      %v1876 = vpop.f32.mrb[0].mxu0
      %v1877 = vadd.f32 0.0, %v1876
      %v1878 = vpop.f32.mrb[0].mxu0
      %v1879 = vpop.f32.mrb[0].mxu0
      %v1880 = vadd.f32 0.0, %v1879
      %v1881 = vpop.f32.mrb[0].mxu0
      %1882 = vmatprep.mubr.bf16.mxu0 0
      %1883 = vmatmul.mubr.bf16.gmra.mrb[0].mxu0 %v1665
      %v1884 = vpop.f32.mrb[0].mxu0
      %v1885 = vadd.f32 0.0, %v1884
      %v1886 = vpop.f32.mrb[0].mxu0
      %v1887 = vpop.f32.mrb[0].mxu0
      %v1888 = vadd.f32 0.0, %v1887
      %v1889 = vpop.f32.mrb[0].mxu0
      %1890 = vdwg.mxu0
      %v1923 = vunpack.c.l.b16 %v1150
      %v1924 = vunpack.c.l.b16 %v1151
      %v1925 = vunpack.c.l.b16 %v1152
      %v1926 = vunpack.c.l.b16 %v1153
      %v1927 = vunpack.c.l.b16 %v1154
      %v1928 = vunpack.c.l.b16 %v1155
      %v1929 = vunpack.c.l.b16 %v1156
      %v1930 = vunpack.c.l.b16 %v1157
      %v1931 = vunpack.c.l.b16 %v1158
      %v1932 = vunpack.c.l.b16 %v1159
      %v1933 = vunpack.c.l.b16 %v1160
      %v1934 = vunpack.c.l.b16 %v1161
      %v1935 = vunpack.c.l.b16 %v1162
      %v1936 = vunpack.c.l.b16 %v1163
      %v1937 = vunpack.c.l.b16 %v1164
      %v1938 = vunpack.c.l.b16 %v1165
      %v1939 = vunpack.c.l.b16 %v1166
      %v1940 = vunpack.c.l.b16 %v1167
      %v1941 = vunpack.c.l.b16 %v1168
      %v1942 = vunpack.c.l.b16 %v1169
      %v1943 = vunpack.c.l.b16 %v1170
      %v1944 = vunpack.c.l.b16 %v1171
      %v1945 = vunpack.c.l.b16 %v1172
      %v1946 = vunpack.c.l.b16 %v1173
      %v1947 = vunpack.c.l.b16 %v1174
      %v1948 = vunpack.c.l.b16 %v1175
      %v1949 = vunpack.c.l.b16 %v1176
      %v1950 = vunpack.c.l.b16 %v1177
      %v1951 = vunpack.c.l.b16 %v1178
      %v1952 = vunpack.c.l.b16 %v1179
      %v1953 = vunpack.c.l.b16 %v1180
      %v1954 = vunpack.c.l.b16 %v1181
      %v1955 = vpack.c.b16 %v1924, %v1923
      %v1956 = vpack.c.b16 %v1926, %v1925
      %v1957 = vpack.c.b16 %v1928, %v1927
      %v1958 = vpack.c.b16 %v1930, %v1929
      %v1959 = vpack.c.b16 %v1932, %v1931
      %v1960 = vpack.c.b16 %v1934, %v1933
      %v1961 = vpack.c.b16 %v1936, %v1935
      %v1962 = vpack.c.b16 %v1938, %v1937
      %v1963 = vpack.c.b16 %v1940, %v1939
      %v1964 = vpack.c.b16 %v1942, %v1941
      %v1965 = vpack.c.b16 %v1944, %v1943
      %v1966 = vpack.c.b16 %v1946, %v1945
      %v1967 = vpack.c.b16 %v1948, %v1947
      %v1968 = vpack.c.b16 %v1950, %v1949
      %v1969 = vpack.c.b16 %v1952, %v1951
      %v1970 = vpack.c.b16 %v1954, %v1953
      %v2003 = vunpack.c.l.b16 %v1182
      %v2004 = vunpack.c.l.b16 %v1183
      %v2005 = vunpack.c.l.b16 %v1184
      %v2006 = vunpack.c.l.b16 %v1185
      %v2007 = vunpack.c.l.b16 %v1186
      %v2008 = vunpack.c.l.b16 %v1187
      %v2009 = vunpack.c.l.b16 %v1188
      %v2010 = vunpack.c.l.b16 %v1189
      %v2011 = vunpack.c.l.b16 %v1190
      %v2012 = vunpack.c.l.b16 %v1191
      %v2013 = vunpack.c.l.b16 %v1192
      %v2014 = vunpack.c.l.b16 %v1193
      %v2015 = vunpack.c.l.b16 %v1194
      %v2016 = vunpack.c.l.b16 %v1195
      %v2017 = vunpack.c.l.b16 %v1196
      %v2018 = vunpack.c.l.b16 %v1197
      %v2019 = vpack.c.b16 %v2004, %v2003
      %v2020 = vpack.c.b16 %v2006, %v2005
      %v2021 = vpack.c.b16 %v2008, %v2007
      %v2022 = vpack.c.b16 %v2010, %v2009
      %v2023 = vpack.c.b16 %v2012, %v2011
      %v2024 = vpack.c.b16 %v2014, %v2013
      %v2025 = vpack.c.b16 %v2016, %v2015
      %v2026 = vpack.c.b16 %v2018, %v2017
      %2035 = vmatprep.subr.bf16.mxu0 0
      %2036 = vmatpush1.bf16.msra.mxu0 %v2019
      %2037 = vmatprep.subr.bf16.mxu0 0
      %2038 = vmatpush1.bf16.msra.mxu0 %v2020
      %2039 = vmatprep.subr.bf16.mxu0 0
      %2040 = vmatpush1.bf16.msra.mxu0 %v2021
      %2041 = vmatprep.subr.bf16.mxu0 0
      %2042 = vmatpush1.bf16.msra.mxu0 %v2022
      %2043 = vmatprep.subr.bf16.mxu0 0
      %2044 = vmatpush1.bf16.msra.mxu0 %v2023
      %2045 = vmatprep.subr.bf16.mxu0 0
      %2046 = vmatpush1.bf16.msra.mxu0 %v2024
      %2047 = vmatprep.subr.bf16.mxu0 0
      %2048 = vmatpush1.bf16.msra.mxu0 %v2025
      %2049 = vmatprep.subr.bf16.mxu0 0
      %2050 = vmatpush1.bf16.msra.mxu0 %v2026
      %2051 = vmatprep.subr.bf16.mxu0 0
      %2052 = vmatpush1.bf16.msra.mxu0 0
      %2053 = vmatprep.subr.bf16.mxu0 0
      %2054 = vmatpush1.bf16.msra.mxu0 0
      %2055 = vmatprep.subr.bf16.mxu0 0
      %2056 = vmatpush1.bf16.msra.mxu0 0
      %2057 = vmatprep.subr.bf16.mxu0 0
      %2058 = vmatpush1.bf16.msra.mxu0 0
      %2059 = vmatprep.subr.bf16.mxu0 0
      %2060 = vmatpush1.bf16.msra.mxu0 0
      %2061 = vmatprep.subr.bf16.mxu0 0
      %2062 = vmatpush1.bf16.msra.mxu0 0
      %2063 = vmatprep.subr.bf16.mxu0 0
      %2064 = vmatpush1.bf16.msra.mxu0 0
      %2065 = vmatprep.subr.bf16.mxu0 0
      %2066 = vmatpush1.bf16.msra.mxu0 0
      %2067 = vmatprep.mubr.bf16.mxu0 0
      %2068 = vmatmul.mubr.bf16.gmra.mrb[0].mxu0 %v1955
      %v2069 = vpop.f32.mrb[0].mxu0
      %v2070 = vadd.f32 %v1765, %v2069
      %v2071 = vpop.f32.mrb[0].mxu0
      %v2072 = vpop.f32.mrb[0].mxu0
      %v2073 = vadd.f32 %v1768, %v2072
      %v2074 = vpop.f32.mrb[0].mxu0
      %2075 = vmatprep.mubr.bf16.mxu0 0
      %2076 = vmatmul.mubr.bf16.gmra.mrb[0].mxu0 %v1956
      %v2077 = vpop.f32.mrb[0].mxu0
      %v2078 = vadd.f32 %v1773, %v2077
      %v2079 = vpop.f32.mrb[0].mxu0
      %v2080 = vpop.f32.mrb[0].mxu0
      %v2081 = vadd.f32 %v1776, %v2080
      %v2082 = vpop.f32.mrb[0].mxu0
      %2083 = vmatprep.mubr.bf16.mxu0 0
      %2084 = vmatmul.mubr.bf16.gmra.mrb[0].mxu0 %v1957
      %v2085 = vpop.f32.mrb[0].mxu0
      %v2086 = vadd.f32 %v1781, %v2085
      %v2087 = vpop.f32.mrb[0].mxu0
      %v2088 = vpop.f32.mrb[0].mxu0
      %v2089 = vadd.f32 %v1784, %v2088
      %v2090 = vpop.f32.mrb[0].mxu0
      %2091 = vmatprep.mubr.bf16.mxu0 0
      %2092 = vmatmul.mubr.bf16.gmra.mrb[0].mxu0 %v1958
      %v2093 = vpop.f32.mrb[0].mxu0
      %v2094 = vadd.f32 %v1789, %v2093
      %v2095 = vpop.f32.mrb[0].mxu0
      %v2096 = vpop.f32.mrb[0].mxu0
      %v2097 = vadd.f32 %v1792, %v2096
      %v2098 = vpop.f32.mrb[0].mxu0
      %2099 = vmatprep.mubr.bf16.mxu0 0
      %2100 = vmatmul.mubr.bf16.gmra.mrb[0].mxu0 %v1959
      %v2101 = vpop.f32.mrb[0].mxu0
      %v2102 = vadd.f32 %v1797, %v2101
      %v2103 = vpop.f32.mrb[0].mxu0
      %v2104 = vpop.f32.mrb[0].mxu0
      %v2105 = vadd.f32 %v1800, %v2104
      %v2106 = vpop.f32.mrb[0].mxu0
      %2107 = vmatprep.mubr.bf16.mxu0 0
      %2108 = vmatmul.mubr.bf16.gmra.mrb[0].mxu0 %v1960
      %v2109 = vpop.f32.mrb[0].mxu0
      %v2110 = vadd.f32 %v1805, %v2109
      %v2111 = vpop.f32.mrb[0].mxu0
      %v2112 = vpop.f32.mrb[0].mxu0
      %v2113 = vadd.f32 %v1808, %v2112
      %v2114 = vpop.f32.mrb[0].mxu0
      %2115 = vmatprep.mubr.bf16.mxu0 0
      %2116 = vmatmul.mubr.bf16.gmra.mrb[0].mxu0 %v1961
      %v2117 = vpop.f32.mrb[0].mxu0
      %v2118 = vadd.f32 %v1813, %v2117
      %v2119 = vpop.f32.mrb[0].mxu0
      %v2120 = vpop.f32.mrb[0].mxu0
      %v2121 = vadd.f32 %v1816, %v2120
      %v2122 = vpop.f32.mrb[0].mxu0
      %2123 = vmatprep.mubr.bf16.mxu0 0
      %2124 = vmatmul.mubr.bf16.gmra.mrb[0].mxu0 %v1962
      %v2125 = vpop.f32.mrb[0].mxu0
      %v2126 = vadd.f32 %v1821, %v2125
      %v2127 = vpop.f32.mrb[0].mxu0
      %v2128 = vpop.f32.mrb[0].mxu0
      %v2129 = vadd.f32 %v1824, %v2128
      %v2130 = vpop.f32.mrb[0].mxu0
      %2131 = vmatprep.mubr.bf16.mxu0 0
      %2132 = vmatmul.mubr.bf16.gmra.mrb[0].mxu0 %v1963
      %v2133 = vpop.f32.mrb[0].mxu0
      %v2134 = vadd.f32 %v1829, %v2133
      %v2135 = vpop.f32.mrb[0].mxu0
      %v2136 = vpop.f32.mrb[0].mxu0
      %v2137 = vadd.f32 %v1832, %v2136
      %v2138 = vpop.f32.mrb[0].mxu0
      %2139 = vmatprep.mubr.bf16.mxu0 0
      %2140 = vmatmul.mubr.bf16.gmra.mrb[0].mxu0 %v1964
      %v2141 = vpop.f32.mrb[0].mxu0
      %v2142 = vadd.f32 %v1837, %v2141
      %v2143 = vpop.f32.mrb[0].mxu0
      %v2144 = vpop.f32.mrb[0].mxu0
      %v2145 = vadd.f32 %v1840, %v2144
      %v2146 = vpop.f32.mrb[0].mxu0
      %2147 = vmatprep.mubr.bf16.mxu0 0
      %2148 = vmatmul.mubr.bf16.gmra.mrb[0].mxu0 %v1965
      %v2149 = vpop.f32.mrb[0].mxu0
      %v2150 = vadd.f32 %v1845, %v2149
      %v2151 = vpop.f32.mrb[0].mxu0
      %v2152 = vpop.f32.mrb[0].mxu0
      %v2153 = vadd.f32 %v1848, %v2152
      %v2154 = vpop.f32.mrb[0].mxu0
      %2155 = vmatprep.mubr.bf16.mxu0 0
      %2156 = vmatmul.mubr.bf16.gmra.mrb[0].mxu0 %v1966
      %v2157 = vpop.f32.mrb[0].mxu0
      %v2158 = vadd.f32 %v1853, %v2157
      %v2159 = vpop.f32.mrb[0].mxu0
      %v2160 = vpop.f32.mrb[0].mxu0
      %v2161 = vadd.f32 %v1856, %v2160
      %v2162 = vpop.f32.mrb[0].mxu0
      %2163 = vmatprep.mubr.bf16.mxu0 0
      %2164 = vmatmul.mubr.bf16.gmra.mrb[0].mxu0 %v1967
      %v2165 = vpop.f32.mrb[0].mxu0
      %v2166 = vadd.f32 %v1861, %v2165
      %v2167 = vpop.f32.mrb[0].mxu0
      %v2168 = vpop.f32.mrb[0].mxu0
      %v2169 = vadd.f32 %v1864, %v2168
      %v2170 = vpop.f32.mrb[0].mxu0
      %2171 = vmatprep.mubr.bf16.mxu0 0
      %2172 = vmatmul.mubr.bf16.gmra.mrb[0].mxu0 %v1968
      %v2173 = vpop.f32.mrb[0].mxu0
      %v2174 = vadd.f32 %v1869, %v2173
      %v2175 = vpop.f32.mrb[0].mxu0
      %v2176 = vpop.f32.mrb[0].mxu0
      %v2177 = vadd.f32 %v1872, %v2176
      %v2178 = vpop.f32.mrb[0].mxu0
      %2179 = vmatprep.mubr.bf16.mxu0 0
      %2180 = vmatmul.mubr.bf16.gmra.mrb[0].mxu0 %v1969
      %v2181 = vpop.f32.mrb[0].mxu0
      %v2182 = vadd.f32 %v1877, %v2181
      %v2183 = vpop.f32.mrb[0].mxu0
      %v2184 = vpop.f32.mrb[0].mxu0
      %v2185 = vadd.f32 %v1880, %v2184
      %v2186 = vpop.f32.mrb[0].mxu0
      %2187 = vmatprep.mubr.bf16.mxu0 0
      %2188 = vmatmul.mubr.bf16.gmra.mrb[0].mxu0 %v1970
      %v2189 = vpop.f32.mrb[0].mxu0
      %v2190 = vadd.f32 %v1885, %v2189
      %v2191 = vpop.f32.mrb[0].mxu0
      %v2192 = vpop.f32.mrb[0].mxu0
      %v2193 = vadd.f32 %v1888, %v2192
      %v2194 = vpop.f32.mrb[0].mxu0
      %2195 = vdwg.mxu0
      %v2196 = vld [vmem:[#allocation2] sm:$0xe]
      %v2197 = vld [vmem:[#allocation2 + $0xc] sm:$0xe]
      %v2198 = vld [vmem:[#allocation2 + $0x18] sm:$0xe]
      %v2199 = vld [vmem:[#allocation2 + $0x24] sm:$0xe]
      %v2200 = vld [vmem:[#allocation2 + $0x30] sm:$0xe]
      %v2201 = vld [vmem:[#allocation2 + $0x3c] sm:$0xe]
      %v2202 = vld [vmem:[#allocation2 + $0x48] sm:$0xe]
      %v2203 = vld [vmem:[#allocation2 + $0x54] sm:$0xe]
      %v2204 = vld [vmem:[#allocation2 + $0x60] sm:$0xe]
      %v2205 = vld [vmem:[#allocation2 + $0x6c] sm:$0xe]
      %v2206 = vld [vmem:[#allocation2 + $0x78] sm:$0xe]
      %v2207 = vld [vmem:[#allocation2 + $0x84] sm:$0xe]
      %v2208 = vld [vmem:[#allocation2 + $0x90] sm:$0xe]
      %v2209 = vld [vmem:[#allocation2 + $0x9c] sm:$0xe]
      %v2210 = vld [vmem:[#allocation2 + $0xa8] sm:$0xe]
      %v2211 = vld [vmem:[#allocation2 + $0xb4] sm:$0xe]
      %vm2244 = vcmask 1042432
      %vm2245 = vcmask 1046532
      %vm2246 = vmor %vm2244, %vm2245
      %v2247 = vrot.slane %v2196, 5
      %v2248 = vrot.slane %v2247, 4
      %v2249 = vrot.slane %v1151, 5
      %v2250 = vsel %vm2246, %v2248, %v2249
      %v2251 = vrot.slane %v2249, 4
      %v2252 = vrot.slane %v1198, 5
      %v2253 = vsel %vm2246, %v2251, %v2252
      %v2254 = vrot.slane %v2197, 5
      %v2255 = vrot.slane %v2254, 4
      %v2256 = vrot.slane %v1153, 5
      %v2257 = vsel %vm2246, %v2255, %v2256
      %v2258 = vrot.slane %v2256, 4
      %v2259 = vrot.slane %v1199, 5
      %v2260 = vsel %vm2246, %v2258, %v2259
      %v2261 = vrot.slane %v2198, 5
      %v2262 = vrot.slane %v2261, 4
      %v2263 = vrot.slane %v1155, 5
      %v2264 = vsel %vm2246, %v2262, %v2263
      %v2265 = vrot.slane %v2263, 4
      %v2266 = vrot.slane %v1200, 5
      %v2267 = vsel %vm2246, %v2265, %v2266
      %v2268 = vrot.slane %v2199, 5
      %v2269 = vrot.slane %v2268, 4
      %v2270 = vrot.slane %v1157, 5
      %v2271 = vsel %vm2246, %v2269, %v2270
      %v2272 = vrot.slane %v2270, 4
      %v2273 = vrot.slane %v1201, 5
      %v2274 = vsel %vm2246, %v2272, %v2273
      %v2275 = vrot.slane %v2200, 5
      %v2276 = vrot.slane %v2275, 4
      %v2277 = vrot.slane %v1159, 5
      %v2278 = vsel %vm2246, %v2276, %v2277
      %v2279 = vrot.slane %v2277, 4
      %v2280 = vrot.slane %v1202, 5
      %v2281 = vsel %vm2246, %v2279, %v2280
      %v2282 = vrot.slane %v2201, 5
      %v2283 = vrot.slane %v2282, 4
      %v2284 = vrot.slane %v1161, 5
      %v2285 = vsel %vm2246, %v2283, %v2284
      %v2286 = vrot.slane %v2284, 4
      %v2287 = vrot.slane %v1203, 5
      %v2288 = vsel %vm2246, %v2286, %v2287
      %v2289 = vrot.slane %v2202, 5
      %v2290 = vrot.slane %v2289, 4
      %v2291 = vrot.slane %v1163, 5
      %v2292 = vsel %vm2246, %v2290, %v2291
      %v2293 = vrot.slane %v2291, 4
      %v2294 = vrot.slane %v1204, 5
      %v2295 = vsel %vm2246, %v2293, %v2294
      %v2296 = vrot.slane %v2203, 5
      %v2297 = vrot.slane %v2296, 4
      %v2298 = vrot.slane %v1165, 5
      %v2299 = vsel %vm2246, %v2297, %v2298
      %v2300 = vrot.slane %v2298, 4
      %v2301 = vrot.slane %v1205, 5
      %v2302 = vsel %vm2246, %v2300, %v2301
      %v2303 = vrot.slane %v2204, 5
      %v2304 = vrot.slane %v2303, 4
      %v2305 = vrot.slane %v1167, 5
      %v2306 = vsel %vm2246, %v2304, %v2305
      %v2307 = vrot.slane %v2305, 4
      %v2308 = vrot.slane %v1206, 5
      %v2309 = vsel %vm2246, %v2307, %v2308
      %v2310 = vrot.slane %v2205, 5
      %v2311 = vrot.slane %v2310, 4
      %v2312 = vrot.slane %v1169, 5
      %v2313 = vsel %vm2246, %v2311, %v2312
      %v2314 = vrot.slane %v2312, 4
      %v2315 = vrot.slane %v1207, 5
      %v2316 = vsel %vm2246, %v2314, %v2315
      %v2317 = vrot.slane %v2206, 5
      %v2318 = vrot.slane %v2317, 4
      %v2319 = vrot.slane %v1171, 5
      %v2320 = vsel %vm2246, %v2318, %v2319
      %v2321 = vrot.slane %v2319, 4
      %v2322 = vrot.slane %v1208, 5
      %v2323 = vsel %vm2246, %v2321, %v2322
      %v2324 = vrot.slane %v2207, 5
      %v2325 = vrot.slane %v2324, 4
      %v2326 = vrot.slane %v1173, 5
      %v2327 = vsel %vm2246, %v2325, %v2326
      %v2328 = vrot.slane %v2326, 4
      %v2329 = vrot.slane %v1209, 5
      %v2330 = vsel %vm2246, %v2328, %v2329
      %v2331 = vrot.slane %v2208, 5
      %v2332 = vrot.slane %v2331, 4
      %v2333 = vrot.slane %v1175, 5
      %v2334 = vsel %vm2246, %v2332, %v2333
      %v2335 = vrot.slane %v2333, 4
      %v2336 = vrot.slane %v1210, 5
      %v2337 = vsel %vm2246, %v2335, %v2336
      %v2338 = vrot.slane %v2209, 5
      %v2339 = vrot.slane %v2338, 4
      %v2340 = vrot.slane %v1177, 5
      %v2341 = vsel %vm2246, %v2339, %v2340
      %v2342 = vrot.slane %v2340, 4
      %v2343 = vrot.slane %v1211, 5
      %v2344 = vsel %vm2246, %v2342, %v2343
      %v2345 = vrot.slane %v2210, 5
      %v2346 = vrot.slane %v2345, 4
      %v2347 = vrot.slane %v1179, 5
      %v2348 = vsel %vm2246, %v2346, %v2347
      %v2349 = vrot.slane %v2347, 4
      %v2350 = vrot.slane %v1212, 5
      %v2351 = vsel %vm2246, %v2349, %v2350
      %v2352 = vrot.slane %v2211, 5
      %v2353 = vrot.slane %v2352, 4
      %v2354 = vrot.slane %v1181, 5
      %v2355 = vsel %vm2246, %v2353, %v2354
      %v2356 = vrot.slane %v2354, 4
      %v2357 = vrot.slane %v1213, 5
      %v2358 = vsel %vm2246, %v2356, %v2357
      %s2359 = scalar_lea.vmem %s2, 128
      %v2360 = vld [vmem:[%s2359] sm:$0xf]
      %v2361 = vld [vmem:[%s2359 + $0x4] sm:$0xf]
      %v2362 = vld [vmem:[%s2359 + $0x8] sm:$0xf]
      %v2363 = vld [vmem:[%s2359 + $0xc] sm:$0xf]
      %v2364 = vld [vmem:[%s2359 + $0x10] sm:$0xf]
      %v2365 = vld [vmem:[%s2359 + $0x14] sm:$0xf]
      %v2366 = vld [vmem:[%s2359 + $0x18] sm:$0xf]
      %v2367 = vld [vmem:[%s2359 + $0x1c] sm:$0xf]
      %v2368 = vld [vmem:[%s2359 + $0x20] sm:$0xf]
      %v2369 = vld [vmem:[%s2359 + $0x24] sm:$0xf]
      %v2370 = vld [vmem:[%s2359 + $0x28] sm:$0xf]
      %v2371 = vld [vmem:[%s2359 + $0x2c] sm:$0xf]
      %v2372 = vld [vmem:[%s2359 + $0x30] sm:$0xf]
      %v2373 = vld [vmem:[%s2359 + $0x34] sm:$0xf]
      %v2374 = vld [vmem:[%s2359 + $0x38] sm:$0xf]
      %v2375 = vld [vmem:[%s2359 + $0x3c] sm:$0xf]
      %v2376 = vunpack.c.l.b16 %v2250
      %v2377 = vunpack.c.l.b16 %v2253
      %v2378 = vunpack.c.l.b16 %v2257
      %v2379 = vunpack.c.l.b16 %v2260
      %v2380 = vunpack.c.l.b16 %v2264
      %v2381 = vunpack.c.l.b16 %v2267
      %v2382 = vunpack.c.l.b16 %v2271
      %v2383 = vunpack.c.l.b16 %v2274
      %v2384 = vunpack.c.l.b16 %v2278
      %v2385 = vunpack.c.l.b16 %v2281
      %v2386 = vunpack.c.l.b16 %v2285
      %v2387 = vunpack.c.l.b16 %v2288
      %v2388 = vunpack.c.l.b16 %v2292
      %v2389 = vunpack.c.l.b16 %v2295
      %v2390 = vunpack.c.l.b16 %v2299
      %v2391 = vunpack.c.l.b16 %v2302
      %v2392 = vunpack.c.l.b16 %v2306
      %v2393 = vunpack.c.l.b16 %v2309
      %v2394 = vunpack.c.l.b16 %v2313
      %v2395 = vunpack.c.l.b16 %v2316
      %v2396 = vunpack.c.l.b16 %v2320
      %v2397 = vunpack.c.l.b16 %v2323
      %v2398 = vunpack.c.l.b16 %v2327
      %v2399 = vunpack.c.l.b16 %v2330
      %v2400 = vunpack.c.l.b16 %v2334
      %v2401 = vunpack.c.l.b16 %v2337
      %v2402 = vunpack.c.l.b16 %v2341
      %v2403 = vunpack.c.l.b16 %v2344
      %v2404 = vunpack.c.l.b16 %v2348
      %v2405 = vunpack.c.l.b16 %v2351
      %v2406 = vunpack.c.l.b16 %v2355
      %v2407 = vunpack.c.l.b16 %v2358
      %v2408 = vpack.c.b16 %v2377, %v2376
      %v2409 = vpack.c.b16 %v2379, %v2378
      %v2410 = vpack.c.b16 %v2381, %v2380
      %v2411 = vpack.c.b16 %v2383, %v2382
      %v2412 = vpack.c.b16 %v2385, %v2384
      %v2413 = vpack.c.b16 %v2387, %v2386
      %v2414 = vpack.c.b16 %v2389, %v2388
      %v2415 = vpack.c.b16 %v2391, %v2390
      %v2416 = vpack.c.b16 %v2393, %v2392
      %v2417 = vpack.c.b16 %v2395, %v2394
      %v2418 = vpack.c.b16 %v2397, %v2396
      %v2419 = vpack.c.b16 %v2399, %v2398
      %v2420 = vpack.c.b16 %v2401, %v2400
      %v2421 = vpack.c.b16 %v2403, %v2402
      %v2422 = vpack.c.b16 %v2405, %v2404
      %v2423 = vpack.c.b16 %v2407, %v2406
      %v2456 = vunpack.c.l.b16 %v2360
      %v2457 = vunpack.c.l.b16 %v2361
      %v2458 = vunpack.c.l.b16 %v2362
      %v2459 = vunpack.c.l.b16 %v2363
      %v2460 = vunpack.c.l.b16 %v2364
      %v2461 = vunpack.c.l.b16 %v2365
      %v2462 = vunpack.c.l.b16 %v2366
      %v2463 = vunpack.c.l.b16 %v2367
      %v2464 = vunpack.c.l.b16 %v2368
      %v2465 = vunpack.c.l.b16 %v2369
      %v2466 = vunpack.c.l.b16 %v2370
      %v2467 = vunpack.c.l.b16 %v2371
      %v2468 = vunpack.c.l.b16 %v2372
      %v2469 = vunpack.c.l.b16 %v2373
      %v2470 = vunpack.c.l.b16 %v2374
      %v2471 = vunpack.c.l.b16 %v2375
      %v2472 = vpack.c.b16 %v2457, %v2456
      %v2473 = vpack.c.b16 %v2459, %v2458
      %v2474 = vpack.c.b16 %v2461, %v2460
      %v2475 = vpack.c.b16 %v2463, %v2462
      %v2476 = vpack.c.b16 %v2465, %v2464
      %v2477 = vpack.c.b16 %v2467, %v2466
      %v2478 = vpack.c.b16 %v2469, %v2468
      %v2479 = vpack.c.b16 %v2471, %v2470
      %2488 = vmatprep.subr.bf16.mxu0 0
      %2489 = vmatpush1.bf16.msra.mxu0 %v2472
      %2490 = vmatprep.subr.bf16.mxu0 0
      %2491 = vmatpush1.bf16.msra.mxu0 %v2473
      %2492 = vmatprep.subr.bf16.mxu0 0
      %2493 = vmatpush1.bf16.msra.mxu0 %v2474
      %2494 = vmatprep.subr.bf16.mxu0 0
      %2495 = vmatpush1.bf16.msra.mxu0 %v2475
      %2496 = vmatprep.subr.bf16.mxu0 0
      %2497 = vmatpush1.bf16.msra.mxu0 %v2476
      %2498 = vmatprep.subr.bf16.mxu0 0
      %2499 = vmatpush1.bf16.msra.mxu0 %v2477
      %2500 = vmatprep.subr.bf16.mxu0 0
      %2501 = vmatpush1.bf16.msra.mxu0 %v2478
      %2502 = vmatprep.subr.bf16.mxu0 0
      %2503 = vmatpush1.bf16.msra.mxu0 %v2479
      %2504 = vmatprep.subr.bf16.mxu0 0
      %2505 = vmatpush1.bf16.msra.mxu0 0
      %2506 = vmatprep.subr.bf16.mxu0 0
      %2507 = vmatpush1.bf16.msra.mxu0 0
      %2508 = vmatprep.subr.bf16.mxu0 0
      %2509 = vmatpush1.bf16.msra.mxu0 0
      %2510 = vmatprep.subr.bf16.mxu0 0
      %2511 = vmatpush1.bf16.msra.mxu0 0
      %2512 = vmatprep.subr.bf16.mxu0 0
      %2513 = vmatpush1.bf16.msra.mxu0 0
      %2514 = vmatprep.subr.bf16.mxu0 0
      %2515 = vmatpush1.bf16.msra.mxu0 0
      %2516 = vmatprep.subr.bf16.mxu0 0
      %2517 = vmatpush1.bf16.msra.mxu0 0
      %2518 = vmatprep.subr.bf16.mxu0 0
      %2519 = vmatpush1.bf16.msra.mxu0 0
      %2520 = vmatprep.mubr.bf16.mxu0 0
      %2521 = vmatmul.mubr.bf16.gmra.mrb[0].mxu0 %v2408
      %v2522 = vpop.f32.mrb[0].mxu0
      %v2523 = vadd.f32 0.0, %v2522
      %v2524 = vpop.f32.mrb[0].mxu0
      %v2525 = vpop.f32.mrb[0].mxu0
      %v2526 = vadd.f32 0.0, %v2525
      %v2527 = vpop.f32.mrb[0].mxu0
      %2528 = vmatprep.mubr.bf16.mxu0 0
      %2529 = vmatmul.mubr.bf16.gmra.mrb[0].mxu0 %v2409
      %v2530 = vpop.f32.mrb[0].mxu0
      %v2531 = vadd.f32 0.0, %v2530
      %v2532 = vpop.f32.mrb[0].mxu0
      %v2533 = vpop.f32.mrb[0].mxu0
      %v2534 = vadd.f32 0.0, %v2533
      %v2535 = vpop.f32.mrb[0].mxu0
      %2536 = vmatprep.mubr.bf16.mxu0 0
      %2537 = vmatmul.mubr.bf16.gmra.mrb[0].mxu0 %v2410
      %v2538 = vpop.f32.mrb[0].mxu0
      %v2539 = vadd.f32 0.0, %v2538
      %v2540 = vpop.f32.mrb[0].mxu0
      %v2541 = vpop.f32.mrb[0].mxu0
      %v2542 = vadd.f32 0.0, %v2541
      %v2543 = vpop.f32.mrb[0].mxu0
      %2544 = vmatprep.mubr.bf16.mxu0 0
      %2545 = vmatmul.mubr.bf16.gmra.mrb[0].mxu0 %v2411
      %v2546 = vpop.f32.mrb[0].mxu0
      %v2547 = vadd.f32 0.0, %v2546
      %v2548 = vpop.f32.mrb[0].mxu0
      %v2549 = vpop.f32.mrb[0].mxu0
      %v2550 = vadd.f32 0.0, %v2549
      %v2551 = vpop.f32.mrb[0].mxu0
      %2552 = vmatprep.mubr.bf16.mxu0 0
      %2553 = vmatmul.mubr.bf16.gmra.mrb[0].mxu0 %v2412
      %v2554 = vpop.f32.mrb[0].mxu0
      %v2555 = vadd.f32 0.0, %v2554
      %v2556 = vpop.f32.mrb[0].mxu0
      %v2557 = vpop.f32.mrb[0].mxu0
      %v2558 = vadd.f32 0.0, %v2557
      %v2559 = vpop.f32.mrb[0].mxu0
      %2560 = vmatprep.mubr.bf16.mxu0 0
      %2561 = vmatmul.mubr.bf16.gmra.mrb[0].mxu0 %v2413
      %v2562 = vpop.f32.mrb[0].mxu0
      %v2563 = vadd.f32 0.0, %v2562
      %v2564 = vpop.f32.mrb[0].mxu0
      %v2565 = vpop.f32.mrb[0].mxu0
      %v2566 = vadd.f32 0.0, %v2565
      %v2567 = vpop.f32.mrb[0].mxu0
      %2568 = vmatprep.mubr.bf16.mxu0 0
      %2569 = vmatmul.mubr.bf16.gmra.mrb[0].mxu0 %v2414
      %v2570 = vpop.f32.mrb[0].mxu0
      %v2571 = vadd.f32 0.0, %v2570
      %v2572 = vpop.f32.mrb[0].mxu0
      %v2573 = vpop.f32.mrb[0].mxu0
      %v2574 = vadd.f32 0.0, %v2573
      %v2575 = vpop.f32.mrb[0].mxu0
      %2576 = vmatprep.mubr.bf16.mxu0 0
      %2577 = vmatmul.mubr.bf16.gmra.mrb[0].mxu0 %v2415
      %v2578 = vpop.f32.mrb[0].mxu0
      %v2579 = vadd.f32 0.0, %v2578
      %v2580 = vpop.f32.mrb[0].mxu0
      %v2581 = vpop.f32.mrb[0].mxu0
      %v2582 = vadd.f32 0.0, %v2581
      %v2583 = vpop.f32.mrb[0].mxu0
      %2584 = vmatprep.mubr.bf16.mxu0 0
      %2585 = vmatmul.mubr.bf16.gmra.mrb[0].mxu0 %v2416
      %v2586 = vpop.f32.mrb[0].mxu0
      %v2587 = vadd.f32 0.0, %v2586
      %v2588 = vpop.f32.mrb[0].mxu0
      %v2589 = vpop.f32.mrb[0].mxu0
      %v2590 = vadd.f32 0.0, %v2589
      %v2591 = vpop.f32.mrb[0].mxu0
      %2592 = vmatprep.mubr.bf16.mxu0 0
      %2593 = vmatmul.mubr.bf16.gmra.mrb[0].mxu0 %v2417
      %v2594 = vpop.f32.mrb[0].mxu0
      %v2595 = vadd.f32 0.0, %v2594
      %v2596 = vpop.f32.mrb[0].mxu0
      %v2597 = vpop.f32.mrb[0].mxu0
      %v2598 = vadd.f32 0.0, %v2597
      %v2599 = vpop.f32.mrb[0].mxu0
      %2600 = vmatprep.mubr.bf16.mxu0 0
      %2601 = vmatmul.mubr.bf16.gmra.mrb[0].mxu0 %v2418
      %v2602 = vpop.f32.mrb[0].mxu0
      %v2603 = vadd.f32 0.0, %v2602
      %v2604 = vpop.f32.mrb[0].mxu0
      %v2605 = vpop.f32.mrb[0].mxu0
      %v2606 = vadd.f32 0.0, %v2605
      %v2607 = vpop.f32.mrb[0].mxu0
      %2608 = vmatprep.mubr.bf16.mxu0 0
      %2609 = vmatmul.mubr.bf16.gmra.mrb[0].mxu0 %v2419
      %v2610 = vpop.f32.mrb[0].mxu0
      %v2611 = vadd.f32 0.0, %v2610
      %v2612 = vpop.f32.mrb[0].mxu0
      %v2613 = vpop.f32.mrb[0].mxu0
      %v2614 = vadd.f32 0.0, %v2613
      %v2615 = vpop.f32.mrb[0].mxu0
      %2616 = vmatprep.mubr.bf16.mxu0 0
      %2617 = vmatmul.mubr.bf16.gmra.mrb[0].mxu0 %v2420
      %v2618 = vpop.f32.mrb[0].mxu0
      %v2619 = vadd.f32 0.0, %v2618
      %v2620 = vpop.f32.mrb[0].mxu0
      %v2621 = vpop.f32.mrb[0].mxu0
      %v2622 = vadd.f32 0.0, %v2621
      %v2623 = vpop.f32.mrb[0].mxu0
      %2624 = vmatprep.mubr.bf16.mxu0 0
      %2625 = vmatmul.mubr.bf16.gmra.mrb[0].mxu0 %v2421
      %v2626 = vpop.f32.mrb[0].mxu0
      %v2627 = vadd.f32 0.0, %v2626
      %v2628 = vpop.f32.mrb[0].mxu0
      %v2629 = vpop.f32.mrb[0].mxu0
      %v2630 = vadd.f32 0.0, %v2629
      %v2631 = vpop.f32.mrb[0].mxu0
      %2632 = vmatprep.mubr.bf16.mxu0 0
      %2633 = vmatmul.mubr.bf16.gmra.mrb[0].mxu0 %v2422
      %v2634 = vpop.f32.mrb[0].mxu0
      %v2635 = vadd.f32 0.0, %v2634
      %v2636 = vpop.f32.mrb[0].mxu0
      %v2637 = vpop.f32.mrb[0].mxu0
      %v2638 = vadd.f32 0.0, %v2637
      %v2639 = vpop.f32.mrb[0].mxu0
      %2640 = vmatprep.mubr.bf16.mxu0 0
      %2641 = vmatmul.mubr.bf16.gmra.mrb[0].mxu0 %v2423
      %v2642 = vpop.f32.mrb[0].mxu0
      %v2643 = vadd.f32 0.0, %v2642
      %v2644 = vpop.f32.mrb[0].mxu0
      %v2645 = vpop.f32.mrb[0].mxu0
      %v2646 = vadd.f32 0.0, %v2645
      %v2647 = vpop.f32.mrb[0].mxu0
      %2648 = vdwg.mxu0
      %v2649 = vadd.f32 %v2070, %v2523
      %v2650 = vadd.f32 %v2073, %v2526
      %v2651 = vadd.f32 %v2078, %v2531
      %v2652 = vadd.f32 %v2081, %v2534
      %v2653 = vadd.f32 %v2086, %v2539
      %v2654 = vadd.f32 %v2089, %v2542
      %v2655 = vadd.f32 %v2094, %v2547
      %v2656 = vadd.f32 %v2097, %v2550
      %v2657 = vadd.f32 %v2102, %v2555
      %v2658 = vadd.f32 %v2105, %v2558
      %v2659 = vadd.f32 %v2110, %v2563
      %v2660 = vadd.f32 %v2113, %v2566
      %v2661 = vadd.f32 %v2118, %v2571
      %v2662 = vadd.f32 %v2121, %v2574
      %v2663 = vadd.f32 %v2126, %v2579
      %v2664 = vadd.f32 %v2129, %v2582
      %v2665 = vadd.f32 %v2134, %v2587
      %v2666 = vadd.f32 %v2137, %v2590
      %v2667 = vadd.f32 %v2142, %v2595
      %v2668 = vadd.f32 %v2145, %v2598
      %v2669 = vadd.f32 %v2150, %v2603
      %v2670 = vadd.f32 %v2153, %v2606
      %v2671 = vadd.f32 %v2158, %v2611
      %v2672 = vadd.f32 %v2161, %v2614
      %v2673 = vadd.f32 %v2166, %v2619
      %v2674 = vadd.f32 %v2169, %v2622
      %v2675 = vadd.f32 %v2174, %v2627
      %v2676 = vadd.f32 %v2177, %v2630
      %v2677 = vadd.f32 %v2182, %v2635
      %v2678 = vadd.f32 %v2185, %v2638
      %v2679 = vadd.f32 %v2190, %v2643
      %v2680 = vadd.f32 %v2193, %v2646
      %s2681 = scalar_lea.vmem [#allocation2], 12
      %v2682 = vld [vmem:[%s2681] sm:$0xf]
      %v2683 = vld [vmem:[%s2681 + $0x4] sm:$0xf]
      %v2684 = vld [vmem:[%s2681 + $0xc] sm:$0xf]
      %v2685 = vld [vmem:[%s2681 + $0x10] sm:$0xf]
      %v2686 = vld [vmem:[%s2681 + $0x18] sm:$0xf]
      %v2687 = vld [vmem:[%s2681 + $0x1c] sm:$0xf]
      %v2688 = vld [vmem:[%s2681 + $0x24] sm:$0xf]
      %v2689 = vld [vmem:[%s2681 + $0x28] sm:$0xf]
      %v2690 = vld [vmem:[%s2681 + $0x30] sm:$0xf]
      %v2691 = vld [vmem:[%s2681 + $0x34] sm:$0xf]
      %v2692 = vld [vmem:[%s2681 + $0x3c] sm:$0xf]
      %v2693 = vld [vmem:[%s2681 + $0x40] sm:$0xf]
      %v2694 = vld [vmem:[%s2681 + $0x48] sm:$0xf]
      %v2695 = vld [vmem:[%s2681 + $0x4c] sm:$0xf]
      %v2696 = vld [vmem:[%s2681 + $0x54] sm:$0xf]
      %v2697 = vld [vmem:[%s2681 + $0x58] sm:$0xf]
      %v2698 = vld [vmem:[%s2681 + $0x60] sm:$0xf]
      %v2699 = vld [vmem:[%s2681 + $0x64] sm:$0xf]
      %v2700 = vld [vmem:[%s2681 + $0x6c] sm:$0xf]
      %v2701 = vld [vmem:[%s2681 + $0x70] sm:$0xf]
      %v2702 = vld [vmem:[%s2681 + $0x78] sm:$0xf]
      %v2703 = vld [vmem:[%s2681 + $0x7c] sm:$0xf]
      %v2704 = vld [vmem:[%s2681 + $0x84] sm:$0xf]
      %v2705 = vld [vmem:[%s2681 + $0x88] sm:$0xf]
      %v2706 = vld [vmem:[%s2681 + $0x90] sm:$0xf]
      %v2707 = vld [vmem:[%s2681 + $0x94] sm:$0xf]
      %v2708 = vld [vmem:[%s2681 + $0x9c] sm:$0xf]
      %v2709 = vld [vmem:[%s2681 + $0xa0] sm:$0xf]
      %v2710 = vld [vmem:[%s2681 + $0xa8] sm:$0xf]
      %v2711 = vld [vmem:[%s2681 + $0xac] sm:$0xf]
      %v2712 = vld [vmem:[%s2681 + $0xb4] sm:$0xf]
      %v2713 = vld [vmem:[%s2681 + $0xb8] sm:$0xf]
      %s2714 = scalar_lea.vmem %s2, 192
      %v2715 = vld [vmem:[%s2714] sm:$0xf]
      %v2716 = vld [vmem:[%s2714 + $0x4] sm:$0xf]
      %v2717 = vld [vmem:[%s2714 + $0x8] sm:$0xf]
      %v2718 = vld [vmem:[%s2714 + $0xc] sm:$0xf]
      %v2719 = vld [vmem:[%s2714 + $0x10] sm:$0xf]
      %v2720 = vld [vmem:[%s2714 + $0x14] sm:$0xf]
      %v2721 = vld [vmem:[%s2714 + $0x18] sm:$0xf]
      %v2722 = vld [vmem:[%s2714 + $0x1c] sm:$0xf]
      %v2723 = vld [vmem:[%s2714 + $0x20] sm:$0xf]
      %v2724 = vld [vmem:[%s2714 + $0x24] sm:$0xf]
      %v2725 = vld [vmem:[%s2714 + $0x28] sm:$0xf]
      %v2726 = vld [vmem:[%s2714 + $0x2c] sm:$0xf]
      %v2727 = vld [vmem:[%s2714 + $0x30] sm:$0xf]
      %v2728 = vld [vmem:[%s2714 + $0x34] sm:$0xf]
      %v2729 = vld [vmem:[%s2714 + $0x38] sm:$0xf]
      %v2730 = vld [vmem:[%s2714 + $0x3c] sm:$0xf]
      %v2763 = vunpack.c.l.b16 %v2682
      %v2764 = vunpack.c.l.b16 %v2683
      %v2765 = vunpack.c.l.b16 %v2684
      %v2766 = vunpack.c.l.b16 %v2685
      %v2767 = vunpack.c.l.b16 %v2686
      %v2768 = vunpack.c.l.b16 %v2687
      %v2769 = vunpack.c.l.b16 %v2688
      %v2770 = vunpack.c.l.b16 %v2689
      %v2771 = vunpack.c.l.b16 %v2690
      %v2772 = vunpack.c.l.b16 %v2691
      %v2773 = vunpack.c.l.b16 %v2692
      %v2774 = vunpack.c.l.b16 %v2693
      %v2775 = vunpack.c.l.b16 %v2694
      %v2776 = vunpack.c.l.b16 %v2695
      %v2777 = vunpack.c.l.b16 %v2696
      %v2778 = vunpack.c.l.b16 %v2697
      %v2779 = vunpack.c.l.b16 %v2698
      %v2780 = vunpack.c.l.b16 %v2699
      %v2781 = vunpack.c.l.b16 %v2700
      %v2782 = vunpack.c.l.b16 %v2701
      %v2783 = vunpack.c.l.b16 %v2702
      %v2784 = vunpack.c.l.b16 %v2703
      %v2785 = vunpack.c.l.b16 %v2704
      %v2786 = vunpack.c.l.b16 %v2705
      %v2787 = vunpack.c.l.b16 %v2706
      %v2788 = vunpack.c.l.b16 %v2707
      %v2789 = vunpack.c.l.b16 %v2708
      %v2790 = vunpack.c.l.b16 %v2709
      %v2791 = vunpack.c.l.b16 %v2710
      %v2792 = vunpack.c.l.b16 %v2711
      %v2793 = vunpack.c.l.b16 %v2712
      %v2794 = vunpack.c.l.b16 %v2713
      %v2795 = vpack.c.b16 %v2764, %v2763
      %v2796 = vpack.c.b16 %v2766, %v2765
      %v2797 = vpack.c.b16 %v2768, %v2767
      %v2798 = vpack.c.b16 %v2770, %v2769
      %v2799 = vpack.c.b16 %v2772, %v2771
      %v2800 = vpack.c.b16 %v2774, %v2773
      %v2801 = vpack.c.b16 %v2776, %v2775
      %v2802 = vpack.c.b16 %v2778, %v2777
      %v2803 = vpack.c.b16 %v2780, %v2779
      %v2804 = vpack.c.b16 %v2782, %v2781
      %v2805 = vpack.c.b16 %v2784, %v2783
      %v2806 = vpack.c.b16 %v2786, %v2785
      %v2807 = vpack.c.b16 %v2788, %v2787
      %v2808 = vpack.c.b16 %v2790, %v2789
      %v2809 = vpack.c.b16 %v2792, %v2791
      %v2810 = vpack.c.b16 %v2794, %v2793
      %v2843 = vunpack.c.l.b16 %v2715
      %v2844 = vunpack.c.l.b16 %v2716
      %v2845 = vunpack.c.l.b16 %v2717
      %v2846 = vunpack.c.l.b16 %v2718
      %v2847 = vunpack.c.l.b16 %v2719
      %v2848 = vunpack.c.l.b16 %v2720
      %v2849 = vunpack.c.l.b16 %v2721
      %v2850 = vunpack.c.l.b16 %v2722
      %v2851 = vunpack.c.l.b16 %v2723
      %v2852 = vunpack.c.l.b16 %v2724
      %v2853 = vunpack.c.l.b16 %v2725
      %v2854 = vunpack.c.l.b16 %v2726
      %v2855 = vunpack.c.l.b16 %v2727
      %v2856 = vunpack.c.l.b16 %v2728
      %v2857 = vunpack.c.l.b16 %v2729
      %v2858 = vunpack.c.l.b16 %v2730
      %v2859 = vpack.c.b16 %v2844, %v2843
      %v2860 = vpack.c.b16 %v2846, %v2845
      %v2861 = vpack.c.b16 %v2848, %v2847
      %v2862 = vpack.c.b16 %v2850, %v2849
      %v2863 = vpack.c.b16 %v2852, %v2851
      %v2864 = vpack.c.b16 %v2854, %v2853
      %v2865 = vpack.c.b16 %v2856, %v2855
      %v2866 = vpack.c.b16 %v2858, %v2857
      %2875 = vmatprep.subr.bf16.mxu0 0
      %2876 = vmatpush1.bf16.msra.mxu0 %v2859
      %2877 = vmatprep.subr.bf16.mxu0 0
      %2878 = vmatpush1.bf16.msra.mxu0 %v2860
      %2879 = vmatprep.subr.bf16.mxu0 0
      %2880 = vmatpush1.bf16.msra.mxu0 %v2861
      %2881 = vmatprep.subr.bf16.mxu0 0
      %2882 = vmatpush1.bf16.msra.mxu0 %v2862
      %2883 = vmatprep.subr.bf16.mxu0 0
      %2884 = vmatpush1.bf16.msra.mxu0 %v2863
      %2885 = vmatprep.subr.bf16.mxu0 0
      %2886 = vmatpush1.bf16.msra.mxu0 %v2864
      %2887 = vmatprep.subr.bf16.mxu0 0
      %2888 = vmatpush1.bf16.msra.mxu0 %v2865
      %2889 = vmatprep.subr.bf16.mxu0 0
      %2890 = vmatpush1.bf16.msra.mxu0 %v2866
      %2891 = vmatprep.subr.bf16.mxu0 0
      %2892 = vmatpush1.bf16.msra.mxu0 0
      %2893 = vmatprep.subr.bf16.mxu0 0
      %2894 = vmatpush1.bf16.msra.mxu0 0
      %2895 = vmatprep.subr.bf16.mxu0 0
      %2896 = vmatpush1.bf16.msra.mxu0 0
      %2897 = vmatprep.subr.bf16.mxu0 0
      %2898 = vmatpush1.bf16.msra.mxu0 0
      %2899 = vmatprep.subr.bf16.mxu0 0
      %2900 = vmatpush1.bf16.msra.mxu0 0
      %2901 = vmatprep.subr.bf16.mxu0 0
      %2902 = vmatpush1.bf16.msra.mxu0 0
      %2903 = vmatprep.subr.bf16.mxu0 0
      %2904 = vmatpush1.bf16.msra.mxu0 0
      %2905 = vmatprep.subr.bf16.mxu0 0
      %2906 = vmatpush1.bf16.msra.mxu0 0
      %2907 = vmatprep.mubr.bf16.mxu0 0
      %2908 = vmatmul.mubr.bf16.gmra.mrb[0].mxu0 %v2795
      %v2909 = vpop.f32.mrb[0].mxu0
      %v2910 = vadd.f32 0.0, %v2909
      %v2911 = vpop.f32.mrb[0].mxu0
      %v2912 = vpop.f32.mrb[0].mxu0
      %v2913 = vadd.f32 0.0, %v2912
      %v2914 = vpop.f32.mrb[0].mxu0
      %2915 = vmatprep.mubr.bf16.mxu0 0
      %2916 = vmatmul.mubr.bf16.gmra.mrb[0].mxu0 %v2796
      %v2917 = vpop.f32.mrb[0].mxu0
      %v2918 = vadd.f32 0.0, %v2917
      %v2919 = vpop.f32.mrb[0].mxu0
      %v2920 = vpop.f32.mrb[0].mxu0
      %v2921 = vadd.f32 0.0, %v2920
      %v2922 = vpop.f32.mrb[0].mxu0
      %2923 = vmatprep.mubr.bf16.mxu0 0
      %2924 = vmatmul.mubr.bf16.gmra.mrb[0].mxu0 %v2797
      %v2925 = vpop.f32.mrb[0].mxu0
      %v2926 = vadd.f32 0.0, %v2925
      %v2927 = vpop.f32.mrb[0].mxu0
      %v2928 = vpop.f32.mrb[0].mxu0
      %v2929 = vadd.f32 0.0, %v2928
      %v2930 = vpop.f32.mrb[0].mxu0
      %2931 = vmatprep.mubr.bf16.mxu0 0
      %2932 = vmatmul.mubr.bf16.gmra.mrb[0].mxu0 %v2798
      %v2933 = vpop.f32.mrb[0].mxu0
      %v2934 = vadd.f32 0.0, %v2933
      %v2935 = vpop.f32.mrb[0].mxu0
      %v2936 = vpop.f32.mrb[0].mxu0
      %v2937 = vadd.f32 0.0, %v2936
      %v2938 = vpop.f32.mrb[0].mxu0
      %2939 = vmatprep.mubr.bf16.mxu0 0
      %2940 = vmatmul.mubr.bf16.gmra.mrb[0].mxu0 %v2799
      %v2941 = vpop.f32.mrb[0].mxu0
      %v2942 = vadd.f32 0.0, %v2941
      %v2943 = vpop.f32.mrb[0].mxu0
      %v2944 = vpop.f32.mrb[0].mxu0
      %v2945 = vadd.f32 0.0, %v2944
      %v2946 = vpop.f32.mrb[0].mxu0
      %2947 = vmatprep.mubr.bf16.mxu0 0
      %2948 = vmatmul.mubr.bf16.gmra.mrb[0].mxu0 %v2800
      %v2949 = vpop.f32.mrb[0].mxu0
      %v2950 = vadd.f32 0.0, %v2949
      %v2951 = vpop.f32.mrb[0].mxu0
      %v2952 = vpop.f32.mrb[0].mxu0
      %v2953 = vadd.f32 0.0, %v2952
      %v2954 = vpop.f32.mrb[0].mxu0
      %2955 = vmatprep.mubr.bf16.mxu0 0
      %2956 = vmatmul.mubr.bf16.gmra.mrb[0].mxu0 %v2801
      %v2957 = vpop.f32.mrb[0].mxu0
      %v2958 = vadd.f32 0.0, %v2957
      %v2959 = vpop.f32.mrb[0].mxu0
      %v2960 = vpop.f32.mrb[0].mxu0
      %v2961 = vadd.f32 0.0, %v2960
      %v2962 = vpop.f32.mrb[0].mxu0
      %2963 = vmatprep.mubr.bf16.mxu0 0
      %2964 = vmatmul.mubr.bf16.gmra.mrb[0].mxu0 %v2802
      %v2965 = vpop.f32.mrb[0].mxu0
      %v2966 = vadd.f32 0.0, %v2965
      %v2967 = vpop.f32.mrb[0].mxu0
      %v2968 = vpop.f32.mrb[0].mxu0
      %v2969 = vadd.f32 0.0, %v2968
      %v2970 = vpop.f32.mrb[0].mxu0
      %2971 = vmatprep.mubr.bf16.mxu0 0
      %2972 = vmatmul.mubr.bf16.gmra.mrb[0].mxu0 %v2803
      %v2973 = vpop.f32.mrb[0].mxu0
      %v2974 = vadd.f32 0.0, %v2973
      %v2975 = vpop.f32.mrb[0].mxu0
      %v2976 = vpop.f32.mrb[0].mxu0
      %v2977 = vadd.f32 0.0, %v2976
      %v2978 = vpop.f32.mrb[0].mxu0
      %2979 = vmatprep.mubr.bf16.mxu0 0
      %2980 = vmatmul.mubr.bf16.gmra.mrb[0].mxu0 %v2804
      %v2981 = vpop.f32.mrb[0].mxu0
      %v2982 = vadd.f32 0.0, %v2981
      %v2983 = vpop.f32.mrb[0].mxu0
      %v2984 = vpop.f32.mrb[0].mxu0
      %v2985 = vadd.f32 0.0, %v2984
      %v2986 = vpop.f32.mrb[0].mxu0
      %2987 = vmatprep.mubr.bf16.mxu0 0
      %2988 = vmatmul.mubr.bf16.gmra.mrb[0].mxu0 %v2805
      %v2989 = vpop.f32.mrb[0].mxu0
      %v2990 = vadd.f32 0.0, %v2989
      %v2991 = vpop.f32.mrb[0].mxu0
      %v2992 = vpop.f32.mrb[0].mxu0
      %v2993 = vadd.f32 0.0, %v2992
      %v2994 = vpop.f32.mrb[0].mxu0
      %2995 = vmatprep.mubr.bf16.mxu0 0
      %2996 = vmatmul.mubr.bf16.gmra.mrb[0].mxu0 %v2806
      %v2997 = vpop.f32.mrb[0].mxu0
      %v2998 = vadd.f32 0.0, %v2997
      %v2999 = vpop.f32.mrb[0].mxu0
      %v3000 = vpop.f32.mrb[0].mxu0
      %v3001 = vadd.f32 0.0, %v3000
      %v3002 = vpop.f32.mrb[0].mxu0
      %3003 = vmatprep.mubr.bf16.mxu0 0
      %3004 = vmatmul.mubr.bf16.gmra.mrb[0].mxu0 %v2807
      %v3005 = vpop.f32.mrb[0].mxu0
      %v3006 = vadd.f32 0.0, %v3005
      %v3007 = vpop.f32.mrb[0].mxu0
      %v3008 = vpop.f32.mrb[0].mxu0
      %v3009 = vadd.f32 0.0, %v3008
      %v3010 = vpop.f32.mrb[0].mxu0
      %3011 = vmatprep.mubr.bf16.mxu0 0
      %3012 = vmatmul.mubr.bf16.gmra.mrb[0].mxu0 %v2808
      %v3013 = vpop.f32.mrb[0].mxu0
      %v3014 = vadd.f32 0.0, %v3013
      %v3015 = vpop.f32.mrb[0].mxu0
      %v3016 = vpop.f32.mrb[0].mxu0
      %v3017 = vadd.f32 0.0, %v3016
      %v3018 = vpop.f32.mrb[0].mxu0
      %3019 = vmatprep.mubr.bf16.mxu0 0
      %3020 = vmatmul.mubr.bf16.gmra.mrb[0].mxu0 %v2809
      %v3021 = vpop.f32.mrb[0].mxu0
      %v3022 = vadd.f32 0.0, %v3021
      %v3023 = vpop.f32.mrb[0].mxu0
      %v3024 = vpop.f32.mrb[0].mxu0
      %v3025 = vadd.f32 0.0, %v3024
      %v3026 = vpop.f32.mrb[0].mxu0
      %3027 = vmatprep.mubr.bf16.mxu0 0
      %3028 = vmatmul.mubr.bf16.gmra.mrb[0].mxu0 %v2810
      %v3029 = vpop.f32.mrb[0].mxu0
      %v3030 = vadd.f32 0.0, %v3029
      %v3031 = vpop.f32.mrb[0].mxu0
      %v3032 = vpop.f32.mrb[0].mxu0
      %v3033 = vadd.f32 0.0, %v3032
      %v3034 = vpop.f32.mrb[0].mxu0
      %3035 = vdwg.mxu0
      %v3036 = vadd.f32 %v2649, %v2910
      %v3037 = vadd.f32 %v2650, %v2913
      %v3038 = vadd.f32 %v2651, %v2918
      %v3039 = vadd.f32 %v2652, %v2921
      %v3040 = vadd.f32 %v2653, %v2926
      %v3041 = vadd.f32 %v2654, %v2929
      %v3042 = vadd.f32 %v2655, %v2934
      %v3043 = vadd.f32 %v2656, %v2937
      %v3044 = vadd.f32 %v2657, %v2942
      %v3045 = vadd.f32 %v2658, %v2945
      %v3046 = vadd.f32 %v2659, %v2950
      %v3047 = vadd.f32 %v2660, %v2953
      %v3048 = vadd.f32 %v2661, %v2958
      %v3049 = vadd.f32 %v2662, %v2961
      %v3050 = vadd.f32 %v2663, %v2966
      %v3051 = vadd.f32 %v2664, %v2969
      %v3052 = vadd.f32 %v2665, %v2974
      %v3053 = vadd.f32 %v2666, %v2977
      %v3054 = vadd.f32 %v2667, %v2982
      %v3055 = vadd.f32 %v2668, %v2985
      %v3056 = vadd.f32 %v2669, %v2990
      %v3057 = vadd.f32 %v2670, %v2993
      %v3058 = vadd.f32 %v2671, %v2998
      %v3059 = vadd.f32 %v2672, %v3001
      %v3060 = vadd.f32 %v2673, %v3006
      %v3061 = vadd.f32 %v2674, %v3009
      %v3062 = vadd.f32 %v2675, %v3014
      %v3063 = vadd.f32 %v2676, %v3017
      %v3064 = vadd.f32 %v2677, %v3022
      %v3065 = vadd.f32 %v2678, %v3025
      %v3066 = vadd.f32 %v2679, %v3030
      %v3067 = vadd.f32 %v2680, %v3033
      %v3068 = vld [vmem:[%s2681] sm:$0xf]
      %v3069 = vld [vmem:[%s2681 + $0x4] sm:$0xf]
      %v3070 = vld [vmem:[%s2681 + $0x8] sm:$0x1]
      %v3071 = vld [vmem:[%s2681 + $0xc] sm:$0xf]
      %v3072 = vld [vmem:[%s2681 + $0x10] sm:$0xf]
      %v3073 = vld [vmem:[%s2681 + $0x14] sm:$0x1]
      %v3074 = vld [vmem:[%s2681 + $0x18] sm:$0xf]
      %v3075 = vld [vmem:[%s2681 + $0x1c] sm:$0xf]
      %v3076 = vld [vmem:[%s2681 + $0x20] sm:$0x1]
      %v3077 = vld [vmem:[%s2681 + $0x24] sm:$0xf]
      %v3078 = vld [vmem:[%s2681 + $0x28] sm:$0xf]
      %v3079 = vld [vmem:[%s2681 + $0x2c] sm:$0x1]
      %v3080 = vld [vmem:[%s2681 + $0x30] sm:$0xf]
      %v3081 = vld [vmem:[%s2681 + $0x34] sm:$0xf]
      %v3082 = vld [vmem:[%s2681 + $0x38] sm:$0x1]
      %v3083 = vld [vmem:[%s2681 + $0x3c] sm:$0xf]
      %v3084 = vld [vmem:[%s2681 + $0x40] sm:$0xf]
      %v3085 = vld [vmem:[%s2681 + $0x44] sm:$0x1]
      %v3086 = vld [vmem:[%s2681 + $0x48] sm:$0xf]
      %v3087 = vld [vmem:[%s2681 + $0x4c] sm:$0xf]
      %v3088 = vld [vmem:[%s2681 + $0x50] sm:$0x1]
      %v3089 = vld [vmem:[%s2681 + $0x54] sm:$0xf]
      %v3090 = vld [vmem:[%s2681 + $0x58] sm:$0xf]
      %v3091 = vld [vmem:[%s2681 + $0x5c] sm:$0x1]
      %v3092 = vld [vmem:[%s2681 + $0x60] sm:$0xf]
      %v3093 = vld [vmem:[%s2681 + $0x64] sm:$0xf]
      %v3094 = vld [vmem:[%s2681 + $0x68] sm:$0x1]
      %v3095 = vld [vmem:[%s2681 + $0x6c] sm:$0xf]
      %v3096 = vld [vmem:[%s2681 + $0x70] sm:$0xf]
      %v3097 = vld [vmem:[%s2681 + $0x74] sm:$0x1]
      %v3098 = vld [vmem:[%s2681 + $0x78] sm:$0xf]
      %v3099 = vld [vmem:[%s2681 + $0x7c] sm:$0xf]
      %v3100 = vld [vmem:[%s2681 + $0x80] sm:$0x1]
      %v3101 = vld [vmem:[%s2681 + $0x84] sm:$0xf]
      %v3102 = vld [vmem:[%s2681 + $0x88] sm:$0xf]
      %v3103 = vld [vmem:[%s2681 + $0x8c] sm:$0x1]
      %v3104 = vld [vmem:[%s2681 + $0x90] sm:$0xf]
      %v3105 = vld [vmem:[%s2681 + $0x94] sm:$0xf]
      %v3106 = vld [vmem:[%s2681 + $0x98] sm:$0x1]
      %v3107 = vld [vmem:[%s2681 + $0x9c] sm:$0xf]
      %v3108 = vld [vmem:[%s2681 + $0xa0] sm:$0xf]
      %v3109 = vld [vmem:[%s2681 + $0xa4] sm:$0x1]
      %v3110 = vld [vmem:[%s2681 + $0xa8] sm:$0xf]
      %v3111 = vld [vmem:[%s2681 + $0xac] sm:$0xf]
      %v3112 = vld [vmem:[%s2681 + $0xb0] sm:$0x1]
      %v3113 = vld [vmem:[%s2681 + $0xb4] sm:$0xf]
      %v3114 = vld [vmem:[%s2681 + $0xb8] sm:$0xf]
      %v3115 = vld [vmem:[%s2681 + $0xbc] sm:$0x1]
      %v3117 = vshrl.u32 %v3068, 16
      %v3119 = vrot.slane %v3117, 4
      %v3120 = vshll.u32 %v3068, 16
      %v3122 = vrot.slane %v3120, 5
      %v3123 = vor.u32 %v3119, %v3122
      %v3124 = vrot.slane %v3123, 4
      %v3126 = vshll.u32 %v3069, 16
      %v3128 = vrot.slane %v3126, 5
      %v3129 = vsel %vm1216, %v3124, %v3128
      %v3130 = vshrl.u32 %v3069, 16
      %v3132 = vrot.slane %v3130, 4
      %v3133 = vor.u32 %v3132, %v3128
      %v3134 = vrot.slane %v3133, 4
      %v3136 = vshll.u32 %v3070, 16
      %v3138 = vrot.slane %v3136, 5
      %v3139 = vsel %vm1216, %v3134, %v3138
      %v3141 = vshrl.u32 %v3071, 16
      %v3143 = vrot.slane %v3141, 4
      %v3144 = vshll.u32 %v3071, 16
      %v3146 = vrot.slane %v3144, 5
      %v3147 = vor.u32 %v3143, %v3146
      %v3148 = vrot.slane %v3147, 4
      %v3150 = vshll.u32 %v3072, 16
      %v3152 = vrot.slane %v3150, 5
      %v3153 = vsel %vm1216, %v3148, %v3152
      %v3154 = vshrl.u32 %v3072, 16
      %v3156 = vrot.slane %v3154, 4
      %v3157 = vor.u32 %v3156, %v3152
      %v3158 = vrot.slane %v3157, 4
      %v3160 = vshll.u32 %v3073, 16
      %v3162 = vrot.slane %v3160, 5
      %v3163 = vsel %vm1216, %v3158, %v3162
      %v3165 = vshrl.u32 %v3074, 16
      %v3167 = vrot.slane %v3165, 4
      %v3168 = vshll.u32 %v3074, 16
      %v3170 = vrot.slane %v3168, 5
      %v3171 = vor.u32 %v3167, %v3170
      %v3172 = vrot.slane %v3171, 4
      %v3174 = vshll.u32 %v3075, 16
      %v3176 = vrot.slane %v3174, 5
      %v3177 = vsel %vm1216, %v3172, %v3176
      %v3178 = vshrl.u32 %v3075, 16
      %v3180 = vrot.slane %v3178, 4
      %v3181 = vor.u32 %v3180, %v3176
      %v3182 = vrot.slane %v3181, 4
      %v3184 = vshll.u32 %v3076, 16
      %v3186 = vrot.slane %v3184, 5
      %v3187 = vsel %vm1216, %v3182, %v3186
      %v3189 = vshrl.u32 %v3077, 16
      %v3191 = vrot.slane %v3189, 4
      %v3192 = vshll.u32 %v3077, 16
      %v3194 = vrot.slane %v3192, 5
      %v3195 = vor.u32 %v3191, %v3194
      %v3196 = vrot.slane %v3195, 4
      %v3198 = vshll.u32 %v3078, 16
      %v3200 = vrot.slane %v3198, 5
      %v3201 = vsel %vm1216, %v3196, %v3200
      %v3202 = vshrl.u32 %v3078, 16
      %v3204 = vrot.slane %v3202, 4
      %v3205 = vor.u32 %v3204, %v3200
      %v3206 = vrot.slane %v3205, 4
      %v3208 = vshll.u32 %v3079, 16
      %v3210 = vrot.slane %v3208, 5
      %v3211 = vsel %vm1216, %v3206, %v3210
      %v3213 = vshrl.u32 %v3080, 16
      %v3215 = vrot.slane %v3213, 4
      %v3216 = vshll.u32 %v3080, 16
      %v3218 = vrot.slane %v3216, 5
      %v3219 = vor.u32 %v3215, %v3218
      %v3220 = vrot.slane %v3219, 4
      %v3222 = vshll.u32 %v3081, 16
      %v3224 = vrot.slane %v3222, 5
      %v3225 = vsel %vm1216, %v3220, %v3224
      %v3226 = vshrl.u32 %v3081, 16
      %v3228 = vrot.slane %v3226, 4
      %v3229 = vor.u32 %v3228, %v3224
      %v3230 = vrot.slane %v3229, 4
      %v3232 = vshll.u32 %v3082, 16
      %v3234 = vrot.slane %v3232, 5
      %v3235 = vsel %vm1216, %v3230, %v3234
      %v3237 = vshrl.u32 %v3083, 16
      %v3239 = vrot.slane %v3237, 4
      %v3240 = vshll.u32 %v3083, 16
      %v3242 = vrot.slane %v3240, 5
      %v3243 = vor.u32 %v3239, %v3242
      %v3244 = vrot.slane %v3243, 4
      %v3246 = vshll.u32 %v3084, 16
      %v3248 = vrot.slane %v3246, 5
      %v3249 = vsel %vm1216, %v3244, %v3248
      %v3250 = vshrl.u32 %v3084, 16
      %v3252 = vrot.slane %v3250, 4
      %v3253 = vor.u32 %v3252, %v3248
      %v3254 = vrot.slane %v3253, 4
      %v3256 = vshll.u32 %v3085, 16
      %v3258 = vrot.slane %v3256, 5
      %v3259 = vsel %vm1216, %v3254, %v3258
      %v3261 = vshrl.u32 %v3086, 16
      %v3263 = vrot.slane %v3261, 4
      %v3264 = vshll.u32 %v3086, 16
      %v3266 = vrot.slane %v3264, 5
      %v3267 = vor.u32 %v3263, %v3266
      %v3268 = vrot.slane %v3267, 4
      %v3270 = vshll.u32 %v3087, 16
      %v3272 = vrot.slane %v3270, 5
      %v3273 = vsel %vm1216, %v3268, %v3272
      %v3274 = vshrl.u32 %v3087, 16
      %v3276 = vrot.slane %v3274, 4
      %v3277 = vor.u32 %v3276, %v3272
      %v3278 = vrot.slane %v3277, 4
      %v3280 = vshll.u32 %v3088, 16
      %v3282 = vrot.slane %v3280, 5
      %v3283 = vsel %vm1216, %v3278, %v3282
      %v3285 = vshrl.u32 %v3089, 16
      %v3287 = vrot.slane %v3285, 4
      %v3288 = vshll.u32 %v3089, 16
      %v3290 = vrot.slane %v3288, 5
      %v3291 = vor.u32 %v3287, %v3290
      %v3292 = vrot.slane %v3291, 4
      %v3294 = vshll.u32 %v3090, 16
      %v3296 = vrot.slane %v3294, 5
      %v3297 = vsel %vm1216, %v3292, %v3296
      %v3298 = vshrl.u32 %v3090, 16
      %v3300 = vrot.slane %v3298, 4
      %v3301 = vor.u32 %v3300, %v3296
      %v3302 = vrot.slane %v3301, 4
      %v3304 = vshll.u32 %v3091, 16
      %v3306 = vrot.slane %v3304, 5
      %v3307 = vsel %vm1216, %v3302, %v3306
      %v3309 = vshrl.u32 %v3092, 16
      %v3311 = vrot.slane %v3309, 4
      %v3312 = vshll.u32 %v3092, 16
      %v3314 = vrot.slane %v3312, 5
      %v3315 = vor.u32 %v3311, %v3314
      %v3316 = vrot.slane %v3315, 4
      %v3318 = vshll.u32 %v3093, 16
      %v3320 = vrot.slane %v3318, 5
      %v3321 = vsel %vm1216, %v3316, %v3320
      %v3322 = vshrl.u32 %v3093, 16
      %v3324 = vrot.slane %v3322, 4
      %v3325 = vor.u32 %v3324, %v3320
      %v3326 = vrot.slane %v3325, 4
      %v3328 = vshll.u32 %v3094, 16
      %v3330 = vrot.slane %v3328, 5
      %v3331 = vsel %vm1216, %v3326, %v3330
      %v3333 = vshrl.u32 %v3095, 16
      %v3335 = vrot.slane %v3333, 4
      %v3336 = vshll.u32 %v3095, 16
      %v3338 = vrot.slane %v3336, 5
      %v3339 = vor.u32 %v3335, %v3338
      %v3340 = vrot.slane %v3339, 4
      %v3342 = vshll.u32 %v3096, 16
      %v3344 = vrot.slane %v3342, 5
      %v3345 = vsel %vm1216, %v3340, %v3344
      %v3346 = vshrl.u32 %v3096, 16
      %v3348 = vrot.slane %v3346, 4
      %v3349 = vor.u32 %v3348, %v3344
      %v3350 = vrot.slane %v3349, 4
      %v3352 = vshll.u32 %v3097, 16
      %v3354 = vrot.slane %v3352, 5
      %v3355 = vsel %vm1216, %v3350, %v3354
      %v3357 = vshrl.u32 %v3098, 16
      %v3359 = vrot.slane %v3357, 4
      %v3360 = vshll.u32 %v3098, 16
      %v3362 = vrot.slane %v3360, 5
      %v3363 = vor.u32 %v3359, %v3362
      %v3364 = vrot.slane %v3363, 4
      %v3366 = vshll.u32 %v3099, 16
      %v3368 = vrot.slane %v3366, 5
      %v3369 = vsel %vm1216, %v3364, %v3368
      %v3370 = vshrl.u32 %v3099, 16
      %v3372 = vrot.slane %v3370, 4
      %v3373 = vor.u32 %v3372, %v3368
      %v3374 = vrot.slane %v3373, 4
      %v3376 = vshll.u32 %v3100, 16
      %v3378 = vrot.slane %v3376, 5
      %v3379 = vsel %vm1216, %v3374, %v3378
      %v3381 = vshrl.u32 %v3101, 16
      %v3383 = vrot.slane %v3381, 4
      %v3384 = vshll.u32 %v3101, 16
      %v3386 = vrot.slane %v3384, 5
      %v3387 = vor.u32 %v3383, %v3386
      %v3388 = vrot.slane %v3387, 4
      %v3390 = vshll.u32 %v3102, 16
      %v3392 = vrot.slane %v3390, 5
      %v3393 = vsel %vm1216, %v3388, %v3392
      %v3394 = vshrl.u32 %v3102, 16
      %v3396 = vrot.slane %v3394, 4
      %v3397 = vor.u32 %v3396, %v3392
      %v3398 = vrot.slane %v3397, 4
      %v3400 = vshll.u32 %v3103, 16
      %v3402 = vrot.slane %v3400, 5
      %v3403 = vsel %vm1216, %v3398, %v3402
      %v3405 = vshrl.u32 %v3104, 16
      %v3407 = vrot.slane %v3405, 4
      %v3408 = vshll.u32 %v3104, 16
      %v3410 = vrot.slane %v3408, 5
      %v3411 = vor.u32 %v3407, %v3410
      %v3412 = vrot.slane %v3411, 4
      %v3414 = vshll.u32 %v3105, 16
      %v3416 = vrot.slane %v3414, 5
      %v3417 = vsel %vm1216, %v3412, %v3416
      %v3418 = vshrl.u32 %v3105, 16
      %v3420 = vrot.slane %v3418, 4
      %v3421 = vor.u32 %v3420, %v3416
      %v3422 = vrot.slane %v3421, 4
      %v3424 = vshll.u32 %v3106, 16
      %v3426 = vrot.slane %v3424, 5
      %v3427 = vsel %vm1216, %v3422, %v3426
      %v3429 = vshrl.u32 %v3107, 16
      %v3431 = vrot.slane %v3429, 4
      %v3432 = vshll.u32 %v3107, 16
      %v3434 = vrot.slane %v3432, 5
      %v3435 = vor.u32 %v3431, %v3434
      %v3436 = vrot.slane %v3435, 4
      %v3438 = vshll.u32 %v3108, 16
      %v3440 = vrot.slane %v3438, 5
      %v3441 = vsel %vm1216, %v3436, %v3440
      %v3442 = vshrl.u32 %v3108, 16
      %v3444 = vrot.slane %v3442, 4
      %v3445 = vor.u32 %v3444, %v3440
      %v3446 = vrot.slane %v3445, 4
      %v3448 = vshll.u32 %v3109, 16
      %v3450 = vrot.slane %v3448, 5
      %v3451 = vsel %vm1216, %v3446, %v3450
      %v3453 = vshrl.u32 %v3110, 16
      %v3455 = vrot.slane %v3453, 4
      %v3456 = vshll.u32 %v3110, 16
      %v3458 = vrot.slane %v3456, 5
      %v3459 = vor.u32 %v3455, %v3458
      %v3460 = vrot.slane %v3459, 4
      %v3462 = vshll.u32 %v3111, 16
      %v3464 = vrot.slane %v3462, 5
      %v3465 = vsel %vm1216, %v3460, %v3464
      %v3466 = vshrl.u32 %v3111, 16
      %v3468 = vrot.slane %v3466, 4
      %v3469 = vor.u32 %v3468, %v3464
      %v3470 = vrot.slane %v3469, 4
      %v3472 = vshll.u32 %v3112, 16
      %v3474 = vrot.slane %v3472, 5
      %v3475 = vsel %vm1216, %v3470, %v3474
      %v3477 = vshrl.u32 %v3113, 16
      %v3479 = vrot.slane %v3477, 4
      %v3480 = vshll.u32 %v3113, 16
      %v3482 = vrot.slane %v3480, 5
      %v3483 = vor.u32 %v3479, %v3482
      %v3484 = vrot.slane %v3483, 4
      %v3486 = vshll.u32 %v3114, 16
      %v3488 = vrot.slane %v3486, 5
      %v3489 = vsel %vm1216, %v3484, %v3488
      %v3490 = vshrl.u32 %v3114, 16
      %v3492 = vrot.slane %v3490, 4
      %v3493 = vor.u32 %v3492, %v3488
      %v3494 = vrot.slane %v3493, 4
      %v3496 = vshll.u32 %v3115, 16
      %v3498 = vrot.slane %v3496, 5
      %v3499 = vsel %vm1216, %v3494, %v3498
      %s3500 = scalar_lea.vmem %s2, 256
      %v3501 = vld [vmem:[%s3500] sm:$0xf]
      %v3502 = vld [vmem:[%s3500 + $0x4] sm:$0xf]
      %v3503 = vld [vmem:[%s3500 + $0x8] sm:$0xf]
      %v3504 = vld [vmem:[%s3500 + $0xc] sm:$0xf]
      %v3505 = vld [vmem:[%s3500 + $0x10] sm:$0xf]
      %v3506 = vld [vmem:[%s3500 + $0x14] sm:$0xf]
      %v3507 = vld [vmem:[%s3500 + $0x18] sm:$0xf]
      %v3508 = vld [vmem:[%s3500 + $0x1c] sm:$0xf]
      %v3509 = vld [vmem:[%s3500 + $0x20] sm:$0xf]
      %v3510 = vld [vmem:[%s3500 + $0x24] sm:$0xf]
      %v3511 = vld [vmem:[%s3500 + $0x28] sm:$0xf]
      %v3512 = vld [vmem:[%s3500 + $0x2c] sm:$0xf]
      %v3513 = vld [vmem:[%s3500 + $0x30] sm:$0xf]
      %v3514 = vld [vmem:[%s3500 + $0x34] sm:$0xf]
      %v3515 = vld [vmem:[%s3500 + $0x38] sm:$0xf]
      %v3516 = vld [vmem:[%s3500 + $0x3c] sm:$0xf]
      %v3517 = vunpack.c.l.b16 %v3129
      %v3518 = vunpack.c.l.b16 %v3139
      %v3519 = vunpack.c.l.b16 %v3153
      %v3520 = vunpack.c.l.b16 %v3163
      %v3521 = vunpack.c.l.b16 %v3177
      %v3522 = vunpack.c.l.b16 %v3187
      %v3523 = vunpack.c.l.b16 %v3201
      %v3524 = vunpack.c.l.b16 %v3211
      %v3525 = vunpack.c.l.b16 %v3225
      %v3526 = vunpack.c.l.b16 %v3235
      %v3527 = vunpack.c.l.b16 %v3249
      %v3528 = vunpack.c.l.b16 %v3259
      %v3529 = vunpack.c.l.b16 %v3273
      %v3530 = vunpack.c.l.b16 %v3283
      %v3531 = vunpack.c.l.b16 %v3297
      %v3532 = vunpack.c.l.b16 %v3307
      %v3533 = vunpack.c.l.b16 %v3321
      %v3534 = vunpack.c.l.b16 %v3331
      %v3535 = vunpack.c.l.b16 %v3345
      %v3536 = vunpack.c.l.b16 %v3355
      %v3537 = vunpack.c.l.b16 %v3369
      %v3538 = vunpack.c.l.b16 %v3379
      %v3539 = vunpack.c.l.b16 %v3393
      %v3540 = vunpack.c.l.b16 %v3403
      %v3541 = vunpack.c.l.b16 %v3417
      %v3542 = vunpack.c.l.b16 %v3427
      %v3543 = vunpack.c.l.b16 %v3441
      %v3544 = vunpack.c.l.b16 %v3451
      %v3545 = vunpack.c.l.b16 %v3465
      %v3546 = vunpack.c.l.b16 %v3475
      %v3547 = vunpack.c.l.b16 %v3489
      %v3548 = vunpack.c.l.b16 %v3499
      %v3549 = vpack.c.b16 %v3518, %v3517
      %v3550 = vpack.c.b16 %v3520, %v3519
      %v3551 = vpack.c.b16 %v3522, %v3521
      %v3552 = vpack.c.b16 %v3524, %v3523
      %v3553 = vpack.c.b16 %v3526, %v3525
      %v3554 = vpack.c.b16 %v3528, %v3527
      %v3555 = vpack.c.b16 %v3530, %v3529
      %v3556 = vpack.c.b16 %v3532, %v3531
      %v3557 = vpack.c.b16 %v3534, %v3533
      %v3558 = vpack.c.b16 %v3536, %v3535
      %v3559 = vpack.c.b16 %v3538, %v3537
      %v3560 = vpack.c.b16 %v3540, %v3539
      %v3561 = vpack.c.b16 %v3542, %v3541
      %v3562 = vpack.c.b16 %v3544, %v3543
      %v3563 = vpack.c.b16 %v3546, %v3545
      %v3564 = vpack.c.b16 %v3548, %v3547
      %v3597 = vunpack.c.l.b16 %v3501
      %v3598 = vunpack.c.l.b16 %v3502
      %v3599 = vunpack.c.l.b16 %v3503
      %v3600 = vunpack.c.l.b16 %v3504
      %v3601 = vunpack.c.l.b16 %v3505
      %v3602 = vunpack.c.l.b16 %v3506
      %v3603 = vunpack.c.l.b16 %v3507
      %v3604 = vunpack.c.l.b16 %v3508
      %v3605 = vunpack.c.l.b16 %v3509
      %v3606 = vunpack.c.l.b16 %v3510
      %v3607 = vunpack.c.l.b16 %v3511
      %v3608 = vunpack.c.l.b16 %v3512
      %v3609 = vunpack.c.l.b16 %v3513
      %v3610 = vunpack.c.l.b16 %v3514
      %v3611 = vunpack.c.l.b16 %v3515
      %v3612 = vunpack.c.l.b16 %v3516
      %v3613 = vpack.c.b16 %v3598, %v3597
      %v3614 = vpack.c.b16 %v3600, %v3599
      %v3615 = vpack.c.b16 %v3602, %v3601
      %v3616 = vpack.c.b16 %v3604, %v3603
      %v3617 = vpack.c.b16 %v3606, %v3605
      %v3618 = vpack.c.b16 %v3608, %v3607
      %v3619 = vpack.c.b16 %v3610, %v3609
      %v3620 = vpack.c.b16 %v3612, %v3611
      %3629 = vmatprep.subr.bf16.mxu0 0
      %3630 = vmatpush1.bf16.msra.mxu0 %v3613
      %3631 = vmatprep.subr.bf16.mxu0 0
      %3632 = vmatpush1.bf16.msra.mxu0 %v3614
      %3633 = vmatprep.subr.bf16.mxu0 0
      %3634 = vmatpush1.bf16.msra.mxu0 %v3615
      %3635 = vmatprep.subr.bf16.mxu0 0
      %3636 = vmatpush1.bf16.msra.mxu0 %v3616
      %3637 = vmatprep.subr.bf16.mxu0 0
      %3638 = vmatpush1.bf16.msra.mxu0 %v3617
      %3639 = vmatprep.subr.bf16.mxu0 0
      %3640 = vmatpush1.bf16.msra.mxu0 %v3618
      %3641 = vmatprep.subr.bf16.mxu0 0
      %3642 = vmatpush1.bf16.msra.mxu0 %v3619
      %3643 = vmatprep.subr.bf16.mxu0 0
      %3644 = vmatpush1.bf16.msra.mxu0 %v3620
      %3645 = vmatprep.subr.bf16.mxu0 0
      %3646 = vmatpush1.bf16.msra.mxu0 0
      %3647 = vmatprep.subr.bf16.mxu0 0
      %3648 = vmatpush1.bf16.msra.mxu0 0
      %3649 = vmatprep.subr.bf16.mxu0 0
      %3650 = vmatpush1.bf16.msra.mxu0 0
      %3651 = vmatprep.subr.bf16.mxu0 0
      %3652 = vmatpush1.bf16.msra.mxu0 0
      %3653 = vmatprep.subr.bf16.mxu0 0
      %3654 = vmatpush1.bf16.msra.mxu0 0
      %3655 = vmatprep.subr.bf16.mxu0 0
      %3656 = vmatpush1.bf16.msra.mxu0 0
      %3657 = vmatprep.subr.bf16.mxu0 0
      %3658 = vmatpush1.bf16.msra.mxu0 0
      %3659 = vmatprep.subr.bf16.mxu0 0
      %3660 = vmatpush1.bf16.msra.mxu0 0
      %3661 = vmatprep.mubr.bf16.mxu0 0
      %3662 = vmatmul.mubr.bf16.gmra.mrb[0].mxu0 %v3549
      %v3663 = vpop.f32.mrb[0].mxu0
      %v3664 = vadd.f32 0.0, %v3663
      %v3665 = vpop.f32.mrb[0].mxu0
      %v3666 = vpop.f32.mrb[0].mxu0
      %v3667 = vadd.f32 0.0, %v3666
      %v3668 = vpop.f32.mrb[0].mxu0
      %3669 = vmatprep.mubr.bf16.mxu0 0
      %3670 = vmatmul.mubr.bf16.gmra.mrb[0].mxu0 %v3550
      %v3671 = vpop.f32.mrb[0].mxu0
      %v3672 = vadd.f32 0.0, %v3671
      %v3673 = vpop.f32.mrb[0].mxu0
      %v3674 = vpop.f32.mrb[0].mxu0
      %v3675 = vadd.f32 0.0, %v3674
      %v3676 = vpop.f32.mrb[0].mxu0
      %3677 = vmatprep.mubr.bf16.mxu0 0
      %3678 = vmatmul.mubr.bf16.gmra.mrb[0].mxu0 %v3551
      %v3679 = vpop.f32.mrb[0].mxu0
      %v3680 = vadd.f32 0.0, %v3679
      %v3681 = vpop.f32.mrb[0].mxu0
      %v3682 = vpop.f32.mrb[0].mxu0
      %v3683 = vadd.f32 0.0, %v3682
      %v3684 = vpop.f32.mrb[0].mxu0
      %3685 = vmatprep.mubr.bf16.mxu0 0
      %3686 = vmatmul.mubr.bf16.gmra.mrb[0].mxu0 %v3552
      %v3687 = vpop.f32.mrb[0].mxu0
      %v3688 = vadd.f32 0.0, %v3687
      %v3689 = vpop.f32.mrb[0].mxu0
      %v3690 = vpop.f32.mrb[0].mxu0
      %v3691 = vadd.f32 0.0, %v3690
      %v3692 = vpop.f32.mrb[0].mxu0
      %3693 = vmatprep.mubr.bf16.mxu0 0
      %3694 = vmatmul.mubr.bf16.gmra.mrb[0].mxu0 %v3553
      %v3695 = vpop.f32.mrb[0].mxu0
      %v3696 = vadd.f32 0.0, %v3695
      %v3697 = vpop.f32.mrb[0].mxu0
      %v3698 = vpop.f32.mrb[0].mxu0
      %v3699 = vadd.f32 0.0, %v3698
      %v3700 = vpop.f32.mrb[0].mxu0
      %3701 = vmatprep.mubr.bf16.mxu0 0
      %3702 = vmatmul.mubr.bf16.gmra.mrb[0].mxu0 %v3554
      %v3703 = vpop.f32.mrb[0].mxu0
      %v3704 = vadd.f32 0.0, %v3703
      %v3705 = vpop.f32.mrb[0].mxu0
      %v3706 = vpop.f32.mrb[0].mxu0
      %v3707 = vadd.f32 0.0, %v3706
      %v3708 = vpop.f32.mrb[0].mxu0
      %3709 = vmatprep.mubr.bf16.mxu0 0
      %3710 = vmatmul.mubr.bf16.gmra.mrb[0].mxu0 %v3555
      %v3711 = vpop.f32.mrb[0].mxu0
      %v3712 = vadd.f32 0.0, %v3711
      %v3713 = vpop.f32.mrb[0].mxu0
      %v3714 = vpop.f32.mrb[0].mxu0
      %v3715 = vadd.f32 0.0, %v3714
      %v3716 = vpop.f32.mrb[0].mxu0
      %3717 = vmatprep.mubr.bf16.mxu0 0
      %3718 = vmatmul.mubr.bf16.gmra.mrb[0].mxu0 %v3556
      %v3719 = vpop.f32.mrb[0].mxu0
      %v3720 = vadd.f32 0.0, %v3719
      %v3721 = vpop.f32.mrb[0].mxu0
      %v3722 = vpop.f32.mrb[0].mxu0
      %v3723 = vadd.f32 0.0, %v3722
      %v3724 = vpop.f32.mrb[0].mxu0
      %3725 = vmatprep.mubr.bf16.mxu0 0
      %3726 = vmatmul.mubr.bf16.gmra.mrb[0].mxu0 %v3557
      %v3727 = vpop.f32.mrb[0].mxu0
      %v3728 = vadd.f32 0.0, %v3727
      %v3729 = vpop.f32.mrb[0].mxu0
      %v3730 = vpop.f32.mrb[0].mxu0
      %v3731 = vadd.f32 0.0, %v3730
      %v3732 = vpop.f32.mrb[0].mxu0
      %3733 = vmatprep.mubr.bf16.mxu0 0
      %3734 = vmatmul.mubr.bf16.gmra.mrb[0].mxu0 %v3558
      %v3735 = vpop.f32.mrb[0].mxu0
      %v3736 = vadd.f32 0.0, %v3735
      %v3737 = vpop.f32.mrb[0].mxu0
      %v3738 = vpop.f32.mrb[0].mxu0
      %v3739 = vadd.f32 0.0, %v3738
      %v3740 = vpop.f32.mrb[0].mxu0
      %3741 = vmatprep.mubr.bf16.mxu0 0
      %3742 = vmatmul.mubr.bf16.gmra.mrb[0].mxu0 %v3559
      %v3743 = vpop.f32.mrb[0].mxu0
      %v3744 = vadd.f32 0.0, %v3743
      %v3745 = vpop.f32.mrb[0].mxu0
      %v3746 = vpop.f32.mrb[0].mxu0
      %v3747 = vadd.f32 0.0, %v3746
      %v3748 = vpop.f32.mrb[0].mxu0
      %3749 = vmatprep.mubr.bf16.mxu0 0
      %3750 = vmatmul.mubr.bf16.gmra.mrb[0].mxu0 %v3560
      %v3751 = vpop.f32.mrb[0].mxu0
      %v3752 = vadd.f32 0.0, %v3751
      %v3753 = vpop.f32.mrb[0].mxu0
      %v3754 = vpop.f32.mrb[0].mxu0
      %v3755 = vadd.f32 0.0, %v3754
      %v3756 = vpop.f32.mrb[0].mxu0
      %3757 = vmatprep.mubr.bf16.mxu0 0
      %3758 = vmatmul.mubr.bf16.gmra.mrb[0].mxu0 %v3561
      %v3759 = vpop.f32.mrb[0].mxu0
      %v3760 = vadd.f32 0.0, %v3759
      %v3761 = vpop.f32.mrb[0].mxu0
      %v3762 = vpop.f32.mrb[0].mxu0
      %v3763 = vadd.f32 0.0, %v3762
      %v3764 = vpop.f32.mrb[0].mxu0
      %3765 = vmatprep.mubr.bf16.mxu0 0
      %3766 = vmatmul.mubr.bf16.gmra.mrb[0].mxu0 %v3562
      %v3767 = vpop.f32.mrb[0].mxu0
      %v3768 = vadd.f32 0.0, %v3767
      %v3769 = vpop.f32.mrb[0].mxu0
      %v3770 = vpop.f32.mrb[0].mxu0
      %v3771 = vadd.f32 0.0, %v3770
      %v3772 = vpop.f32.mrb[0].mxu0
      %3773 = vmatprep.mubr.bf16.mxu0 0
      %3774 = vmatmul.mubr.bf16.gmra.mrb[0].mxu0 %v3563
      %v3775 = vpop.f32.mrb[0].mxu0
      %v3776 = vadd.f32 0.0, %v3775
      %v3777 = vpop.f32.mrb[0].mxu0
      %v3778 = vpop.f32.mrb[0].mxu0
      %v3779 = vadd.f32 0.0, %v3778
      %v3780 = vpop.f32.mrb[0].mxu0
      %3781 = vmatprep.mubr.bf16.mxu0 0
      %3782 = vmatmul.mubr.bf16.gmra.mrb[0].mxu0 %v3564
      %v3783 = vpop.f32.mrb[0].mxu0
      %v3784 = vadd.f32 0.0, %v3783
      %v3785 = vpop.f32.mrb[0].mxu0
      %v3786 = vpop.f32.mrb[0].mxu0
      %v3787 = vadd.f32 0.0, %v3786
      %v3788 = vpop.f32.mrb[0].mxu0
      %3789 = vdwg.mxu0
      %v3790 = vadd.f32 %v3036, %v3664
      %v3791 = vadd.f32 %v3037, %v3667
      %v3792 = vadd.f32 %v3038, %v3672
      %v3793 = vadd.f32 %v3039, %v3675
      %v3794 = vadd.f32 %v3040, %v3680
      %v3795 = vadd.f32 %v3041, %v3683
      %v3796 = vadd.f32 %v3042, %v3688
      %v3797 = vadd.f32 %v3043, %v3691
      %v3798 = vadd.f32 %v3044, %v3696
      %v3799 = vadd.f32 %v3045, %v3699
      %v3800 = vadd.f32 %v3046, %v3704
      %v3801 = vadd.f32 %v3047, %v3707
      %v3802 = vadd.f32 %v3048, %v3712
      %v3803 = vadd.f32 %v3049, %v3715
      %v3804 = vadd.f32 %v3050, %v3720
      %v3805 = vadd.f32 %v3051, %v3723
      %v3806 = vadd.f32 %v3052, %v3728
      %v3807 = vadd.f32 %v3053, %v3731
      %v3808 = vadd.f32 %v3054, %v3736
      %v3809 = vadd.f32 %v3055, %v3739
      %v3810 = vadd.f32 %v3056, %v3744
      %v3811 = vadd.f32 %v3057, %v3747
      %v3812 = vadd.f32 %v3058, %v3752
      %v3813 = vadd.f32 %v3059, %v3755
      %v3814 = vadd.f32 %v3060, %v3760
      %v3815 = vadd.f32 %v3061, %v3763
      %v3816 = vadd.f32 %v3062, %v3768
      %v3817 = vadd.f32 %v3063, %v3771
      %v3818 = vadd.f32 %v3064, %v3776
      %v3819 = vadd.f32 %v3065, %v3779
      %v3820 = vadd.f32 %v3066, %v3784
      %v3821 = vadd.f32 %v3067, %v3787
      %v3822 = vld [vmem:[%s2681] sm:$0xe]
      %v3823 = vld [vmem:[%s2681 + $0xc] sm:$0xe]
      %v3824 = vld [vmem:[%s2681 + $0x18] sm:$0xe]
      %v3825 = vld [vmem:[%s2681 + $0x24] sm:$0xe]
      %v3826 = vld [vmem:[%s2681 + $0x30] sm:$0xe]
      %v3827 = vld [vmem:[%s2681 + $0x3c] sm:$0xe]
      %v3828 = vld [vmem:[%s2681 + $0x48] sm:$0xe]
      %v3829 = vld [vmem:[%s2681 + $0x54] sm:$0xe]
      %v3830 = vld [vmem:[%s2681 + $0x60] sm:$0xe]
      %v3831 = vld [vmem:[%s2681 + $0x6c] sm:$0xe]
      %v3832 = vld [vmem:[%s2681 + $0x78] sm:$0xe]
      %v3833 = vld [vmem:[%s2681 + $0x84] sm:$0xe]
      %v3834 = vld [vmem:[%s2681 + $0x90] sm:$0xe]
      %v3835 = vld [vmem:[%s2681 + $0x9c] sm:$0xe]
      %v3836 = vld [vmem:[%s2681 + $0xa8] sm:$0xe]
      %v3837 = vld [vmem:[%s2681 + $0xb4] sm:$0xe]
      %v3886 = vrot.slane %v3822, 5
      %v3887 = vrot.slane %v3886, 4
      %v3888 = vrot.slane %v3069, 5
      %v3889 = vsel %vm2246, %v3887, %v3888
      %v3890 = vrot.slane %v3888, 4
      %v3891 = vrot.slane %v3070, 5
      %v3892 = vsel %vm2246, %v3890, %v3891
      %v3893 = vrot.slane %v3823, 5
      %v3894 = vrot.slane %v3893, 4
      %v3895 = vrot.slane %v3072, 5
      %v3896 = vsel %vm2246, %v3894, %v3895
      %v3897 = vrot.slane %v3895, 4
      %v3898 = vrot.slane %v3073, 5
      %v3899 = vsel %vm2246, %v3897, %v3898
      %v3900 = vrot.slane %v3824, 5
      %v3901 = vrot.slane %v3900, 4
      %v3902 = vrot.slane %v3075, 5
      %v3903 = vsel %vm2246, %v3901, %v3902
      %v3904 = vrot.slane %v3902, 4
      %v3905 = vrot.slane %v3076, 5
      %v3906 = vsel %vm2246, %v3904, %v3905
      %v3907 = vrot.slane %v3825, 5
      %v3908 = vrot.slane %v3907, 4
      %v3909 = vrot.slane %v3078, 5
      %v3910 = vsel %vm2246, %v3908, %v3909
      %v3911 = vrot.slane %v3909, 4
      %v3912 = vrot.slane %v3079, 5
      %v3913 = vsel %vm2246, %v3911, %v3912
      %v3914 = vrot.slane %v3826, 5
      %v3915 = vrot.slane %v3914, 4
      %v3916 = vrot.slane %v3081, 5
      %v3917 = vsel %vm2246, %v3915, %v3916
      %v3918 = vrot.slane %v3916, 4
      %v3919 = vrot.slane %v3082, 5
      %v3920 = vsel %vm2246, %v3918, %v3919
      %v3921 = vrot.slane %v3827, 5
      %v3922 = vrot.slane %v3921, 4
      %v3923 = vrot.slane %v3084, 5
      %v3924 = vsel %vm2246, %v3922, %v3923
      %v3925 = vrot.slane %v3923, 4
      %v3926 = vrot.slane %v3085, 5
      %v3927 = vsel %vm2246, %v3925, %v3926
      %v3928 = vrot.slane %v3828, 5
      %v3929 = vrot.slane %v3928, 4
      %v3930 = vrot.slane %v3087, 5
      %v3931 = vsel %vm2246, %v3929, %v3930
      %v3932 = vrot.slane %v3930, 4
      %v3933 = vrot.slane %v3088, 5
      %v3934 = vsel %vm2246, %v3932, %v3933
      %v3935 = vrot.slane %v3829, 5
      %v3936 = vrot.slane %v3935, 4
      %v3937 = vrot.slane %v3090, 5
      %v3938 = vsel %vm2246, %v3936, %v3937
      %v3939 = vrot.slane %v3937, 4
      %v3940 = vrot.slane %v3091, 5
      %v3941 = vsel %vm2246, %v3939, %v3940
      %v3942 = vrot.slane %v3830, 5
      %v3943 = vrot.slane %v3942, 4
      %v3944 = vrot.slane %v3093, 5
      %v3945 = vsel %vm2246, %v3943, %v3944
      %v3946 = vrot.slane %v3944, 4
      %v3947 = vrot.slane %v3094, 5
      %v3948 = vsel %vm2246, %v3946, %v3947
      %v3949 = vrot.slane %v3831, 5
      %v3950 = vrot.slane %v3949, 4
      %v3951 = vrot.slane %v3096, 5
      %v3952 = vsel %vm2246, %v3950, %v3951
      %v3953 = vrot.slane %v3951, 4
      %v3954 = vrot.slane %v3097, 5
      %v3955 = vsel %vm2246, %v3953, %v3954
      %v3956 = vrot.slane %v3832, 5
      %v3957 = vrot.slane %v3956, 4
      %v3958 = vrot.slane %v3099, 5
      %v3959 = vsel %vm2246, %v3957, %v3958
      %v3960 = vrot.slane %v3958, 4
      %v3961 = vrot.slane %v3100, 5
      %v3962 = vsel %vm2246, %v3960, %v3961
      %v3963 = vrot.slane %v3833, 5
      %v3964 = vrot.slane %v3963, 4
      %v3965 = vrot.slane %v3102, 5
      %v3966 = vsel %vm2246, %v3964, %v3965
      %v3967 = vrot.slane %v3965, 4
      %v3968 = vrot.slane %v3103, 5
      %v3969 = vsel %vm2246, %v3967, %v3968
      %v3970 = vrot.slane %v3834, 5
      %v3971 = vrot.slane %v3970, 4
      %v3972 = vrot.slane %v3105, 5
      %v3973 = vsel %vm2246, %v3971, %v3972
      %v3974 = vrot.slane %v3972, 4
      %v3975 = vrot.slane %v3106, 5
      %v3976 = vsel %vm2246, %v3974, %v3975
      %v3977 = vrot.slane %v3835, 5
      %v3978 = vrot.slane %v3977, 4
      %v3979 = vrot.slane %v3108, 5
      %v3980 = vsel %vm2246, %v3978, %v3979
      %v3981 = vrot.slane %v3979, 4
      %v3982 = vrot.slane %v3109, 5
      %v3983 = vsel %vm2246, %v3981, %v3982
      %v3984 = vrot.slane %v3836, 5
      %v3985 = vrot.slane %v3984, 4
      %v3986 = vrot.slane %v3111, 5
      %v3987 = vsel %vm2246, %v3985, %v3986
      %v3988 = vrot.slane %v3986, 4
      %v3989 = vrot.slane %v3112, 5
      %v3990 = vsel %vm2246, %v3988, %v3989
      %v3991 = vrot.slane %v3837, 5
      %v3992 = vrot.slane %v3991, 4
      %v3993 = vrot.slane %v3114, 5
      %v3994 = vsel %vm2246, %v3992, %v3993
      %v3995 = vrot.slane %v3993, 4
      %v3996 = vrot.slane %v3115, 5
      %v3997 = vsel %vm2246, %v3995, %v3996
      %s3998 = scalar_lea.vmem %s2, 320
      %v3999 = vld [vmem:[%s3998] sm:$0xf]
      %v4000 = vld [vmem:[%s3998 + $0x4] sm:$0xf]
      %v4001 = vld [vmem:[%s3998 + $0x8] sm:$0xf]
      %v4002 = vld [vmem:[%s3998 + $0xc] sm:$0xf]
      %v4003 = vld [vmem:[%s3998 + $0x10] sm:$0xf]
      %v4004 = vld [vmem:[%s3998 + $0x14] sm:$0xf]
      %v4005 = vld [vmem:[%s3998 + $0x18] sm:$0xf]
      %v4006 = vld [vmem:[%s3998 + $0x1c] sm:$0xf]
      %v4007 = vld [vmem:[%s3998 + $0x20] sm:$0xf]
      %v4008 = vld [vmem:[%s3998 + $0x24] sm:$0xf]
      %v4009 = vld [vmem:[%s3998 + $0x28] sm:$0xf]
      %v4010 = vld [vmem:[%s3998 + $0x2c] sm:$0xf]
      %v4011 = vld [vmem:[%s3998 + $0x30] sm:$0xf]
      %v4012 = vld [vmem:[%s3998 + $0x34] sm:$0xf]
      %v4013 = vld [vmem:[%s3998 + $0x38] sm:$0xf]
      %v4014 = vld [vmem:[%s3998 + $0x3c] sm:$0xf]
      %v4015 = vunpack.c.l.b16 %v3889
      %v4016 = vunpack.c.l.b16 %v3892
      %v4017 = vunpack.c.l.b16 %v3896
      %v4018 = vunpack.c.l.b16 %v3899
      %v4019 = vunpack.c.l.b16 %v3903
      %v4020 = vunpack.c.l.b16 %v3906
      %v4021 = vunpack.c.l.b16 %v3910
      %v4022 = vunpack.c.l.b16 %v3913
      %v4023 = vunpack.c.l.b16 %v3917
      %v4024 = vunpack.c.l.b16 %v3920
      %v4025 = vunpack.c.l.b16 %v3924
      %v4026 = vunpack.c.l.b16 %v3927
      %v4027 = vunpack.c.l.b16 %v3931
      %v4028 = vunpack.c.l.b16 %v3934
      %v4029 = vunpack.c.l.b16 %v3938
      %v4030 = vunpack.c.l.b16 %v3941
      %v4031 = vunpack.c.l.b16 %v3945
      %v4032 = vunpack.c.l.b16 %v3948
      %v4033 = vunpack.c.l.b16 %v3952
      %v4034 = vunpack.c.l.b16 %v3955
      %v4035 = vunpack.c.l.b16 %v3959
      %v4036 = vunpack.c.l.b16 %v3962
      %v4037 = vunpack.c.l.b16 %v3966
      %v4038 = vunpack.c.l.b16 %v3969
      %v4039 = vunpack.c.l.b16 %v3973
      %v4040 = vunpack.c.l.b16 %v3976
      %v4041 = vunpack.c.l.b16 %v3980
      %v4042 = vunpack.c.l.b16 %v3983
      %v4043 = vunpack.c.l.b16 %v3987
      %v4044 = vunpack.c.l.b16 %v3990
      %v4045 = vunpack.c.l.b16 %v3994
      %v4046 = vunpack.c.l.b16 %v3997
      %v4047 = vpack.c.b16 %v4016, %v4015
      %v4048 = vpack.c.b16 %v4018, %v4017
      %v4049 = vpack.c.b16 %v4020, %v4019
      %v4050 = vpack.c.b16 %v4022, %v4021
      %v4051 = vpack.c.b16 %v4024, %v4023
      %v4052 = vpack.c.b16 %v4026, %v4025
      %v4053 = vpack.c.b16 %v4028, %v4027
      %v4054 = vpack.c.b16 %v4030, %v4029
      %v4055 = vpack.c.b16 %v4032, %v4031
      %v4056 = vpack.c.b16 %v4034, %v4033
      %v4057 = vpack.c.b16 %v4036, %v4035
      %v4058 = vpack.c.b16 %v4038, %v4037
      %v4059 = vpack.c.b16 %v4040, %v4039
      %v4060 = vpack.c.b16 %v4042, %v4041
      %v4061 = vpack.c.b16 %v4044, %v4043
      %v4062 = vpack.c.b16 %v4046, %v4045
      %v4095 = vunpack.c.l.b16 %v3999
      %v4096 = vunpack.c.l.b16 %v4000
      %v4097 = vunpack.c.l.b16 %v4001
      %v4098 = vunpack.c.l.b16 %v4002
      %v4099 = vunpack.c.l.b16 %v4003
      %v4100 = vunpack.c.l.b16 %v4004
      %v4101 = vunpack.c.l.b16 %v4005
      %v4102 = vunpack.c.l.b16 %v4006
      %v4103 = vunpack.c.l.b16 %v4007
      %v4104 = vunpack.c.l.b16 %v4008
      %v4105 = vunpack.c.l.b16 %v4009
      %v4106 = vunpack.c.l.b16 %v4010
      %v4107 = vunpack.c.l.b16 %v4011
      %v4108 = vunpack.c.l.b16 %v4012
      %v4109 = vunpack.c.l.b16 %v4013
      %v4110 = vunpack.c.l.b16 %v4014
      %v4111 = vpack.c.b16 %v4096, %v4095
      %v4112 = vpack.c.b16 %v4098, %v4097
      %v4113 = vpack.c.b16 %v4100, %v4099
      %v4114 = vpack.c.b16 %v4102, %v4101
      %v4115 = vpack.c.b16 %v4104, %v4103
      %v4116 = vpack.c.b16 %v4106, %v4105
      %v4117 = vpack.c.b16 %v4108, %v4107
      %v4118 = vpack.c.b16 %v4110, %v4109
      %4127 = vmatprep.subr.bf16.mxu0 0
      %4128 = vmatpush1.bf16.msra.mxu0 %v4111
      %4129 = vmatprep.subr.bf16.mxu0 0
      %4130 = vmatpush1.bf16.msra.mxu0 %v4112
      %4131 = vmatprep.subr.bf16.mxu0 0
      %4132 = vmatpush1.bf16.msra.mxu0 %v4113
      %4133 = vmatprep.subr.bf16.mxu0 0
      %4134 = vmatpush1.bf16.msra.mxu0 %v4114
      %4135 = vmatprep.subr.bf16.mxu0 0
      %4136 = vmatpush1.bf16.msra.mxu0 %v4115
      %4137 = vmatprep.subr.bf16.mxu0 0
      %4138 = vmatpush1.bf16.msra.mxu0 %v4116
      %4139 = vmatprep.subr.bf16.mxu0 0
      %4140 = vmatpush1.bf16.msra.mxu0 %v4117
      %4141 = vmatprep.subr.bf16.mxu0 0
      %4142 = vmatpush1.bf16.msra.mxu0 %v4118
      %4143 = vmatprep.subr.bf16.mxu0 0
      %4144 = vmatpush1.bf16.msra.mxu0 0
      %4145 = vmatprep.subr.bf16.mxu0 0
      %4146 = vmatpush1.bf16.msra.mxu0 0
      %4147 = vmatprep.subr.bf16.mxu0 0
      %4148 = vmatpush1.bf16.msra.mxu0 0
      %4149 = vmatprep.subr.bf16.mxu0 0
      %4150 = vmatpush1.bf16.msra.mxu0 0
      %4151 = vmatprep.subr.bf16.mxu0 0
      %4152 = vmatpush1.bf16.msra.mxu0 0
      %4153 = vmatprep.subr.bf16.mxu0 0
      %4154 = vmatpush1.bf16.msra.mxu0 0
      %4155 = vmatprep.subr.bf16.mxu0 0
      %4156 = vmatpush1.bf16.msra.mxu0 0
      %4157 = vmatprep.subr.bf16.mxu0 0
      %4158 = vmatpush1.bf16.msra.mxu0 0
      %4159 = vmatprep.mubr.bf16.mxu0 0
      %4160 = vmatmul.mubr.bf16.gmra.mrb[0].mxu0 %v4047
      %v4161 = vpop.f32.mrb[0].mxu0
      %v4162 = vadd.f32 0.0, %v4161
      %v4163 = vpop.f32.mrb[0].mxu0
      %v4164 = vpop.f32.mrb[0].mxu0
      %v4165 = vadd.f32 0.0, %v4164
      %v4166 = vpop.f32.mrb[0].mxu0
      %4167 = vmatprep.mubr.bf16.mxu0 0
      %4168 = vmatmul.mubr.bf16.gmra.mrb[0].mxu0 %v4048
      %v4169 = vpop.f32.mrb[0].mxu0
      %v4170 = vadd.f32 0.0, %v4169
      %v4171 = vpop.f32.mrb[0].mxu0
      %v4172 = vpop.f32.mrb[0].mxu0
      %v4173 = vadd.f32 0.0, %v4172
      %v4174 = vpop.f32.mrb[0].mxu0
      %4175 = vmatprep.mubr.bf16.mxu0 0
      %4176 = vmatmul.mubr.bf16.gmra.mrb[0].mxu0 %v4049
      %v4177 = vpop.f32.mrb[0].mxu0
      %v4178 = vadd.f32 0.0, %v4177
      %v4179 = vpop.f32.mrb[0].mxu0
      %v4180 = vpop.f32.mrb[0].mxu0
      %v4181 = vadd.f32 0.0, %v4180
      %v4182 = vpop.f32.mrb[0].mxu0
      %4183 = vmatprep.mubr.bf16.mxu0 0
      %4184 = vmatmul.mubr.bf16.gmra.mrb[0].mxu0 %v4050
      %v4185 = vpop.f32.mrb[0].mxu0
      %v4186 = vadd.f32 0.0, %v4185
      %v4187 = vpop.f32.mrb[0].mxu0
      %v4188 = vpop.f32.mrb[0].mxu0
      %v4189 = vadd.f32 0.0, %v4188
      %v4190 = vpop.f32.mrb[0].mxu0
      %4191 = vmatprep.mubr.bf16.mxu0 0
      %4192 = vmatmul.mubr.bf16.gmra.mrb[0].mxu0 %v4051
      %v4193 = vpop.f32.mrb[0].mxu0
      %v4194 = vadd.f32 0.0, %v4193
      %v4195 = vpop.f32.mrb[0].mxu0
      %v4196 = vpop.f32.mrb[0].mxu0
      %v4197 = vadd.f32 0.0, %v4196
      %v4198 = vpop.f32.mrb[0].mxu0
      %4199 = vmatprep.mubr.bf16.mxu0 0
      %4200 = vmatmul.mubr.bf16.gmra.mrb[0].mxu0 %v4052
      %v4201 = vpop.f32.mrb[0].mxu0
      %v4202 = vadd.f32 0.0, %v4201
      %v4203 = vpop.f32.mrb[0].mxu0
      %v4204 = vpop.f32.mrb[0].mxu0
      %v4205 = vadd.f32 0.0, %v4204
      %v4206 = vpop.f32.mrb[0].mxu0
      %4207 = vmatprep.mubr.bf16.mxu0 0
      %4208 = vmatmul.mubr.bf16.gmra.mrb[0].mxu0 %v4053
      %v4209 = vpop.f32.mrb[0].mxu0
      %v4210 = vadd.f32 0.0, %v4209
      %v4211 = vpop.f32.mrb[0].mxu0
      %v4212 = vpop.f32.mrb[0].mxu0
      %v4213 = vadd.f32 0.0, %v4212
      %v4214 = vpop.f32.mrb[0].mxu0
      %4215 = vmatprep.mubr.bf16.mxu0 0
      %4216 = vmatmul.mubr.bf16.gmra.mrb[0].mxu0 %v4054
      %v4217 = vpop.f32.mrb[0].mxu0
      %v4218 = vadd.f32 0.0, %v4217
      %v4219 = vpop.f32.mrb[0].mxu0
      %v4220 = vpop.f32.mrb[0].mxu0
      %v4221 = vadd.f32 0.0, %v4220
      %v4222 = vpop.f32.mrb[0].mxu0
      %4223 = vmatprep.mubr.bf16.mxu0 0
      %4224 = vmatmul.mubr.bf16.gmra.mrb[0].mxu0 %v4055
      %v4225 = vpop.f32.mrb[0].mxu0
      %v4226 = vadd.f32 0.0, %v4225
      %v4227 = vpop.f32.mrb[0].mxu0
      %v4228 = vpop.f32.mrb[0].mxu0
      %v4229 = vadd.f32 0.0, %v4228
      %v4230 = vpop.f32.mrb[0].mxu0
      %4231 = vmatprep.mubr.bf16.mxu0 0
      %4232 = vmatmul.mubr.bf16.gmra.mrb[0].mxu0 %v4056
      %v4233 = vpop.f32.mrb[0].mxu0
      %v4234 = vadd.f32 0.0, %v4233
      %v4235 = vpop.f32.mrb[0].mxu0
      %v4236 = vpop.f32.mrb[0].mxu0
      %v4237 = vadd.f32 0.0, %v4236
      %v4238 = vpop.f32.mrb[0].mxu0
      %4239 = vmatprep.mubr.bf16.mxu0 0
      %4240 = vmatmul.mubr.bf16.gmra.mrb[0].mxu0 %v4057
      %v4241 = vpop.f32.mrb[0].mxu0
      %v4242 = vadd.f32 0.0, %v4241
      %v4243 = vpop.f32.mrb[0].mxu0
      %v4244 = vpop.f32.mrb[0].mxu0
      %v4245 = vadd.f32 0.0, %v4244
      %v4246 = vpop.f32.mrb[0].mxu0
      %4247 = vmatprep.mubr.bf16.mxu0 0
      %4248 = vmatmul.mubr.bf16.gmra.mrb[0].mxu0 %v4058
      %v4249 = vpop.f32.mrb[0].mxu0
      %v4250 = vadd.f32 0.0, %v4249
      %v4251 = vpop.f32.mrb[0].mxu0
      %v4252 = vpop.f32.mrb[0].mxu0
      %v4253 = vadd.f32 0.0, %v4252
      %v4254 = vpop.f32.mrb[0].mxu0
      %4255 = vmatprep.mubr.bf16.mxu0 0
      %4256 = vmatmul.mubr.bf16.gmra.mrb[0].mxu0 %v4059
      %v4257 = vpop.f32.mrb[0].mxu0
      %v4258 = vadd.f32 0.0, %v4257
      %v4259 = vpop.f32.mrb[0].mxu0
      %v4260 = vpop.f32.mrb[0].mxu0
      %v4261 = vadd.f32 0.0, %v4260
      %v4262 = vpop.f32.mrb[0].mxu0
      %4263 = vmatprep.mubr.bf16.mxu0 0
      %4264 = vmatmul.mubr.bf16.gmra.mrb[0].mxu0 %v4060
      %v4265 = vpop.f32.mrb[0].mxu0
      %v4266 = vadd.f32 0.0, %v4265
      %v4267 = vpop.f32.mrb[0].mxu0
      %v4268 = vpop.f32.mrb[0].mxu0
      %v4269 = vadd.f32 0.0, %v4268
      %v4270 = vpop.f32.mrb[0].mxu0
      %4271 = vmatprep.mubr.bf16.mxu0 0
      %4272 = vmatmul.mubr.bf16.gmra.mrb[0].mxu0 %v4061
      %v4273 = vpop.f32.mrb[0].mxu0
      %v4274 = vadd.f32 0.0, %v4273
      %v4275 = vpop.f32.mrb[0].mxu0
      %v4276 = vpop.f32.mrb[0].mxu0
      %v4277 = vadd.f32 0.0, %v4276
      %v4278 = vpop.f32.mrb[0].mxu0
      %4279 = vmatprep.mubr.bf16.mxu0 0
      %4280 = vmatmul.mubr.bf16.gmra.mrb[0].mxu0 %v4062
      %v4281 = vpop.f32.mrb[0].mxu0
      %v4282 = vadd.f32 0.0, %v4281
      %v4283 = vpop.f32.mrb[0].mxu0
      %v4284 = vpop.f32.mrb[0].mxu0
      %v4285 = vadd.f32 0.0, %v4284
      %v4286 = vpop.f32.mrb[0].mxu0
      %4287 = vdwg.mxu0
      %v4288 = vadd.f32 %v3790, %v4162
      %v4289 = vadd.f32 %v3791, %v4165
      %v4290 = vadd.f32 %v3792, %v4170
      %v4291 = vadd.f32 %v3793, %v4173
      %v4292 = vadd.f32 %v3794, %v4178
      %v4293 = vadd.f32 %v3795, %v4181
      %v4294 = vadd.f32 %v3796, %v4186
      %v4295 = vadd.f32 %v3797, %v4189
      %v4296 = vadd.f32 %v3798, %v4194
      %v4297 = vadd.f32 %v3799, %v4197
      %v4298 = vadd.f32 %v3800, %v4202
      %v4299 = vadd.f32 %v3801, %v4205
      %v4300 = vadd.f32 %v3802, %v4210
      %v4301 = vadd.f32 %v3803, %v4213
      %v4302 = vadd.f32 %v3804, %v4218
      %v4303 = vadd.f32 %v3805, %v4221
      %v4304 = vadd.f32 %v3806, %v4226
      %v4305 = vadd.f32 %v3807, %v4229
      %v4306 = vadd.f32 %v3808, %v4234
      %v4307 = vadd.f32 %v3809, %v4237
      %v4308 = vadd.f32 %v3810, %v4242
      %v4309 = vadd.f32 %v3811, %v4245
      %v4310 = vadd.f32 %v3812, %v4250
      %v4311 = vadd.f32 %v3813, %v4253
      %v4312 = vadd.f32 %v3814, %v4258
      %v4313 = vadd.f32 %v3815, %v4261
      %v4314 = vadd.f32 %v3816, %v4266
      %v4315 = vadd.f32 %v3817, %v4269
      %v4316 = vadd.f32 %v3818, %v4274
      %v4317 = vadd.f32 %v3819, %v4277
      %v4318 = vadd.f32 %v3820, %v4282
      %v4319 = vadd.f32 %v3821, %v4285
      %s4320 = scalar_lea.vmem [#allocation2], 24
      %v4321 = vld [vmem:[%s4320] sm:$0xf]
      %v4322 = vld [vmem:[%s4320 + $0x4] sm:$0xf]
      %v4323 = vld [vmem:[%s4320 + $0xc] sm:$0xf]
      %v4324 = vld [vmem:[%s4320 + $0x10] sm:$0xf]
      %v4325 = vld [vmem:[%s4320 + $0x18] sm:$0xf]
      %v4326 = vld [vmem:[%s4320 + $0x1c] sm:$0xf]
      %v4327 = vld [vmem:[%s4320 + $0x24] sm:$0xf]
      %v4328 = vld [vmem:[%s4320 + $0x28] sm:$0xf]
      %v4329 = vld [vmem:[%s4320 + $0x30] sm:$0xf]
      %v4330 = vld [vmem:[%s4320 + $0x34] sm:$0xf]
      %v4331 = vld [vmem:[%s4320 + $0x3c] sm:$0xf]
      %v4332 = vld [vmem:[%s4320 + $0x40] sm:$0xf]
      %v4333 = vld [vmem:[%s4320 + $0x48] sm:$0xf]
      %v4334 = vld [vmem:[%s4320 + $0x4c] sm:$0xf]
      %v4335 = vld [vmem:[%s4320 + $0x54] sm:$0xf]
      %v4336 = vld [vmem:[%s4320 + $0x58] sm:$0xf]
      %v4337 = vld [vmem:[%s4320 + $0x60] sm:$0xf]
      %v4338 = vld [vmem:[%s4320 + $0x64] sm:$0xf]
      %v4339 = vld [vmem:[%s4320 + $0x6c] sm:$0xf]
      %v4340 = vld [vmem:[%s4320 + $0x70] sm:$0xf]
      %v4341 = vld [vmem:[%s4320 + $0x78] sm:$0xf]
      %v4342 = vld [vmem:[%s4320 + $0x7c] sm:$0xf]
      %v4343 = vld [vmem:[%s4320 + $0x84] sm:$0xf]
      %v4344 = vld [vmem:[%s4320 + $0x88] sm:$0xf]
      %v4345 = vld [vmem:[%s4320 + $0x90] sm:$0xf]
      %v4346 = vld [vmem:[%s4320 + $0x94] sm:$0xf]
      %v4347 = vld [vmem:[%s4320 + $0x9c] sm:$0xf]
      %v4348 = vld [vmem:[%s4320 + $0xa0] sm:$0xf]
      %v4349 = vld [vmem:[%s4320 + $0xa8] sm:$0xf]
      %v4350 = vld [vmem:[%s4320 + $0xac] sm:$0xf]
      %v4351 = vld [vmem:[%s4320 + $0xb4] sm:$0xf]
      %v4352 = vld [vmem:[%s4320 + $0xb8] sm:$0xf]
      %s4353 = scalar_lea.vmem %s2, 384
      %v4354 = vld [vmem:[%s4353] sm:$0xf]
      %v4355 = vld [vmem:[%s4353 + $0x4] sm:$0xf]
      %v4356 = vld [vmem:[%s4353 + $0x8] sm:$0xf]
      %v4357 = vld [vmem:[%s4353 + $0xc] sm:$0xf]
      %v4358 = vld [vmem:[%s4353 + $0x10] sm:$0xf]
      %v4359 = vld [vmem:[%s4353 + $0x14] sm:$0xf]
      %v4360 = vld [vmem:[%s4353 + $0x18] sm:$0xf]
      %v4361 = vld [vmem:[%s4353 + $0x1c] sm:$0xf]
      %v4362 = vld [vmem:[%s4353 + $0x20] sm:$0xf]
      %v4363 = vld [vmem:[%s4353 + $0x24] sm:$0xf]
      %v4364 = vld [vmem:[%s4353 + $0x28] sm:$0xf]
      %v4365 = vld [vmem:[%s4353 + $0x2c] sm:$0xf]
      %v4366 = vld [vmem:[%s4353 + $0x30] sm:$0xf]
      %v4367 = vld [vmem:[%s4353 + $0x34] sm:$0xf]
      %v4368 = vld [vmem:[%s4353 + $0x38] sm:$0xf]
      %v4369 = vld [vmem:[%s4353 + $0x3c] sm:$0xf]
      %v4402 = vunpack.c.l.b16 %v4321
      %v4403 = vunpack.c.l.b16 %v4322
      %v4404 = vunpack.c.l.b16 %v4323
      %v4405 = vunpack.c.l.b16 %v4324
      %v4406 = vunpack.c.l.b16 %v4325
      %v4407 = vunpack.c.l.b16 %v4326
      %v4408 = vunpack.c.l.b16 %v4327
      %v4409 = vunpack.c.l.b16 %v4328
      %v4410 = vunpack.c.l.b16 %v4329
      %v4411 = vunpack.c.l.b16 %v4330
      %v4412 = vunpack.c.l.b16 %v4331
      %v4413 = vunpack.c.l.b16 %v4332
      %v4414 = vunpack.c.l.b16 %v4333
      %v4415 = vunpack.c.l.b16 %v4334
      %v4416 = vunpack.c.l.b16 %v4335
      %v4417 = vunpack.c.l.b16 %v4336
      %v4418 = vunpack.c.l.b16 %v4337
      %v4419 = vunpack.c.l.b16 %v4338
      %v4420 = vunpack.c.l.b16 %v4339
      %v4421 = vunpack.c.l.b16 %v4340
      %v4422 = vunpack.c.l.b16 %v4341
      %v4423 = vunpack.c.l.b16 %v4342
      %v4424 = vunpack.c.l.b16 %v4343
      %v4425 = vunpack.c.l.b16 %v4344
      %v4426 = vunpack.c.l.b16 %v4345
      %v4427 = vunpack.c.l.b16 %v4346
      %v4428 = vunpack.c.l.b16 %v4347
      %v4429 = vunpack.c.l.b16 %v4348
      %v4430 = vunpack.c.l.b16 %v4349
      %v4431 = vunpack.c.l.b16 %v4350
      %v4432 = vunpack.c.l.b16 %v4351
      %v4433 = vunpack.c.l.b16 %v4352
      %v4434 = vpack.c.b16 %v4403, %v4402
      %v4435 = vpack.c.b16 %v4405, %v4404
      %v4436 = vpack.c.b16 %v4407, %v4406
      %v4437 = vpack.c.b16 %v4409, %v4408
      %v4438 = vpack.c.b16 %v4411, %v4410
      %v4439 = vpack.c.b16 %v4413, %v4412
      %v4440 = vpack.c.b16 %v4415, %v4414
      %v4441 = vpack.c.b16 %v4417, %v4416
      %v4442 = vpack.c.b16 %v4419, %v4418
      %v4443 = vpack.c.b16 %v4421, %v4420
      %v4444 = vpack.c.b16 %v4423, %v4422
      %v4445 = vpack.c.b16 %v4425, %v4424
      %v4446 = vpack.c.b16 %v4427, %v4426
      %v4447 = vpack.c.b16 %v4429, %v4428
      %v4448 = vpack.c.b16 %v4431, %v4430
      %v4449 = vpack.c.b16 %v4433, %v4432
      %v4482 = vunpack.c.l.b16 %v4354
      %v4483 = vunpack.c.l.b16 %v4355
      %v4484 = vunpack.c.l.b16 %v4356
      %v4485 = vunpack.c.l.b16 %v4357
      %v4486 = vunpack.c.l.b16 %v4358
      %v4487 = vunpack.c.l.b16 %v4359
      %v4488 = vunpack.c.l.b16 %v4360
      %v4489 = vunpack.c.l.b16 %v4361
      %v4490 = vunpack.c.l.b16 %v4362
      %v4491 = vunpack.c.l.b16 %v4363
      %v4492 = vunpack.c.l.b16 %v4364
      %v4493 = vunpack.c.l.b16 %v4365
      %v4494 = vunpack.c.l.b16 %v4366
      %v4495 = vunpack.c.l.b16 %v4367
      %v4496 = vunpack.c.l.b16 %v4368
      %v4497 = vunpack.c.l.b16 %v4369
      %v4498 = vpack.c.b16 %v4483, %v4482
      %v4499 = vpack.c.b16 %v4485, %v4484
      %v4500 = vpack.c.b16 %v4487, %v4486
      %v4501 = vpack.c.b16 %v4489, %v4488
      %v4502 = vpack.c.b16 %v4491, %v4490
      %v4503 = vpack.c.b16 %v4493, %v4492
      %v4504 = vpack.c.b16 %v4495, %v4494
      %v4505 = vpack.c.b16 %v4497, %v4496
      %4514 = vmatprep.subr.bf16.mxu0 0
      %4515 = vmatpush1.bf16.msra.mxu0 %v4498
      %4516 = vmatprep.subr.bf16.mxu0 0
      %4517 = vmatpush1.bf16.msra.mxu0 %v4499
      %4518 = vmatprep.subr.bf16.mxu0 0
      %4519 = vmatpush1.bf16.msra.mxu0 %v4500
      %4520 = vmatprep.subr.bf16.mxu0 0
      %4521 = vmatpush1.bf16.msra.mxu0 %v4501
      %4522 = vmatprep.subr.bf16.mxu0 0
      %4523 = vmatpush1.bf16.msra.mxu0 %v4502
      %4524 = vmatprep.subr.bf16.mxu0 0
      %4525 = vmatpush1.bf16.msra.mxu0 %v4503
      %4526 = vmatprep.subr.bf16.mxu0 0
      %4527 = vmatpush1.bf16.msra.mxu0 %v4504
      %4528 = vmatprep.subr.bf16.mxu0 0
      %4529 = vmatpush1.bf16.msra.mxu0 %v4505
      %4530 = vmatprep.subr.bf16.mxu0 0
      %4531 = vmatpush1.bf16.msra.mxu0 0
      %4532 = vmatprep.subr.bf16.mxu0 0
      %4533 = vmatpush1.bf16.msra.mxu0 0
      %4534 = vmatprep.subr.bf16.mxu0 0
      %4535 = vmatpush1.bf16.msra.mxu0 0
      %4536 = vmatprep.subr.bf16.mxu0 0
      %4537 = vmatpush1.bf16.msra.mxu0 0
      %4538 = vmatprep.subr.bf16.mxu0 0
      %4539 = vmatpush1.bf16.msra.mxu0 0
      %4540 = vmatprep.subr.bf16.mxu0 0
      %4541 = vmatpush1.bf16.msra.mxu0 0
      %4542 = vmatprep.subr.bf16.mxu0 0
      %4543 = vmatpush1.bf16.msra.mxu0 0
      %4544 = vmatprep.subr.bf16.mxu0 0
      %4545 = vmatpush1.bf16.msra.mxu0 0
      %4546 = vmatprep.mubr.bf16.mxu0 0
      %4547 = vmatmul.mubr.bf16.gmra.mrb[0].mxu0 %v4434
      %v4548 = vpop.f32.mrb[0].mxu0
      %v4549 = vadd.f32 0.0, %v4548
      %v4550 = vpop.f32.mrb[0].mxu0
      %v4551 = vpop.f32.mrb[0].mxu0
      %v4552 = vadd.f32 0.0, %v4551
      %v4553 = vpop.f32.mrb[0].mxu0
      %4554 = vmatprep.mubr.bf16.mxu0 0
      %4555 = vmatmul.mubr.bf16.gmra.mrb[0].mxu0 %v4435
      %v4556 = vpop.f32.mrb[0].mxu0
      %v4557 = vadd.f32 0.0, %v4556
      %v4558 = vpop.f32.mrb[0].mxu0
      %v4559 = vpop.f32.mrb[0].mxu0
      %v4560 = vadd.f32 0.0, %v4559
      %v4561 = vpop.f32.mrb[0].mxu0
      %4562 = vmatprep.mubr.bf16.mxu0 0
      %4563 = vmatmul.mubr.bf16.gmra.mrb[0].mxu0 %v4436
      %v4564 = vpop.f32.mrb[0].mxu0
      %v4565 = vadd.f32 0.0, %v4564
      %v4566 = vpop.f32.mrb[0].mxu0
      %v4567 = vpop.f32.mrb[0].mxu0
      %v4568 = vadd.f32 0.0, %v4567
      %v4569 = vpop.f32.mrb[0].mxu0
      %4570 = vmatprep.mubr.bf16.mxu0 0
      %4571 = vmatmul.mubr.bf16.gmra.mrb[0].mxu0 %v4437
      %v4572 = vpop.f32.mrb[0].mxu0
      %v4573 = vadd.f32 0.0, %v4572
      %v4574 = vpop.f32.mrb[0].mxu0
      %v4575 = vpop.f32.mrb[0].mxu0
      %v4576 = vadd.f32 0.0, %v4575
      %v4577 = vpop.f32.mrb[0].mxu0
      %4578 = vmatprep.mubr.bf16.mxu0 0
      %4579 = vmatmul.mubr.bf16.gmra.mrb[0].mxu0 %v4438
      %v4580 = vpop.f32.mrb[0].mxu0
      %v4581 = vadd.f32 0.0, %v4580
      %v4582 = vpop.f32.mrb[0].mxu0
      %v4583 = vpop.f32.mrb[0].mxu0
      %v4584 = vadd.f32 0.0, %v4583
      %v4585 = vpop.f32.mrb[0].mxu0
      %4586 = vmatprep.mubr.bf16.mxu0 0
      %4587 = vmatmul.mubr.bf16.gmra.mrb[0].mxu0 %v4439
      %v4588 = vpop.f32.mrb[0].mxu0
      %v4589 = vadd.f32 0.0, %v4588
      %v4590 = vpop.f32.mrb[0].mxu0
      %v4591 = vpop.f32.mrb[0].mxu0
      %v4592 = vadd.f32 0.0, %v4591
      %v4593 = vpop.f32.mrb[0].mxu0
      %4594 = vmatprep.mubr.bf16.mxu0 0
      %4595 = vmatmul.mubr.bf16.gmra.mrb[0].mxu0 %v4440
      %v4596 = vpop.f32.mrb[0].mxu0
      %v4597 = vadd.f32 0.0, %v4596
      %v4598 = vpop.f32.mrb[0].mxu0
      %v4599 = vpop.f32.mrb[0].mxu0
      %v4600 = vadd.f32 0.0, %v4599
      %v4601 = vpop.f32.mrb[0].mxu0
      %4602 = vmatprep.mubr.bf16.mxu0 0
      %4603 = vmatmul.mubr.bf16.gmra.mrb[0].mxu0 %v4441
      %v4604 = vpop.f32.mrb[0].mxu0
      %v4605 = vadd.f32 0.0, %v4604
      %v4606 = vpop.f32.mrb[0].mxu0
      %v4607 = vpop.f32.mrb[0].mxu0
      %v4608 = vadd.f32 0.0, %v4607
      %v4609 = vpop.f32.mrb[0].mxu0
      %4610 = vmatprep.mubr.bf16.mxu0 0
      %4611 = vmatmul.mubr.bf16.gmra.mrb[0].mxu0 %v4442
      %v4612 = vpop.f32.mrb[0].mxu0
      %v4613 = vadd.f32 0.0, %v4612
      %v4614 = vpop.f32.mrb[0].mxu0
      %v4615 = vpop.f32.mrb[0].mxu0
      %v4616 = vadd.f32 0.0, %v4615
      %v4617 = vpop.f32.mrb[0].mxu0
      %4618 = vmatprep.mubr.bf16.mxu0 0
      %4619 = vmatmul.mubr.bf16.gmra.mrb[0].mxu0 %v4443
      %v4620 = vpop.f32.mrb[0].mxu0
      %v4621 = vadd.f32 0.0, %v4620
      %v4622 = vpop.f32.mrb[0].mxu0
      %v4623 = vpop.f32.mrb[0].mxu0
      %v4624 = vadd.f32 0.0, %v4623
      %v4625 = vpop.f32.mrb[0].mxu0
      %4626 = vmatprep.mubr.bf16.mxu0 0
      %4627 = vmatmul.mubr.bf16.gmra.mrb[0].mxu0 %v4444
      %v4628 = vpop.f32.mrb[0].mxu0
      %v4629 = vadd.f32 0.0, %v4628
      %v4630 = vpop.f32.mrb[0].mxu0
      %v4631 = vpop.f32.mrb[0].mxu0
      %v4632 = vadd.f32 0.0, %v4631
      %v4633 = vpop.f32.mrb[0].mxu0
      %4634 = vmatprep.mubr.bf16.mxu0 0
      %4635 = vmatmul.mubr.bf16.gmra.mrb[0].mxu0 %v4445
      %v4636 = vpop.f32.mrb[0].mxu0
      %v4637 = vadd.f32 0.0, %v4636
      %v4638 = vpop.f32.mrb[0].mxu0
      %v4639 = vpop.f32.mrb[0].mxu0
      %v4640 = vadd.f32 0.0, %v4639
      %v4641 = vpop.f32.mrb[0].mxu0
      %4642 = vmatprep.mubr.bf16.mxu0 0
      %4643 = vmatmul.mubr.bf16.gmra.mrb[0].mxu0 %v4446
      %v4644 = vpop.f32.mrb[0].mxu0
      %v4645 = vadd.f32 0.0, %v4644
      %v4646 = vpop.f32.mrb[0].mxu0
      %v4647 = vpop.f32.mrb[0].mxu0
      %v4648 = vadd.f32 0.0, %v4647
      %v4649 = vpop.f32.mrb[0].mxu0
      %4650 = vmatprep.mubr.bf16.mxu0 0
      %4651 = vmatmul.mubr.bf16.gmra.mrb[0].mxu0 %v4447
      %v4652 = vpop.f32.mrb[0].mxu0
      %v4653 = vadd.f32 0.0, %v4652
      %v4654 = vpop.f32.mrb[0].mxu0
      %v4655 = vpop.f32.mrb[0].mxu0
      %v4656 = vadd.f32 0.0, %v4655
      %v4657 = vpop.f32.mrb[0].mxu0
      %4658 = vmatprep.mubr.bf16.mxu0 0
      %4659 = vmatmul.mubr.bf16.gmra.mrb[0].mxu0 %v4448
      %v4660 = vpop.f32.mrb[0].mxu0
      %v4661 = vadd.f32 0.0, %v4660
      %v4662 = vpop.f32.mrb[0].mxu0
      %v4663 = vpop.f32.mrb[0].mxu0
      %v4664 = vadd.f32 0.0, %v4663
      %v4665 = vpop.f32.mrb[0].mxu0
      %4666 = vmatprep.mubr.bf16.mxu0 0
      %4667 = vmatmul.mubr.bf16.gmra.mrb[0].mxu0 %v4449
      %v4668 = vpop.f32.mrb[0].mxu0
      %v4669 = vadd.f32 0.0, %v4668
      %v4670 = vpop.f32.mrb[0].mxu0
      %v4671 = vpop.f32.mrb[0].mxu0
      %v4672 = vadd.f32 0.0, %v4671
      %v4673 = vpop.f32.mrb[0].mxu0
      %4674 = vdwg.mxu0
      %v4675 = vadd.f32 %v4288, %v4549
      %v4676 = vadd.f32 %v4289, %v4552
      %v4677 = vadd.f32 %v4290, %v4557
      %v4678 = vadd.f32 %v4291, %v4560
      %v4679 = vadd.f32 %v4292, %v4565
      %v4680 = vadd.f32 %v4293, %v4568
      %v4681 = vadd.f32 %v4294, %v4573
      %v4682 = vadd.f32 %v4295, %v4576
      %v4683 = vadd.f32 %v4296, %v4581
      %v4684 = vadd.f32 %v4297, %v4584
      %v4685 = vadd.f32 %v4298, %v4589
      %v4686 = vadd.f32 %v4299, %v4592
      %v4687 = vadd.f32 %v4300, %v4597
      %v4688 = vadd.f32 %v4301, %v4600
      %v4689 = vadd.f32 %v4302, %v4605
      %v4690 = vadd.f32 %v4303, %v4608
      %v4691 = vadd.f32 %v4304, %v4613
      %v4692 = vadd.f32 %v4305, %v4616
      %v4693 = vadd.f32 %v4306, %v4621
      %v4694 = vadd.f32 %v4307, %v4624
      %v4695 = vadd.f32 %v4308, %v4629
      %v4696 = vadd.f32 %v4309, %v4632
      %v4697 = vadd.f32 %v4310, %v4637
      %v4698 = vadd.f32 %v4311, %v4640
      %v4699 = vadd.f32 %v4312, %v4645
      %v4700 = vadd.f32 %v4313, %v4648
      %v4701 = vadd.f32 %v4314, %v4653
      %v4702 = vadd.f32 %v4315, %v4656
      %v4703 = vadd.f32 %v4316, %v4661
      %v4704 = vadd.f32 %v4317, %v4664
      %v4705 = vadd.f32 %v4318, %v4669
      %v4706 = vadd.f32 %v4319, %v4672
      %v4707 = vld [vmem:[%s4320] sm:$0xf]
      %v4708 = vld [vmem:[%s4320 + $0x4] sm:$0xf]
      %v4709 = vld [vmem:[%s4320 + $0x8] sm:$0x1]
      %v4710 = vld [vmem:[%s4320 + $0xc] sm:$0xf]
      %v4711 = vld [vmem:[%s4320 + $0x10] sm:$0xf]
      %v4712 = vld [vmem:[%s4320 + $0x14] sm:$0x1]
      %v4713 = vld [vmem:[%s4320 + $0x18] sm:$0xf]
      %v4714 = vld [vmem:[%s4320 + $0x1c] sm:$0xf]
      %v4715 = vld [vmem:[%s4320 + $0x20] sm:$0x1]
      %v4716 = vld [vmem:[%s4320 + $0x24] sm:$0xf]
      %v4717 = vld [vmem:[%s4320 + $0x28] sm:$0xf]
      %v4718 = vld [vmem:[%s4320 + $0x2c] sm:$0x1]
      %v4719 = vld [vmem:[%s4320 + $0x30] sm:$0xf]
      %v4720 = vld [vmem:[%s4320 + $0x34] sm:$0xf]
      %v4721 = vld [vmem:[%s4320 + $0x38] sm:$0x1]
      %v4722 = vld [vmem:[%s4320 + $0x3c] sm:$0xf]
      %v4723 = vld [vmem:[%s4320 + $0x40] sm:$0xf]
      %v4724 = vld [vmem:[%s4320 + $0x44] sm:$0x1]
      %v4725 = vld [vmem:[%s4320 + $0x48] sm:$0xf]
      %v4726 = vld [vmem:[%s4320 + $0x4c] sm:$0xf]
      %v4727 = vld [vmem:[%s4320 + $0x50] sm:$0x1]
      %v4728 = vld [vmem:[%s4320 + $0x54] sm:$0xf]
      %v4729 = vld [vmem:[%s4320 + $0x58] sm:$0xf]
      %v4730 = vld [vmem:[%s4320 + $0x5c] sm:$0x1]
      %v4731 = vld [vmem:[%s4320 + $0x60] sm:$0xf]
      %v4732 = vld [vmem:[%s4320 + $0x64] sm:$0xf]
      %v4733 = vld [vmem:[%s4320 + $0x68] sm:$0x1]
      %v4734 = vld [vmem:[%s4320 + $0x6c] sm:$0xf]
      %v4735 = vld [vmem:[%s4320 + $0x70] sm:$0xf]
      %v4736 = vld [vmem:[%s4320 + $0x74] sm:$0x1]
      %v4737 = vld [vmem:[%s4320 + $0x78] sm:$0xf]
      %v4738 = vld [vmem:[%s4320 + $0x7c] sm:$0xf]
      %v4739 = vld [vmem:[%s4320 + $0x80] sm:$0x1]
      %v4740 = vld [vmem:[%s4320 + $0x84] sm:$0xf]
      %v4741 = vld [vmem:[%s4320 + $0x88] sm:$0xf]
      %v4742 = vld [vmem:[%s4320 + $0x8c] sm:$0x1]
      %v4743 = vld [vmem:[%s4320 + $0x90] sm:$0xf]
      %v4744 = vld [vmem:[%s4320 + $0x94] sm:$0xf]
      %v4745 = vld [vmem:[%s4320 + $0x98] sm:$0x1]
      %v4746 = vld [vmem:[%s4320 + $0x9c] sm:$0xf]
      %v4747 = vld [vmem:[%s4320 + $0xa0] sm:$0xf]
      %v4748 = vld [vmem:[%s4320 + $0xa4] sm:$0x1]
      %v4749 = vld [vmem:[%s4320 + $0xa8] sm:$0xf]
      %v4750 = vld [vmem:[%s4320 + $0xac] sm:$0xf]
      %v4751 = vld [vmem:[%s4320 + $0xb0] sm:$0x1]
      %v4752 = vld [vmem:[%s4320 + $0xb4] sm:$0xf]
      %v4753 = vld [vmem:[%s4320 + $0xb8] sm:$0xf]
      %v4754 = vld [vmem:[%s4320 + $0xbc] sm:$0x1]
      %v4756 = vshrl.u32 %v4707, 16
      %v4758 = vrot.slane %v4756, 4
      %v4759 = vshll.u32 %v4707, 16
      %v4761 = vrot.slane %v4759, 5
      %v4762 = vor.u32 %v4758, %v4761
      %v4763 = vrot.slane %v4762, 4
      %v4765 = vshll.u32 %v4708, 16
      %v4767 = vrot.slane %v4765, 5
      %v4768 = vsel %vm1216, %v4763, %v4767
      %v4769 = vshrl.u32 %v4708, 16
      %v4771 = vrot.slane %v4769, 4
      %v4772 = vor.u32 %v4771, %v4767
      %v4773 = vrot.slane %v4772, 4
      %v4775 = vshll.u32 %v4709, 16
      %v4777 = vrot.slane %v4775, 5
      %v4778 = vsel %vm1216, %v4773, %v4777
      %v4780 = vshrl.u32 %v4710, 16
      %v4782 = vrot.slane %v4780, 4
      %v4783 = vshll.u32 %v4710, 16
      %v4785 = vrot.slane %v4783, 5
      %v4786 = vor.u32 %v4782, %v4785
      %v4787 = vrot.slane %v4786, 4
      %v4789 = vshll.u32 %v4711, 16
      %v4791 = vrot.slane %v4789, 5
      %v4792 = vsel %vm1216, %v4787, %v4791
      %v4793 = vshrl.u32 %v4711, 16
      %v4795 = vrot.slane %v4793, 4
      %v4796 = vor.u32 %v4795, %v4791
      %v4797 = vrot.slane %v4796, 4
      %v4799 = vshll.u32 %v4712, 16
      %v4801 = vrot.slane %v4799, 5
      %v4802 = vsel %vm1216, %v4797, %v4801
      %v4804 = vshrl.u32 %v4713, 16
      %v4806 = vrot.slane %v4804, 4
      %v4807 = vshll.u32 %v4713, 16
      %v4809 = vrot.slane %v4807, 5
      %v4810 = vor.u32 %v4806, %v4809
      %v4811 = vrot.slane %v4810, 4
      %v4813 = vshll.u32 %v4714, 16
      %v4815 = vrot.slane %v4813, 5
      %v4816 = vsel %vm1216, %v4811, %v4815
      %v4817 = vshrl.u32 %v4714, 16
      %v4819 = vrot.slane %v4817, 4
      %v4820 = vor.u32 %v4819, %v4815
      %v4821 = vrot.slane %v4820, 4
      %v4823 = vshll.u32 %v4715, 16
      %v4825 = vrot.slane %v4823, 5
      %v4826 = vsel %vm1216, %v4821, %v4825
      %v4828 = vshrl.u32 %v4716, 16
      %v4830 = vrot.slane %v4828, 4
      %v4831 = vshll.u32 %v4716, 16
      %v4833 = vrot.slane %v4831, 5
      %v4834 = vor.u32 %v4830, %v4833
      %v4835 = vrot.slane %v4834, 4
      %v4837 = vshll.u32 %v4717, 16
      %v4839 = vrot.slane %v4837, 5
      %v4840 = vsel %vm1216, %v4835, %v4839
      %v4841 = vshrl.u32 %v4717, 16
      %v4843 = vrot.slane %v4841, 4
      %v4844 = vor.u32 %v4843, %v4839
      %v4845 = vrot.slane %v4844, 4
      %v4847 = vshll.u32 %v4718, 16
      %v4849 = vrot.slane %v4847, 5
      %v4850 = vsel %vm1216, %v4845, %v4849
      %v4852 = vshrl.u32 %v4719, 16
      %v4854 = vrot.slane %v4852, 4
      %v4855 = vshll.u32 %v4719, 16
      %v4857 = vrot.slane %v4855, 5
      %v4858 = vor.u32 %v4854, %v4857
      %v4859 = vrot.slane %v4858, 4
      %v4861 = vshll.u32 %v4720, 16
      %v4863 = vrot.slane %v4861, 5
      %v4864 = vsel %vm1216, %v4859, %v4863
      %v4865 = vshrl.u32 %v4720, 16
      %v4867 = vrot.slane %v4865, 4
      %v4868 = vor.u32 %v4867, %v4863
      %v4869 = vrot.slane %v4868, 4
      %v4871 = vshll.u32 %v4721, 16
      %v4873 = vrot.slane %v4871, 5
      %v4874 = vsel %vm1216, %v4869, %v4873
      %v4876 = vshrl.u32 %v4722, 16
      %v4878 = vrot.slane %v4876, 4
      %v4879 = vshll.u32 %v4722, 16
      %v4881 = vrot.slane %v4879, 5
      %v4882 = vor.u32 %v4878, %v4881
      %v4883 = vrot.slane %v4882, 4
      %v4885 = vshll.u32 %v4723, 16
      %v4887 = vrot.slane %v4885, 5
      %v4888 = vsel %vm1216, %v4883, %v4887
      %v4889 = vshrl.u32 %v4723, 16
      %v4891 = vrot.slane %v4889, 4
      %v4892 = vor.u32 %v4891, %v4887
      %v4893 = vrot.slane %v4892, 4
      %v4895 = vshll.u32 %v4724, 16
      %v4897 = vrot.slane %v4895, 5
      %v4898 = vsel %vm1216, %v4893, %v4897
      %v4900 = vshrl.u32 %v4725, 16
      %v4902 = vrot.slane %v4900, 4
      %v4903 = vshll.u32 %v4725, 16
      %v4905 = vrot.slane %v4903, 5
      %v4906 = vor.u32 %v4902, %v4905
      %v4907 = vrot.slane %v4906, 4
      %v4909 = vshll.u32 %v4726, 16
      %v4911 = vrot.slane %v4909, 5
      %v4912 = vsel %vm1216, %v4907, %v4911
      %v4913 = vshrl.u32 %v4726, 16
      %v4915 = vrot.slane %v4913, 4
      %v4916 = vor.u32 %v4915, %v4911
      %v4917 = vrot.slane %v4916, 4
      %v4919 = vshll.u32 %v4727, 16
      %v4921 = vrot.slane %v4919, 5
      %v4922 = vsel %vm1216, %v4917, %v4921
      %v4924 = vshrl.u32 %v4728, 16
      %v4926 = vrot.slane %v4924, 4
      %v4927 = vshll.u32 %v4728, 16
      %v4929 = vrot.slane %v4927, 5
      %v4930 = vor.u32 %v4926, %v4929
      %v4931 = vrot.slane %v4930, 4
      %v4933 = vshll.u32 %v4729, 16
      %v4935 = vrot.slane %v4933, 5
      %v4936 = vsel %vm1216, %v4931, %v4935
      %v4937 = vshrl.u32 %v4729, 16
      %v4939 = vrot.slane %v4937, 4
      %v4940 = vor.u32 %v4939, %v4935
      %v4941 = vrot.slane %v4940, 4
      %v4943 = vshll.u32 %v4730, 16
      %v4945 = vrot.slane %v4943, 5
      %v4946 = vsel %vm1216, %v4941, %v4945
      %v4948 = vshrl.u32 %v4731, 16
      %v4950 = vrot.slane %v4948, 4
      %v4951 = vshll.u32 %v4731, 16
      %v4953 = vrot.slane %v4951, 5
      %v4954 = vor.u32 %v4950, %v4953
      %v4955 = vrot.slane %v4954, 4
      %v4957 = vshll.u32 %v4732, 16
      %v4959 = vrot.slane %v4957, 5
      %v4960 = vsel %vm1216, %v4955, %v4959
      %v4961 = vshrl.u32 %v4732, 16
      %v4963 = vrot.slane %v4961, 4
      %v4964 = vor.u32 %v4963, %v4959
      %v4965 = vrot.slane %v4964, 4
      %v4967 = vshll.u32 %v4733, 16
      %v4969 = vrot.slane %v4967, 5
      %v4970 = vsel %vm1216, %v4965, %v4969
      %v4972 = vshrl.u32 %v4734, 16
      %v4974 = vrot.slane %v4972, 4
      %v4975 = vshll.u32 %v4734, 16
      %v4977 = vrot.slane %v4975, 5
      %v4978 = vor.u32 %v4974, %v4977
      %v4979 = vrot.slane %v4978, 4
      %v4981 = vshll.u32 %v4735, 16
      %v4983 = vrot.slane %v4981, 5
      %v4984 = vsel %vm1216, %v4979, %v4983
      %v4985 = vshrl.u32 %v4735, 16
      %v4987 = vrot.slane %v4985, 4
      %v4988 = vor.u32 %v4987, %v4983
      %v4989 = vrot.slane %v4988, 4
      %v4991 = vshll.u32 %v4736, 16
      %v4993 = vrot.slane %v4991, 5
      %v4994 = vsel %vm1216, %v4989, %v4993
      %v4996 = vshrl.u32 %v4737, 16
      %v4998 = vrot.slane %v4996, 4
      %v4999 = vshll.u32 %v4737, 16
      %v5001 = vrot.slane %v4999, 5
      %v5002 = vor.u32 %v4998, %v5001
      %v5003 = vrot.slane %v5002, 4
      %v5005 = vshll.u32 %v4738, 16
      %v5007 = vrot.slane %v5005, 5
      %v5008 = vsel %vm1216, %v5003, %v5007
      %v5009 = vshrl.u32 %v4738, 16
      %v5011 = vrot.slane %v5009, 4
      %v5012 = vor.u32 %v5011, %v5007
      %v5013 = vrot.slane %v5012, 4
      %v5015 = vshll.u32 %v4739, 16
      %v5017 = vrot.slane %v5015, 5
      %v5018 = vsel %vm1216, %v5013, %v5017
      %v5020 = vshrl.u32 %v4740, 16
      %v5022 = vrot.slane %v5020, 4
      %v5023 = vshll.u32 %v4740, 16
      %v5025 = vrot.slane %v5023, 5
      %v5026 = vor.u32 %v5022, %v5025
      %v5027 = vrot.slane %v5026, 4
      %v5029 = vshll.u32 %v4741, 16
      %v5031 = vrot.slane %v5029, 5
      %v5032 = vsel %vm1216, %v5027, %v5031
      %v5033 = vshrl.u32 %v4741, 16
      %v5035 = vrot.slane %v5033, 4
      %v5036 = vor.u32 %v5035, %v5031
      %v5037 = vrot.slane %v5036, 4
      %v5039 = vshll.u32 %v4742, 16
      %v5041 = vrot.slane %v5039, 5
      %v5042 = vsel %vm1216, %v5037, %v5041
      %v5044 = vshrl.u32 %v4743, 16
      %v5046 = vrot.slane %v5044, 4
      %v5047 = vshll.u32 %v4743, 16
      %v5049 = vrot.slane %v5047, 5
      %v5050 = vor.u32 %v5046, %v5049
      %v5051 = vrot.slane %v5050, 4
      %v5053 = vshll.u32 %v4744, 16
      %v5055 = vrot.slane %v5053, 5
      %v5056 = vsel %vm1216, %v5051, %v5055
      %v5057 = vshrl.u32 %v4744, 16
      %v5059 = vrot.slane %v5057, 4
      %v5060 = vor.u32 %v5059, %v5055
      %v5061 = vrot.slane %v5060, 4
      %v5063 = vshll.u32 %v4745, 16
      %v5065 = vrot.slane %v5063, 5
      %v5066 = vsel %vm1216, %v5061, %v5065
      %v5068 = vshrl.u32 %v4746, 16
      %v5070 = vrot.slane %v5068, 4
      %v5071 = vshll.u32 %v4746, 16
      %v5073 = vrot.slane %v5071, 5
      %v5074 = vor.u32 %v5070, %v5073
      %v5075 = vrot.slane %v5074, 4
      %v5077 = vshll.u32 %v4747, 16
      %v5079 = vrot.slane %v5077, 5
      %v5080 = vsel %vm1216, %v5075, %v5079
      %v5081 = vshrl.u32 %v4747, 16
      %v5083 = vrot.slane %v5081, 4
      %v5084 = vor.u32 %v5083, %v5079
      %v5085 = vrot.slane %v5084, 4
      %v5087 = vshll.u32 %v4748, 16
      %v5089 = vrot.slane %v5087, 5
      %v5090 = vsel %vm1216, %v5085, %v5089
      %v5092 = vshrl.u32 %v4749, 16
      %v5094 = vrot.slane %v5092, 4
      %v5095 = vshll.u32 %v4749, 16
      %v5097 = vrot.slane %v5095, 5
      %v5098 = vor.u32 %v5094, %v5097
      %v5099 = vrot.slane %v5098, 4
      %v5101 = vshll.u32 %v4750, 16
      %v5103 = vrot.slane %v5101, 5
      %v5104 = vsel %vm1216, %v5099, %v5103
      %v5105 = vshrl.u32 %v4750, 16
      %v5107 = vrot.slane %v5105, 4
      %v5108 = vor.u32 %v5107, %v5103
      %v5109 = vrot.slane %v5108, 4
      %v5111 = vshll.u32 %v4751, 16
      %v5113 = vrot.slane %v5111, 5
      %v5114 = vsel %vm1216, %v5109, %v5113
      %v5116 = vshrl.u32 %v4752, 16
      %v5118 = vrot.slane %v5116, 4
      %v5119 = vshll.u32 %v4752, 16
      %v5121 = vrot.slane %v5119, 5
      %v5122 = vor.u32 %v5118, %v5121
      %v5123 = vrot.slane %v5122, 4
      %v5125 = vshll.u32 %v4753, 16
      %v5127 = vrot.slane %v5125, 5
      %v5128 = vsel %vm1216, %v5123, %v5127
      %v5129 = vshrl.u32 %v4753, 16
      %v5131 = vrot.slane %v5129, 4
      %v5132 = vor.u32 %v5131, %v5127
      %v5133 = vrot.slane %v5132, 4
      %v5135 = vshll.u32 %v4754, 16
      %v5137 = vrot.slane %v5135, 5
      %v5138 = vsel %vm1216, %v5133, %v5137
      %s5139 = scalar_lea.vmem %s2, 448
      %v5140 = vld [vmem:[%s5139] sm:$0xf]
      %v5141 = vld [vmem:[%s5139 + $0x4] sm:$0xf]
      %v5142 = vld [vmem:[%s5139 + $0x8] sm:$0xf]
      %v5143 = vld [vmem:[%s5139 + $0xc] sm:$0xf]
      %v5144 = vld [vmem:[%s5139 + $0x10] sm:$0xf]
      %v5145 = vld [vmem:[%s5139 + $0x14] sm:$0xf]
      %v5146 = vld [vmem:[%s5139 + $0x18] sm:$0xf]
      %v5147 = vld [vmem:[%s5139 + $0x1c] sm:$0xf]
      %v5148 = vld [vmem:[%s5139 + $0x20] sm:$0xf]
      %v5149 = vld [vmem:[%s5139 + $0x24] sm:$0xf]
      %v5150 = vld [vmem:[%s5139 + $0x28] sm:$0xf]
      %v5151 = vld [vmem:[%s5139 + $0x2c] sm:$0xf]
      %v5152 = vld [vmem:[%s5139 + $0x30] sm:$0xf]
      %v5153 = vld [vmem:[%s5139 + $0x34] sm:$0xf]
      %v5154 = vld [vmem:[%s5139 + $0x38] sm:$0xf]
      %v5155 = vld [vmem:[%s5139 + $0x3c] sm:$0xf]
      %v5156 = vunpack.c.l.b16 %v4768
      %v5157 = vunpack.c.l.b16 %v4778
      %v5158 = vunpack.c.l.b16 %v4792
      %v5159 = vunpack.c.l.b16 %v4802
      %v5160 = vunpack.c.l.b16 %v4816
      %v5161 = vunpack.c.l.b16 %v4826
      %v5162 = vunpack.c.l.b16 %v4840
      %v5163 = vunpack.c.l.b16 %v4850
      %v5164 = vunpack.c.l.b16 %v4864
      %v5165 = vunpack.c.l.b16 %v4874
      %v5166 = vunpack.c.l.b16 %v4888
      %v5167 = vunpack.c.l.b16 %v4898
      %v5168 = vunpack.c.l.b16 %v4912
      %v5169 = vunpack.c.l.b16 %v4922
      %v5170 = vunpack.c.l.b16 %v4936
      %v5171 = vunpack.c.l.b16 %v4946
      %v5172 = vunpack.c.l.b16 %v4960
      %v5173 = vunpack.c.l.b16 %v4970
      %v5174 = vunpack.c.l.b16 %v4984
      %v5175 = vunpack.c.l.b16 %v4994
      %v5176 = vunpack.c.l.b16 %v5008
      %v5177 = vunpack.c.l.b16 %v5018
      %v5178 = vunpack.c.l.b16 %v5032
      %v5179 = vunpack.c.l.b16 %v5042
      %v5180 = vunpack.c.l.b16 %v5056
      %v5181 = vunpack.c.l.b16 %v5066
      %v5182 = vunpack.c.l.b16 %v5080
      %v5183 = vunpack.c.l.b16 %v5090
      %v5184 = vunpack.c.l.b16 %v5104
      %v5185 = vunpack.c.l.b16 %v5114
      %v5186 = vunpack.c.l.b16 %v5128
      %v5187 = vunpack.c.l.b16 %v5138
      %v5188 = vpack.c.b16 %v5157, %v5156
      %v5189 = vpack.c.b16 %v5159, %v5158
      %v5190 = vpack.c.b16 %v5161, %v5160
      %v5191 = vpack.c.b16 %v5163, %v5162
      %v5192 = vpack.c.b16 %v5165, %v5164
      %v5193 = vpack.c.b16 %v5167, %v5166
      %v5194 = vpack.c.b16 %v5169, %v5168
      %v5195 = vpack.c.b16 %v5171, %v5170
      %v5196 = vpack.c.b16 %v5173, %v5172
      %v5197 = vpack.c.b16 %v5175, %v5174
      %v5198 = vpack.c.b16 %v5177, %v5176
      %v5199 = vpack.c.b16 %v5179, %v5178
      %v5200 = vpack.c.b16 %v5181, %v5180
      %v5201 = vpack.c.b16 %v5183, %v5182
      %v5202 = vpack.c.b16 %v5185, %v5184
      %v5203 = vpack.c.b16 %v5187, %v5186
      %v5236 = vunpack.c.l.b16 %v5140
      %v5237 = vunpack.c.l.b16 %v5141
      %v5238 = vunpack.c.l.b16 %v5142
      %v5239 = vunpack.c.l.b16 %v5143
      %v5240 = vunpack.c.l.b16 %v5144
      %v5241 = vunpack.c.l.b16 %v5145
      %v5242 = vunpack.c.l.b16 %v5146
      %v5243 = vunpack.c.l.b16 %v5147
      %v5244 = vunpack.c.l.b16 %v5148
      %v5245 = vunpack.c.l.b16 %v5149
      %v5246 = vunpack.c.l.b16 %v5150
      %v5247 = vunpack.c.l.b16 %v5151
      %v5248 = vunpack.c.l.b16 %v5152
      %v5249 = vunpack.c.l.b16 %v5153
      %v5250 = vunpack.c.l.b16 %v5154
      %v5251 = vunpack.c.l.b16 %v5155
      %v5252 = vpack.c.b16 %v5237, %v5236
      %v5253 = vpack.c.b16 %v5239, %v5238
      %v5254 = vpack.c.b16 %v5241, %v5240
      %v5255 = vpack.c.b16 %v5243, %v5242
      %v5256 = vpack.c.b16 %v5245, %v5244
      %v5257 = vpack.c.b16 %v5247, %v5246
      %v5258 = vpack.c.b16 %v5249, %v5248
      %v5259 = vpack.c.b16 %v5251, %v5250
      %5268 = vmatprep.subr.bf16.mxu0 0
      %5269 = vmatpush1.bf16.msra.mxu0 %v5252
      %5270 = vmatprep.subr.bf16.mxu0 0
      %5271 = vmatpush1.bf16.msra.mxu0 %v5253
      %5272 = vmatprep.subr.bf16.mxu0 0
      %5273 = vmatpush1.bf16.msra.mxu0 %v5254
      %5274 = vmatprep.subr.bf16.mxu0 0
      %5275 = vmatpush1.bf16.msra.mxu0 %v5255
      %5276 = vmatprep.subr.bf16.mxu0 0
      %5277 = vmatpush1.bf16.msra.mxu0 %v5256
      %5278 = vmatprep.subr.bf16.mxu0 0
      %5279 = vmatpush1.bf16.msra.mxu0 %v5257
      %5280 = vmatprep.subr.bf16.mxu0 0
      %5281 = vmatpush1.bf16.msra.mxu0 %v5258
      %5282 = vmatprep.subr.bf16.mxu0 0
      %5283 = vmatpush1.bf16.msra.mxu0 %v5259
      %5284 = vmatprep.subr.bf16.mxu0 0
      %5285 = vmatpush1.bf16.msra.mxu0 0
      %5286 = vmatprep.subr.bf16.mxu0 0
      %5287 = vmatpush1.bf16.msra.mxu0 0
      %5288 = vmatprep.subr.bf16.mxu0 0
      %5289 = vmatpush1.bf16.msra.mxu0 0
      %5290 = vmatprep.subr.bf16.mxu0 0
      %5291 = vmatpush1.bf16.msra.mxu0 0
      %5292 = vmatprep.subr.bf16.mxu0 0
      %5293 = vmatpush1.bf16.msra.mxu0 0
      %5294 = vmatprep.subr.bf16.mxu0 0
      %5295 = vmatpush1.bf16.msra.mxu0 0
      %5296 = vmatprep.subr.bf16.mxu0 0
      %5297 = vmatpush1.bf16.msra.mxu0 0
      %5298 = vmatprep.subr.bf16.mxu0 0
      %5299 = vmatpush1.bf16.msra.mxu0 0
      %5300 = vmatprep.mubr.bf16.mxu0 0
      %5301 = vmatmul.mubr.bf16.gmra.mrb[0].mxu0 %v5188
      %v5302 = vpop.f32.mrb[0].mxu0
      %v5303 = vadd.f32 0.0, %v5302
      %v5304 = vpop.f32.mrb[0].mxu0
      %v5305 = vpop.f32.mrb[0].mxu0
      %v5306 = vadd.f32 0.0, %v5305
      %v5307 = vpop.f32.mrb[0].mxu0
      %5308 = vmatprep.mubr.bf16.mxu0 0
      %5309 = vmatmul.mubr.bf16.gmra.mrb[0].mxu0 %v5189
      %v5310 = vpop.f32.mrb[0].mxu0
      %v5311 = vadd.f32 0.0, %v5310
      %v5312 = vpop.f32.mrb[0].mxu0
      %v5313 = vpop.f32.mrb[0].mxu0
      %v5314 = vadd.f32 0.0, %v5313
      %v5315 = vpop.f32.mrb[0].mxu0
      %5316 = vmatprep.mubr.bf16.mxu0 0
      %5317 = vmatmul.mubr.bf16.gmra.mrb[0].mxu0 %v5190
      %v5318 = vpop.f32.mrb[0].mxu0
      %v5319 = vadd.f32 0.0, %v5318
      %v5320 = vpop.f32.mrb[0].mxu0
      %v5321 = vpop.f32.mrb[0].mxu0
      %v5322 = vadd.f32 0.0, %v5321
      %v5323 = vpop.f32.mrb[0].mxu0
      %5324 = vmatprep.mubr.bf16.mxu0 0
      %5325 = vmatmul.mubr.bf16.gmra.mrb[0].mxu0 %v5191
      %v5326 = vpop.f32.mrb[0].mxu0
      %v5327 = vadd.f32 0.0, %v5326
      %v5328 = vpop.f32.mrb[0].mxu0
      %v5329 = vpop.f32.mrb[0].mxu0
      %v5330 = vadd.f32 0.0, %v5329
      %v5331 = vpop.f32.mrb[0].mxu0
      %5332 = vmatprep.mubr.bf16.mxu0 0
      %5333 = vmatmul.mubr.bf16.gmra.mrb[0].mxu0 %v5192
      %v5334 = vpop.f32.mrb[0].mxu0
      %v5335 = vadd.f32 0.0, %v5334
      %v5336 = vpop.f32.mrb[0].mxu0
      %v5337 = vpop.f32.mrb[0].mxu0
      %v5338 = vadd.f32 0.0, %v5337
      %v5339 = vpop.f32.mrb[0].mxu0
      %5340 = vmatprep.mubr.bf16.mxu0 0
      %5341 = vmatmul.mubr.bf16.gmra.mrb[0].mxu0 %v5193
      %v5342 = vpop.f32.mrb[0].mxu0
      %v5343 = vadd.f32 0.0, %v5342
      %v5344 = vpop.f32.mrb[0].mxu0
      %v5345 = vpop.f32.mrb[0].mxu0
      %v5346 = vadd.f32 0.0, %v5345
      %v5347 = vpop.f32.mrb[0].mxu0
      %5348 = vmatprep.mubr.bf16.mxu0 0
      %5349 = vmatmul.mubr.bf16.gmra.mrb[0].mxu0 %v5194
      %v5350 = vpop.f32.mrb[0].mxu0
      %v5351 = vadd.f32 0.0, %v5350
      %v5352 = vpop.f32.mrb[0].mxu0
      %v5353 = vpop.f32.mrb[0].mxu0
      %v5354 = vadd.f32 0.0, %v5353
      %v5355 = vpop.f32.mrb[0].mxu0
      %5356 = vmatprep.mubr.bf16.mxu0 0
      %5357 = vmatmul.mubr.bf16.gmra.mrb[0].mxu0 %v5195
      %v5358 = vpop.f32.mrb[0].mxu0
      %v5359 = vadd.f32 0.0, %v5358
      %v5360 = vpop.f32.mrb[0].mxu0
      %v5361 = vpop.f32.mrb[0].mxu0
      %v5362 = vadd.f32 0.0, %v5361
      %v5363 = vpop.f32.mrb[0].mxu0
      %5364 = vmatprep.mubr.bf16.mxu0 0
      %5365 = vmatmul.mubr.bf16.gmra.mrb[0].mxu0 %v5196
      %v5366 = vpop.f32.mrb[0].mxu0
      %v5367 = vadd.f32 0.0, %v5366
      %v5368 = vpop.f32.mrb[0].mxu0
      %v5369 = vpop.f32.mrb[0].mxu0
      %v5370 = vadd.f32 0.0, %v5369
      %v5371 = vpop.f32.mrb[0].mxu0
      %5372 = vmatprep.mubr.bf16.mxu0 0
      %5373 = vmatmul.mubr.bf16.gmra.mrb[0].mxu0 %v5197
      %v5374 = vpop.f32.mrb[0].mxu0
      %v5375 = vadd.f32 0.0, %v5374
      %v5376 = vpop.f32.mrb[0].mxu0
      %v5377 = vpop.f32.mrb[0].mxu0
      %v5378 = vadd.f32 0.0, %v5377
      %v5379 = vpop.f32.mrb[0].mxu0
      %5380 = vmatprep.mubr.bf16.mxu0 0
      %5381 = vmatmul.mubr.bf16.gmra.mrb[0].mxu0 %v5198
      %v5382 = vpop.f32.mrb[0].mxu0
      %v5383 = vadd.f32 0.0, %v5382
      %v5384 = vpop.f32.mrb[0].mxu0
      %v5385 = vpop.f32.mrb[0].mxu0
      %v5386 = vadd.f32 0.0, %v5385
      %v5387 = vpop.f32.mrb[0].mxu0
      %5388 = vmatprep.mubr.bf16.mxu0 0
      %5389 = vmatmul.mubr.bf16.gmra.mrb[0].mxu0 %v5199
      %v5390 = vpop.f32.mrb[0].mxu0
      %v5391 = vadd.f32 0.0, %v5390
      %v5392 = vpop.f32.mrb[0].mxu0
      %v5393 = vpop.f32.mrb[0].mxu0
      %v5394 = vadd.f32 0.0, %v5393
      %v5395 = vpop.f32.mrb[0].mxu0
      %5396 = vmatprep.mubr.bf16.mxu0 0
      %5397 = vmatmul.mubr.bf16.gmra.mrb[0].mxu0 %v5200
      %v5398 = vpop.f32.mrb[0].mxu0
      %v5399 = vadd.f32 0.0, %v5398
      %v5400 = vpop.f32.mrb[0].mxu0
      %v5401 = vpop.f32.mrb[0].mxu0
      %v5402 = vadd.f32 0.0, %v5401
      %v5403 = vpop.f32.mrb[0].mxu0
      %5404 = vmatprep.mubr.bf16.mxu0 0
      %5405 = vmatmul.mubr.bf16.gmra.mrb[0].mxu0 %v5201
      %v5406 = vpop.f32.mrb[0].mxu0
      %v5407 = vadd.f32 0.0, %v5406
      %v5408 = vpop.f32.mrb[0].mxu0
      %v5409 = vpop.f32.mrb[0].mxu0
      %v5410 = vadd.f32 0.0, %v5409
      %v5411 = vpop.f32.mrb[0].mxu0
      %5412 = vmatprep.mubr.bf16.mxu0 0
      %5413 = vmatmul.mubr.bf16.gmra.mrb[0].mxu0 %v5202
      %v5414 = vpop.f32.mrb[0].mxu0
      %v5415 = vadd.f32 0.0, %v5414
      %v5416 = vpop.f32.mrb[0].mxu0
      %v5417 = vpop.f32.mrb[0].mxu0
      %v5418 = vadd.f32 0.0, %v5417
      %v5419 = vpop.f32.mrb[0].mxu0
      %5420 = vmatprep.mubr.bf16.mxu0 0
      %5421 = vmatmul.mubr.bf16.gmra.mrb[0].mxu0 %v5203
      %v5422 = vpop.f32.mrb[0].mxu0
      %v5423 = vadd.f32 0.0, %v5422
      %v5424 = vpop.f32.mrb[0].mxu0
      %v5425 = vpop.f32.mrb[0].mxu0
      %v5426 = vadd.f32 0.0, %v5425
      %v5427 = vpop.f32.mrb[0].mxu0
      %5428 = vdwg.mxu0
      %v5429 = vadd.f32 %v4675, %v5303
      %v5430 = vadd.f32 %v4676, %v5306
      %v5431 = vadd.f32 %v4677, %v5311
      %v5432 = vadd.f32 %v4678, %v5314
      %v5433 = vadd.f32 %v4679, %v5319
      %v5434 = vadd.f32 %v4680, %v5322
      %v5435 = vadd.f32 %v4681, %v5327
      %v5436 = vadd.f32 %v4682, %v5330
      %v5437 = vadd.f32 %v4683, %v5335
      %v5438 = vadd.f32 %v4684, %v5338
      %v5439 = vadd.f32 %v4685, %v5343
      %v5440 = vadd.f32 %v4686, %v5346
      %v5441 = vadd.f32 %v4687, %v5351
      %v5442 = vadd.f32 %v4688, %v5354
      %v5443 = vadd.f32 %v4689, %v5359
      %v5444 = vadd.f32 %v4690, %v5362
      %v5445 = vadd.f32 %v4691, %v5367
      %v5446 = vadd.f32 %v4692, %v5370
      %v5447 = vadd.f32 %v4693, %v5375
      %v5448 = vadd.f32 %v4694, %v5378
      %v5449 = vadd.f32 %v4695, %v5383
      %v5450 = vadd.f32 %v4696, %v5386
      %v5451 = vadd.f32 %v4697, %v5391
      %v5452 = vadd.f32 %v4698, %v5394
      %v5453 = vadd.f32 %v4699, %v5399
      %v5454 = vadd.f32 %v4700, %v5402
      %v5455 = vadd.f32 %v4701, %v5407
      %v5456 = vadd.f32 %v4702, %v5410
      %v5457 = vadd.f32 %v4703, %v5415
      %v5458 = vadd.f32 %v4704, %v5418
      %v5459 = vadd.f32 %v4705, %v5423
      %v5460 = vadd.f32 %v4706, %v5426
      %v5461 = vld [vmem:[%s4320] sm:$0xe]
      %v5462 = vld [vmem:[%s4320 + $0xc] sm:$0xe]
      %v5463 = vld [vmem:[%s4320 + $0x18] sm:$0xe]
      %v5464 = vld [vmem:[%s4320 + $0x24] sm:$0xe]
      %v5465 = vld [vmem:[%s4320 + $0x30] sm:$0xe]
      %v5466 = vld [vmem:[%s4320 + $0x3c] sm:$0xe]
      %v5467 = vld [vmem:[%s4320 + $0x48] sm:$0xe]
      %v5468 = vld [vmem:[%s4320 + $0x54] sm:$0xe]
      %v5469 = vld [vmem:[%s4320 + $0x60] sm:$0xe]
      %v5470 = vld [vmem:[%s4320 + $0x6c] sm:$0xe]
      %v5471 = vld [vmem:[%s4320 + $0x78] sm:$0xe]
      %v5472 = vld [vmem:[%s4320 + $0x84] sm:$0xe]
      %v5473 = vld [vmem:[%s4320 + $0x90] sm:$0xe]
      %v5474 = vld [vmem:[%s4320 + $0x9c] sm:$0xe]
      %v5475 = vld [vmem:[%s4320 + $0xa8] sm:$0xe]
      %v5476 = vld [vmem:[%s4320 + $0xb4] sm:$0xe]
      %v5525 = vrot.slane %v5461, 5
      %v5526 = vrot.slane %v5525, 4
      %v5527 = vrot.slane %v4708, 5
      %v5528 = vsel %vm2246, %v5526, %v5527
      %v5529 = vrot.slane %v5527, 4
      %v5530 = vrot.slane %v4709, 5
      %v5531 = vsel %vm2246, %v5529, %v5530
      %v5532 = vrot.slane %v5462, 5
      %v5533 = vrot.slane %v5532, 4
      %v5534 = vrot.slane %v4711, 5
      %v5535 = vsel %vm2246, %v5533, %v5534
      %v5536 = vrot.slane %v5534, 4
      %v5537 = vrot.slane %v4712, 5
      %v5538 = vsel %vm2246, %v5536, %v5537
      %v5539 = vrot.slane %v5463, 5
      %v5540 = vrot.slane %v5539, 4
      %v5541 = vrot.slane %v4714, 5
      %v5542 = vsel %vm2246, %v5540, %v5541
      %v5543 = vrot.slane %v5541, 4
      %v5544 = vrot.slane %v4715, 5
      %v5545 = vsel %vm2246, %v5543, %v5544
      %v5546 = vrot.slane %v5464, 5
      %v5547 = vrot.slane %v5546, 4
      %v5548 = vrot.slane %v4717, 5
      %v5549 = vsel %vm2246, %v5547, %v5548
      %v5550 = vrot.slane %v5548, 4
      %v5551 = vrot.slane %v4718, 5
      %v5552 = vsel %vm2246, %v5550, %v5551
      %v5553 = vrot.slane %v5465, 5
      %v5554 = vrot.slane %v5553, 4
      %v5555 = vrot.slane %v4720, 5
      %v5556 = vsel %vm2246, %v5554, %v5555
      %v5557 = vrot.slane %v5555, 4
      %v5558 = vrot.slane %v4721, 5
      %v5559 = vsel %vm2246, %v5557, %v5558
      %v5560 = vrot.slane %v5466, 5
      %v5561 = vrot.slane %v5560, 4
      %v5562 = vrot.slane %v4723, 5
      %v5563 = vsel %vm2246, %v5561, %v5562
      %v5564 = vrot.slane %v5562, 4
      %v5565 = vrot.slane %v4724, 5
      %v5566 = vsel %vm2246, %v5564, %v5565
      %v5567 = vrot.slane %v5467, 5
      %v5568 = vrot.slane %v5567, 4
      %v5569 = vrot.slane %v4726, 5
      %v5570 = vsel %vm2246, %v5568, %v5569
      %v5571 = vrot.slane %v5569, 4
      %v5572 = vrot.slane %v4727, 5
      %v5573 = vsel %vm2246, %v5571, %v5572
      %v5574 = vrot.slane %v5468, 5
      %v5575 = vrot.slane %v5574, 4
      %v5576 = vrot.slane %v4729, 5
      %v5577 = vsel %vm2246, %v5575, %v5576
      %v5578 = vrot.slane %v5576, 4
      %v5579 = vrot.slane %v4730, 5
      %v5580 = vsel %vm2246, %v5578, %v5579
      %v5581 = vrot.slane %v5469, 5
      %v5582 = vrot.slane %v5581, 4
      %v5583 = vrot.slane %v4732, 5
      %v5584 = vsel %vm2246, %v5582, %v5583
      %v5585 = vrot.slane %v5583, 4
      %v5586 = vrot.slane %v4733, 5
      %v5587 = vsel %vm2246, %v5585, %v5586
      %v5588 = vrot.slane %v5470, 5
      %v5589 = vrot.slane %v5588, 4
      %v5590 = vrot.slane %v4735, 5
      %v5591 = vsel %vm2246, %v5589, %v5590
      %v5592 = vrot.slane %v5590, 4
      %v5593 = vrot.slane %v4736, 5
      %v5594 = vsel %vm2246, %v5592, %v5593
      %v5595 = vrot.slane %v5471, 5
      %v5596 = vrot.slane %v5595, 4
      %v5597 = vrot.slane %v4738, 5
      %v5598 = vsel %vm2246, %v5596, %v5597
      %v5599 = vrot.slane %v5597, 4
      %v5600 = vrot.slane %v4739, 5
      %v5601 = vsel %vm2246, %v5599, %v5600
      %v5602 = vrot.slane %v5472, 5
      %v5603 = vrot.slane %v5602, 4
      %v5604 = vrot.slane %v4741, 5
      %v5605 = vsel %vm2246, %v5603, %v5604
      %v5606 = vrot.slane %v5604, 4
      %v5607 = vrot.slane %v4742, 5
      %v5608 = vsel %vm2246, %v5606, %v5607
      %v5609 = vrot.slane %v5473, 5
      %v5610 = vrot.slane %v5609, 4
      %v5611 = vrot.slane %v4744, 5
      %v5612 = vsel %vm2246, %v5610, %v5611
      %v5613 = vrot.slane %v5611, 4
      %v5614 = vrot.slane %v4745, 5
      %v5615 = vsel %vm2246, %v5613, %v5614
      %v5616 = vrot.slane %v5474, 5
      %v5617 = vrot.slane %v5616, 4
      %v5618 = vrot.slane %v4747, 5
      %v5619 = vsel %vm2246, %v5617, %v5618
      %v5620 = vrot.slane %v5618, 4
      %v5621 = vrot.slane %v4748, 5
      %v5622 = vsel %vm2246, %v5620, %v5621
      %v5623 = vrot.slane %v5475, 5
      %v5624 = vrot.slane %v5623, 4
      %v5625 = vrot.slane %v4750, 5
      %v5626 = vsel %vm2246, %v5624, %v5625
      %v5627 = vrot.slane %v5625, 4
      %v5628 = vrot.slane %v4751, 5
      %v5629 = vsel %vm2246, %v5627, %v5628
      %v5630 = vrot.slane %v5476, 5
      %v5631 = vrot.slane %v5630, 4
      %v5632 = vrot.slane %v4753, 5
      %v5633 = vsel %vm2246, %v5631, %v5632
      %v5634 = vrot.slane %v5632, 4
      %v5635 = vrot.slane %v4754, 5
      %v5636 = vsel %vm2246, %v5634, %v5635
      %s5637 = scalar_lea.vmem %s2, 512
      %v5638 = vld [vmem:[%s5637] sm:$0xf]
      %v5639 = vld [vmem:[%s5637 + $0x4] sm:$0xf]
      %v5640 = vld [vmem:[%s5637 + $0x8] sm:$0xf]
      %v5641 = vld [vmem:[%s5637 + $0xc] sm:$0xf]
      %v5642 = vld [vmem:[%s5637 + $0x10] sm:$0xf]
      %v5643 = vld [vmem:[%s5637 + $0x14] sm:$0xf]
      %v5644 = vld [vmem:[%s5637 + $0x18] sm:$0xf]
      %v5645 = vld [vmem:[%s5637 + $0x1c] sm:$0xf]
      %v5646 = vld [vmem:[%s5637 + $0x20] sm:$0xf]
      %v5647 = vld [vmem:[%s5637 + $0x24] sm:$0xf]
      %v5648 = vld [vmem:[%s5637 + $0x28] sm:$0xf]
      %v5649 = vld [vmem:[%s5637 + $0x2c] sm:$0xf]
      %v5650 = vld [vmem:[%s5637 + $0x30] sm:$0xf]
      %v5651 = vld [vmem:[%s5637 + $0x34] sm:$0xf]
      %v5652 = vld [vmem:[%s5637 + $0x38] sm:$0xf]
      %v5653 = vld [vmem:[%s5637 + $0x3c] sm:$0xf]
      %v5654 = vunpack.c.l.b16 %v5528
      %v5655 = vunpack.c.l.b16 %v5531
      %v5656 = vunpack.c.l.b16 %v5535
      %v5657 = vunpack.c.l.b16 %v5538
      %v5658 = vunpack.c.l.b16 %v5542
      %v5659 = vunpack.c.l.b16 %v5545
      %v5660 = vunpack.c.l.b16 %v5549
      %v5661 = vunpack.c.l.b16 %v5552
      %v5662 = vunpack.c.l.b16 %v5556
      %v5663 = vunpack.c.l.b16 %v5559
      %v5664 = vunpack.c.l.b16 %v5563
      %v5665 = vunpack.c.l.b16 %v5566
      %v5666 = vunpack.c.l.b16 %v5570
      %v5667 = vunpack.c.l.b16 %v5573
      %v5668 = vunpack.c.l.b16 %v5577
      %v5669 = vunpack.c.l.b16 %v5580
      %v5670 = vunpack.c.l.b16 %v5584
      %v5671 = vunpack.c.l.b16 %v5587
      %v5672 = vunpack.c.l.b16 %v5591
      %v5673 = vunpack.c.l.b16 %v5594
      %v5674 = vunpack.c.l.b16 %v5598
      %v5675 = vunpack.c.l.b16 %v5601
      %v5676 = vunpack.c.l.b16 %v5605
      %v5677 = vunpack.c.l.b16 %v5608
      %v5678 = vunpack.c.l.b16 %v5612
      %v5679 = vunpack.c.l.b16 %v5615
      %v5680 = vunpack.c.l.b16 %v5619
      %v5681 = vunpack.c.l.b16 %v5622
      %v5682 = vunpack.c.l.b16 %v5626
      %v5683 = vunpack.c.l.b16 %v5629
      %v5684 = vunpack.c.l.b16 %v5633
      %v5685 = vunpack.c.l.b16 %v5636
      %v5686 = vpack.c.b16 %v5655, %v5654
      %v5687 = vpack.c.b16 %v5657, %v5656
      %v5688 = vpack.c.b16 %v5659, %v5658
      %v5689 = vpack.c.b16 %v5661, %v5660
      %v5690 = vpack.c.b16 %v5663, %v5662
      %v5691 = vpack.c.b16 %v5665, %v5664
      %v5692 = vpack.c.b16 %v5667, %v5666
      %v5693 = vpack.c.b16 %v5669, %v5668
      %v5694 = vpack.c.b16 %v5671, %v5670
      %v5695 = vpack.c.b16 %v5673, %v5672
      %v5696 = vpack.c.b16 %v5675, %v5674
      %v5697 = vpack.c.b16 %v5677, %v5676
      %v5698 = vpack.c.b16 %v5679, %v5678
      %v5699 = vpack.c.b16 %v5681, %v5680
      %v5700 = vpack.c.b16 %v5683, %v5682
      %v5701 = vpack.c.b16 %v5685, %v5684
      %v5734 = vunpack.c.l.b16 %v5638
      %v5735 = vunpack.c.l.b16 %v5639
      %v5736 = vunpack.c.l.b16 %v5640
      %v5737 = vunpack.c.l.b16 %v5641
      %v5738 = vunpack.c.l.b16 %v5642
      %v5739 = vunpack.c.l.b16 %v5643
      %v5740 = vunpack.c.l.b16 %v5644
      %v5741 = vunpack.c.l.b16 %v5645
      %v5742 = vunpack.c.l.b16 %v5646
      %v5743 = vunpack.c.l.b16 %v5647
      %v5744 = vunpack.c.l.b16 %v5648
      %v5745 = vunpack.c.l.b16 %v5649
      %v5746 = vunpack.c.l.b16 %v5650
      %v5747 = vunpack.c.l.b16 %v5651
      %v5748 = vunpack.c.l.b16 %v5652
      %v5749 = vunpack.c.l.b16 %v5653
      %v5750 = vpack.c.b16 %v5735, %v5734
      %v5751 = vpack.c.b16 %v5737, %v5736
      %v5752 = vpack.c.b16 %v5739, %v5738
      %v5753 = vpack.c.b16 %v5741, %v5740
      %v5754 = vpack.c.b16 %v5743, %v5742
      %v5755 = vpack.c.b16 %v5745, %v5744
      %v5756 = vpack.c.b16 %v5747, %v5746
      %v5757 = vpack.c.b16 %v5749, %v5748
      %5766 = vmatprep.subr.bf16.mxu0 0
      %5767 = vmatpush1.bf16.msra.mxu0 %v5750
      %5768 = vmatprep.subr.bf16.mxu0 0
      %5769 = vmatpush1.bf16.msra.mxu0 %v5751
      %5770 = vmatprep.subr.bf16.mxu0 0
      %5771 = vmatpush1.bf16.msra.mxu0 %v5752
      %5772 = vmatprep.subr.bf16.mxu0 0
      %5773 = vmatpush1.bf16.msra.mxu0 %v5753
      %5774 = vmatprep.subr.bf16.mxu0 0
      %5775 = vmatpush1.bf16.msra.mxu0 %v5754
      %5776 = vmatprep.subr.bf16.mxu0 0
      %5777 = vmatpush1.bf16.msra.mxu0 %v5755
      %5778 = vmatprep.subr.bf16.mxu0 0
      %5779 = vmatpush1.bf16.msra.mxu0 %v5756
      %5780 = vmatprep.subr.bf16.mxu0 0
      %5781 = vmatpush1.bf16.msra.mxu0 %v5757
      %5782 = vmatprep.subr.bf16.mxu0 0
      %5783 = vmatpush1.bf16.msra.mxu0 0
      %5784 = vmatprep.subr.bf16.mxu0 0
      %5785 = vmatpush1.bf16.msra.mxu0 0
      %5786 = vmatprep.subr.bf16.mxu0 0
      %5787 = vmatpush1.bf16.msra.mxu0 0
      %5788 = vmatprep.subr.bf16.mxu0 0
      %5789 = vmatpush1.bf16.msra.mxu0 0
      %5790 = vmatprep.subr.bf16.mxu0 0
      %5791 = vmatpush1.bf16.msra.mxu0 0
      %5792 = vmatprep.subr.bf16.mxu0 0
      %5793 = vmatpush1.bf16.msra.mxu0 0
      %5794 = vmatprep.subr.bf16.mxu0 0
      %5795 = vmatpush1.bf16.msra.mxu0 0
      %5796 = vmatprep.subr.bf16.mxu0 0
      %5797 = vmatpush1.bf16.msra.mxu0 0
      %5798 = vmatprep.mubr.bf16.mxu0 0
      %5799 = vmatmul.mubr.bf16.gmra.mrb[0].mxu0 %v5686
      %v5800 = vpop.f32.mrb[0].mxu0
      %v5801 = vadd.f32 0.0, %v5800
      %v5802 = vpop.f32.mrb[0].mxu0
      %v5803 = vpop.f32.mrb[0].mxu0
      %v5804 = vadd.f32 0.0, %v5803
      %v5805 = vpop.f32.mrb[0].mxu0
      %5806 = vmatprep.mubr.bf16.mxu0 0
      %5807 = vmatmul.mubr.bf16.gmra.mrb[0].mxu0 %v5687
      %v5808 = vpop.f32.mrb[0].mxu0
      %v5809 = vadd.f32 0.0, %v5808
      %v5810 = vpop.f32.mrb[0].mxu0
      %v5811 = vpop.f32.mrb[0].mxu0
      %v5812 = vadd.f32 0.0, %v5811
      %v5813 = vpop.f32.mrb[0].mxu0
      %5814 = vmatprep.mubr.bf16.mxu0 0
      %5815 = vmatmul.mubr.bf16.gmra.mrb[0].mxu0 %v5688
      %v5816 = vpop.f32.mrb[0].mxu0
      %v5817 = vadd.f32 0.0, %v5816
      %v5818 = vpop.f32.mrb[0].mxu0
      %v5819 = vpop.f32.mrb[0].mxu0
      %v5820 = vadd.f32 0.0, %v5819
      %v5821 = vpop.f32.mrb[0].mxu0
      %5822 = vmatprep.mubr.bf16.mxu0 0
      %5823 = vmatmul.mubr.bf16.gmra.mrb[0].mxu0 %v5689
      %v5824 = vpop.f32.mrb[0].mxu0
      %v5825 = vadd.f32 0.0, %v5824
      %v5826 = vpop.f32.mrb[0].mxu0
      %v5827 = vpop.f32.mrb[0].mxu0
      %v5828 = vadd.f32 0.0, %v5827
      %v5829 = vpop.f32.mrb[0].mxu0
      %5830 = vmatprep.mubr.bf16.mxu0 0
      %5831 = vmatmul.mubr.bf16.gmra.mrb[0].mxu0 %v5690
      %v5832 = vpop.f32.mrb[0].mxu0
      %v5833 = vadd.f32 0.0, %v5832
      %v5834 = vpop.f32.mrb[0].mxu0
      %v5835 = vpop.f32.mrb[0].mxu0
      %v5836 = vadd.f32 0.0, %v5835
      %v5837 = vpop.f32.mrb[0].mxu0
      %5838 = vmatprep.mubr.bf16.mxu0 0
      %5839 = vmatmul.mubr.bf16.gmra.mrb[0].mxu0 %v5691
      %v5840 = vpop.f32.mrb[0].mxu0
      %v5841 = vadd.f32 0.0, %v5840
      %v5842 = vpop.f32.mrb[0].mxu0
      %v5843 = vpop.f32.mrb[0].mxu0
      %v5844 = vadd.f32 0.0, %v5843
      %v5845 = vpop.f32.mrb[0].mxu0
      %5846 = vmatprep.mubr.bf16.mxu0 0
      %5847 = vmatmul.mubr.bf16.gmra.mrb[0].mxu0 %v5692
      %v5848 = vpop.f32.mrb[0].mxu0
      %v5849 = vadd.f32 0.0, %v5848
      %v5850 = vpop.f32.mrb[0].mxu0
      %v5851 = vpop.f32.mrb[0].mxu0
      %v5852 = vadd.f32 0.0, %v5851
      %v5853 = vpop.f32.mrb[0].mxu0
      %5854 = vmatprep.mubr.bf16.mxu0 0
      %5855 = vmatmul.mubr.bf16.gmra.mrb[0].mxu0 %v5693
      %v5856 = vpop.f32.mrb[0].mxu0
      %v5857 = vadd.f32 0.0, %v5856
      %v5858 = vpop.f32.mrb[0].mxu0
      %v5859 = vpop.f32.mrb[0].mxu0
      %v5860 = vadd.f32 0.0, %v5859
      %v5861 = vpop.f32.mrb[0].mxu0
      %5862 = vmatprep.mubr.bf16.mxu0 0
      %5863 = vmatmul.mubr.bf16.gmra.mrb[0].mxu0 %v5694
      %v5864 = vpop.f32.mrb[0].mxu0
      %v5865 = vadd.f32 0.0, %v5864
      %v5866 = vpop.f32.mrb[0].mxu0
      %v5867 = vpop.f32.mrb[0].mxu0
      %v5868 = vadd.f32 0.0, %v5867
      %v5869 = vpop.f32.mrb[0].mxu0
      %5870 = vmatprep.mubr.bf16.mxu0 0
      %5871 = vmatmul.mubr.bf16.gmra.mrb[0].mxu0 %v5695
      %v5872 = vpop.f32.mrb[0].mxu0
      %v5873 = vadd.f32 0.0, %v5872
      %v5874 = vpop.f32.mrb[0].mxu0
      %v5875 = vpop.f32.mrb[0].mxu0
      %v5876 = vadd.f32 0.0, %v5875
      %v5877 = vpop.f32.mrb[0].mxu0
      %5878 = vmatprep.mubr.bf16.mxu0 0
      %5879 = vmatmul.mubr.bf16.gmra.mrb[0].mxu0 %v5696
      %v5880 = vpop.f32.mrb[0].mxu0
      %v5881 = vadd.f32 0.0, %v5880
      %v5882 = vpop.f32.mrb[0].mxu0
      %v5883 = vpop.f32.mrb[0].mxu0
      %v5884 = vadd.f32 0.0, %v5883
      %v5885 = vpop.f32.mrb[0].mxu0
      %5886 = vmatprep.mubr.bf16.mxu0 0
      %5887 = vmatmul.mubr.bf16.gmra.mrb[0].mxu0 %v5697
      %v5888 = vpop.f32.mrb[0].mxu0
      %v5889 = vadd.f32 0.0, %v5888
      %v5890 = vpop.f32.mrb[0].mxu0
      %v5891 = vpop.f32.mrb[0].mxu0
      %v5892 = vadd.f32 0.0, %v5891
      %v5893 = vpop.f32.mrb[0].mxu0
      %5894 = vmatprep.mubr.bf16.mxu0 0
      %5895 = vmatmul.mubr.bf16.gmra.mrb[0].mxu0 %v5698
      %v5896 = vpop.f32.mrb[0].mxu0
      %v5897 = vadd.f32 0.0, %v5896
      %v5898 = vpop.f32.mrb[0].mxu0
      %v5899 = vpop.f32.mrb[0].mxu0
      %v5900 = vadd.f32 0.0, %v5899
      %v5901 = vpop.f32.mrb[0].mxu0
      %5902 = vmatprep.mubr.bf16.mxu0 0
      %5903 = vmatmul.mubr.bf16.gmra.mrb[0].mxu0 %v5699
      %v5904 = vpop.f32.mrb[0].mxu0
      %v5905 = vadd.f32 0.0, %v5904
      %v5906 = vpop.f32.mrb[0].mxu0
      %v5907 = vpop.f32.mrb[0].mxu0
      %v5908 = vadd.f32 0.0, %v5907
      %v5909 = vpop.f32.mrb[0].mxu0
      %5910 = vmatprep.mubr.bf16.mxu0 0
      %5911 = vmatmul.mubr.bf16.gmra.mrb[0].mxu0 %v5700
      %v5912 = vpop.f32.mrb[0].mxu0
      %v5913 = vadd.f32 0.0, %v5912
      %v5914 = vpop.f32.mrb[0].mxu0
      %v5915 = vpop.f32.mrb[0].mxu0
      %v5916 = vadd.f32 0.0, %v5915
      %v5917 = vpop.f32.mrb[0].mxu0
      %5918 = vmatprep.mubr.bf16.mxu0 0
      %5919 = vmatmul.mubr.bf16.gmra.mrb[0].mxu0 %v5701
      %v5920 = vpop.f32.mrb[0].mxu0
      %v5921 = vadd.f32 0.0, %v5920
      %v5922 = vpop.f32.mrb[0].mxu0
      %v5923 = vpop.f32.mrb[0].mxu0
      %v5924 = vadd.f32 0.0, %v5923
      %v5925 = vpop.f32.mrb[0].mxu0
      %5926 = vdwg.mxu0
      %v5927 = vadd.f32 %v5429, %v5801
      %v5928 = vadd.f32 %v5430, %v5804
      %v5929 = vadd.f32 %v5431, %v5809
      %v5930 = vadd.f32 %v5432, %v5812
      %v5931 = vadd.f32 %v5433, %v5817
      %v5932 = vadd.f32 %v5434, %v5820
      %v5933 = vadd.f32 %v5435, %v5825
      %v5934 = vadd.f32 %v5436, %v5828
      %v5935 = vadd.f32 %v5437, %v5833
      %v5936 = vadd.f32 %v5438, %v5836
      %v5937 = vadd.f32 %v5439, %v5841
      %v5938 = vadd.f32 %v5440, %v5844
      %v5939 = vadd.f32 %v5441, %v5849
      %v5940 = vadd.f32 %v5442, %v5852
      %v5941 = vadd.f32 %v5443, %v5857
      %v5942 = vadd.f32 %v5444, %v5860
      %v5943 = vadd.f32 %v5445, %v5865
      %v5944 = vadd.f32 %v5446, %v5868
      %v5945 = vadd.f32 %v5447, %v5873
      %v5946 = vadd.f32 %v5448, %v5876
      %v5947 = vadd.f32 %v5449, %v5881
      %v5948 = vadd.f32 %v5450, %v5884
      %v5949 = vadd.f32 %v5451, %v5889
      %v5950 = vadd.f32 %v5452, %v5892
      %v5951 = vadd.f32 %v5453, %v5897
      %v5952 = vadd.f32 %v5454, %v5900
      %v5953 = vadd.f32 %v5455, %v5905
      %v5954 = vadd.f32 %v5456, %v5908
      %v5955 = vadd.f32 %v5457, %v5913
      %v5956 = vadd.f32 %v5458, %v5916
      %v5957 = vadd.f32 %v5459, %v5921
      %v5958 = vadd.f32 %v5460, %v5924
      %v5959 = vld [vmem:[%s3] sm:$0x1]
      %v5961 = vlaneseq
      %v5962 = vshrl.u32 %v5961, 7
      %v5963 = vsub.s32 0, %v5962
      %v5964 = vrot.slane %v5959, %v5963
      %v5966 = vadd.f32 %v5927, %v5964
      %v5967 = vadd.f32 %v5928, %v5964
      %v5968 = vadd.f32 %v5929, %v5964
      %v5969 = vadd.f32 %v5930, %v5964
      %v5970 = vadd.f32 %v5931, %v5964
      %v5971 = vadd.f32 %v5932, %v5964
      %v5972 = vadd.f32 %v5933, %v5964
      %v5973 = vadd.f32 %v5934, %v5964
      %v5974 = vadd.f32 %v5935, %v5964
      %v5975 = vadd.f32 %v5936, %v5964
      %v5976 = vadd.f32 %v5937, %v5964
      %v5977 = vadd.f32 %v5938, %v5964
      %v5978 = vadd.f32 %v5939, %v5964
      %v5979 = vadd.f32 %v5940, %v5964
      %v5980 = vadd.f32 %v5941, %v5964
      %v5981 = vadd.f32 %v5942, %v5964
      %v5982 = vadd.f32 %v5943, %v5964
      %v5983 = vadd.f32 %v5944, %v5964
      %v5984 = vadd.f32 %v5945, %v5964
      %v5985 = vadd.f32 %v5946, %v5964
      %v5986 = vadd.f32 %v5947, %v5964
      %v5987 = vadd.f32 %v5948, %v5964
      %v5988 = vadd.f32 %v5949, %v5964
      %v5989 = vadd.f32 %v5950, %v5964
      %v5990 = vadd.f32 %v5951, %v5964
      %v5991 = vadd.f32 %v5952, %v5964
      %v5992 = vadd.f32 %v5953, %v5964
      %v5993 = vadd.f32 %v5954, %v5964
      %v5994 = vadd.f32 %v5955, %v5964
      %v5995 = vadd.f32 %v5956, %v5964
      %v5996 = vadd.f32 %v5957, %v5964
      %v5997 = vadd.f32 %v5958, %v5964
      %v5998 = vmax.f32 %v5966, 0.0
      %v5999 = vmax.f32 %v5967, 0.0
      %v6000 = vmax.f32 %v5968, 0.0
      %v6001 = vmax.f32 %v5969, 0.0
      %v6002 = vmax.f32 %v5970, 0.0
      %v6003 = vmax.f32 %v5971, 0.0
      %v6004 = vmax.f32 %v5972, 0.0
      %v6005 = vmax.f32 %v5973, 0.0
      %v6006 = vmax.f32 %v5974, 0.0
      %v6007 = vmax.f32 %v5975, 0.0
      %v6008 = vmax.f32 %v5976, 0.0
      %v6009 = vmax.f32 %v5977, 0.0
      %v6010 = vmax.f32 %v5978, 0.0
      %v6011 = vmax.f32 %v5979, 0.0
      %v6012 = vmax.f32 %v5980, 0.0
      %v6013 = vmax.f32 %v5981, 0.0
      %v6014 = vmax.f32 %v5982, 0.0
      %v6015 = vmax.f32 %v5983, 0.0
      %v6016 = vmax.f32 %v5984, 0.0
      %v6017 = vmax.f32 %v5985, 0.0
      %v6018 = vmax.f32 %v5986, 0.0
      %v6019 = vmax.f32 %v5987, 0.0
      %v6020 = vmax.f32 %v5988, 0.0
      %v6021 = vmax.f32 %v5989, 0.0
      %v6022 = vmax.f32 %v5990, 0.0
      %v6023 = vmax.f32 %v5991, 0.0
      %v6024 = vmax.f32 %v5992, 0.0
      %v6025 = vmax.f32 %v5993, 0.0
      %v6026 = vmax.f32 %v5994, 0.0
      %v6027 = vmax.f32 %v5995, 0.0
      %v6028 = vmax.f32 %v5996, 0.0
      %v6029 = vmax.f32 %v5997, 0.0
      %v6030 = vpack.c.bf16 %v5999, %v5998
      %v6031 = vpack.c.bf16 %v6001, %v6000
      %v6032 = vpack.c.bf16 %v6003, %v6002
      %v6033 = vpack.c.bf16 %v6005, %v6004
      %v6034 = vpack.c.bf16 %v6007, %v6006
      %v6035 = vpack.c.bf16 %v6009, %v6008
      %v6036 = vpack.c.bf16 %v6011, %v6010
      %v6037 = vpack.c.bf16 %v6013, %v6012
      %v6038 = vpack.c.bf16 %v6015, %v6014
      %v6039 = vpack.c.bf16 %v6017, %v6016
      %v6040 = vpack.c.bf16 %v6019, %v6018
      %v6041 = vpack.c.bf16 %v6021, %v6020
      %v6042 = vpack.c.bf16 %v6023, %v6022
      %v6043 = vpack.c.bf16 %v6025, %v6024
      %v6044 = vpack.c.bf16 %v6027, %v6026
      %v6045 = vpack.c.bf16 %v6029, %v6028
      %s6046 = scalar_lea.vmem %s273, 12
      %v6047 = vld [vmem:[%s6046] sm:$0xf]
      %v6048 = vld [vmem:[%s6046 + $0x4] sm:$0xf]
      %v6049 = vld [vmem:[%s6046 + $0x8] sm:$0x1]
      %v6050 = vld [vmem:[%s6046 + $0xc] sm:$0xf]
      %v6051 = vld [vmem:[%s6046 + $0x10] sm:$0xf]
      %v6052 = vld [vmem:[%s6046 + $0x14] sm:$0x1]
      %v6053 = vld [vmem:[%s6046 + $0x18] sm:$0xf]
      %v6054 = vld [vmem:[%s6046 + $0x1c] sm:$0xf]
      %v6055 = vld [vmem:[%s6046 + $0x20] sm:$0x1]
      %v6056 = vld [vmem:[%s6046 + $0x24] sm:$0xf]
      %v6057 = vld [vmem:[%s6046 + $0x28] sm:$0xf]
      %v6058 = vld [vmem:[%s6046 + $0x2c] sm:$0x1]
      %v6059 = vld [vmem:[%s6046 + $0x30] sm:$0xf]
      %v6060 = vld [vmem:[%s6046 + $0x34] sm:$0xf]
      %v6061 = vld [vmem:[%s6046 + $0x38] sm:$0x1]
      %v6062 = vld [vmem:[%s6046 + $0x3c] sm:$0xf]
      %v6063 = vld [vmem:[%s6046 + $0x40] sm:$0xf]
      %v6064 = vld [vmem:[%s6046 + $0x44] sm:$0x1]
      %v6065 = vld [vmem:[%s6046 + $0x48] sm:$0xf]
      %v6066 = vld [vmem:[%s6046 + $0x4c] sm:$0xf]
      %v6067 = vld [vmem:[%s6046 + $0x50] sm:$0x1]
      %v6068 = vld [vmem:[%s6046 + $0x54] sm:$0xf]
      %v6069 = vld [vmem:[%s6046 + $0x58] sm:$0xf]
      %v6070 = vld [vmem:[%s6046 + $0x5c] sm:$0x1]
      %v6071 = vld [vmem:[%s6046 + $0x60] sm:$0xf]
      %v6072 = vld [vmem:[%s6046 + $0x64] sm:$0xf]
      %v6073 = vld [vmem:[%s6046 + $0x68] sm:$0x1]
      %v6074 = vld [vmem:[%s6046 + $0x6c] sm:$0xf]
      %v6075 = vld [vmem:[%s6046 + $0x70] sm:$0xf]
      %v6076 = vld [vmem:[%s6046 + $0x74] sm:$0x1]
      %v6077 = vld [vmem:[%s6046 + $0x78] sm:$0xf]
      %v6078 = vld [vmem:[%s6046 + $0x7c] sm:$0xf]
      %v6079 = vld [vmem:[%s6046 + $0x80] sm:$0x1]
      %v6080 = vld [vmem:[%s6046 + $0x84] sm:$0xf]
      %v6081 = vld [vmem:[%s6046 + $0x88] sm:$0xf]
      %v6082 = vld [vmem:[%s6046 + $0x8c] sm:$0x1]
      %v6083 = vld [vmem:[%s6046 + $0x90] sm:$0xf]
      %v6084 = vld [vmem:[%s6046 + $0x94] sm:$0xf]
      %v6085 = vld [vmem:[%s6046 + $0x98] sm:$0x1]
      %v6086 = vld [vmem:[%s6046 + $0x9c] sm:$0xf]
      %v6087 = vld [vmem:[%s6046 + $0xa0] sm:$0xf]
      %v6088 = vld [vmem:[%s6046 + $0xa4] sm:$0x1]
      %v6089 = vld [vmem:[%s6046 + $0xa8] sm:$0xf]
      %v6090 = vld [vmem:[%s6046 + $0xac] sm:$0xf]
      %v6091 = vld [vmem:[%s6046 + $0xb0] sm:$0x1]
      %v6092 = vld [vmem:[%s6046 + $0xb4] sm:$0xf]
      %v6093 = vld [vmem:[%s6046 + $0xb8] sm:$0xf]
      %v6094 = vld [vmem:[%s6046 + $0xbc] sm:$0x1]
      %v6096 = vshrl.u32 %v6047, 16
      %v6098 = vrot.slane %v6096, 4
      %v6099 = vshll.u32 %v6047, 16
      %v6101 = vrot.slane %v6099, 5
      %v6102 = vor.u32 %v6098, %v6101
      %v6103 = vrot.slane %v6102, 4
      %v6105 = vshll.u32 %v6048, 16
      %v6107 = vrot.slane %v6105, 5
      %v6108 = vsel %vm1216, %v6103, %v6107
      %v6109 = vshrl.u32 %v6048, 16
      %v6111 = vrot.slane %v6109, 4
      %v6112 = vor.u32 %v6111, %v6107
      %v6113 = vrot.slane %v6112, 4
      %v6115 = vshll.u32 %v6049, 16
      %v6117 = vrot.slane %v6115, 5
      %v6118 = vsel %vm1216, %v6113, %v6117
      %v6120 = vshrl.u32 %v6050, 16
      %v6122 = vrot.slane %v6120, 4
      %v6123 = vshll.u32 %v6050, 16
      %v6125 = vrot.slane %v6123, 5
      %v6126 = vor.u32 %v6122, %v6125
      %v6127 = vrot.slane %v6126, 4
      %v6129 = vshll.u32 %v6051, 16
      %v6131 = vrot.slane %v6129, 5
      %v6132 = vsel %vm1216, %v6127, %v6131
      %v6133 = vshrl.u32 %v6051, 16
      %v6135 = vrot.slane %v6133, 4
      %v6136 = vor.u32 %v6135, %v6131
      %v6137 = vrot.slane %v6136, 4
      %v6139 = vshll.u32 %v6052, 16
      %v6141 = vrot.slane %v6139, 5
      %v6142 = vsel %vm1216, %v6137, %v6141
      %v6144 = vshrl.u32 %v6053, 16
      %v6146 = vrot.slane %v6144, 4
      %v6147 = vshll.u32 %v6053, 16
      %v6149 = vrot.slane %v6147, 5
      %v6150 = vor.u32 %v6146, %v6149
      %v6151 = vrot.slane %v6150, 4
      %v6153 = vshll.u32 %v6054, 16
      %v6155 = vrot.slane %v6153, 5
      %v6156 = vsel %vm1216, %v6151, %v6155
      %v6157 = vshrl.u32 %v6054, 16
      %v6159 = vrot.slane %v6157, 4
      %v6160 = vor.u32 %v6159, %v6155
      %v6161 = vrot.slane %v6160, 4
      %v6163 = vshll.u32 %v6055, 16
      %v6165 = vrot.slane %v6163, 5
      %v6166 = vsel %vm1216, %v6161, %v6165
      %v6168 = vshrl.u32 %v6056, 16
      %v6170 = vrot.slane %v6168, 4
      %v6171 = vshll.u32 %v6056, 16
      %v6173 = vrot.slane %v6171, 5
      %v6174 = vor.u32 %v6170, %v6173
      %v6175 = vrot.slane %v6174, 4
      %v6177 = vshll.u32 %v6057, 16
      %v6179 = vrot.slane %v6177, 5
      %v6180 = vsel %vm1216, %v6175, %v6179
      %v6181 = vshrl.u32 %v6057, 16
      %v6183 = vrot.slane %v6181, 4
      %v6184 = vor.u32 %v6183, %v6179
      %v6185 = vrot.slane %v6184, 4
      %v6187 = vshll.u32 %v6058, 16
      %v6189 = vrot.slane %v6187, 5
      %v6190 = vsel %vm1216, %v6185, %v6189
      %v6192 = vshrl.u32 %v6059, 16
      %v6194 = vrot.slane %v6192, 4
      %v6195 = vshll.u32 %v6059, 16
      %v6197 = vrot.slane %v6195, 5
      %v6198 = vor.u32 %v6194, %v6197
      %v6199 = vrot.slane %v6198, 4
      %v6201 = vshll.u32 %v6060, 16
      %v6203 = vrot.slane %v6201, 5
      %v6204 = vsel %vm1216, %v6199, %v6203
      %v6205 = vshrl.u32 %v6060, 16
      %v6207 = vrot.slane %v6205, 4
      %v6208 = vor.u32 %v6207, %v6203
      %v6209 = vrot.slane %v6208, 4
      %v6211 = vshll.u32 %v6061, 16
      %v6213 = vrot.slane %v6211, 5
      %v6214 = vsel %vm1216, %v6209, %v6213
      %v6216 = vshrl.u32 %v6062, 16
      %v6218 = vrot.slane %v6216, 4
      %v6219 = vshll.u32 %v6062, 16
      %v6221 = vrot.slane %v6219, 5
      %v6222 = vor.u32 %v6218, %v6221
      %v6223 = vrot.slane %v6222, 4
      %v6225 = vshll.u32 %v6063, 16
      %v6227 = vrot.slane %v6225, 5
      %v6228 = vsel %vm1216, %v6223, %v6227
      %v6229 = vshrl.u32 %v6063, 16
      %v6231 = vrot.slane %v6229, 4
      %v6232 = vor.u32 %v6231, %v6227
      %v6233 = vrot.slane %v6232, 4
      %v6235 = vshll.u32 %v6064, 16
      %v6237 = vrot.slane %v6235, 5
      %v6238 = vsel %vm1216, %v6233, %v6237
      %v6240 = vshrl.u32 %v6065, 16
      %v6242 = vrot.slane %v6240, 4
      %v6243 = vshll.u32 %v6065, 16
      %v6245 = vrot.slane %v6243, 5
      %v6246 = vor.u32 %v6242, %v6245
      %v6247 = vrot.slane %v6246, 4
      %v6249 = vshll.u32 %v6066, 16
      %v6251 = vrot.slane %v6249, 5
      %v6252 = vsel %vm1216, %v6247, %v6251
      %v6253 = vshrl.u32 %v6066, 16
      %v6255 = vrot.slane %v6253, 4
      %v6256 = vor.u32 %v6255, %v6251
      %v6257 = vrot.slane %v6256, 4
      %v6259 = vshll.u32 %v6067, 16
      %v6261 = vrot.slane %v6259, 5
      %v6262 = vsel %vm1216, %v6257, %v6261
      %v6264 = vshrl.u32 %v6068, 16
      %v6266 = vrot.slane %v6264, 4
      %v6267 = vshll.u32 %v6068, 16
      %v6269 = vrot.slane %v6267, 5
      %v6270 = vor.u32 %v6266, %v6269
      %v6271 = vrot.slane %v6270, 4
      %v6273 = vshll.u32 %v6069, 16
      %v6275 = vrot.slane %v6273, 5
      %v6276 = vsel %vm1216, %v6271, %v6275
      %v6277 = vshrl.u32 %v6069, 16
      %v6279 = vrot.slane %v6277, 4
      %v6280 = vor.u32 %v6279, %v6275
      %v6281 = vrot.slane %v6280, 4
      %v6283 = vshll.u32 %v6070, 16
      %v6285 = vrot.slane %v6283, 5
      %v6286 = vsel %vm1216, %v6281, %v6285
      %v6288 = vshrl.u32 %v6071, 16
      %v6290 = vrot.slane %v6288, 4
      %v6291 = vshll.u32 %v6071, 16
      %v6293 = vrot.slane %v6291, 5
      %v6294 = vor.u32 %v6290, %v6293
      %v6295 = vrot.slane %v6294, 4
      %v6297 = vshll.u32 %v6072, 16
      %v6299 = vrot.slane %v6297, 5
      %v6300 = vsel %vm1216, %v6295, %v6299
      %v6301 = vshrl.u32 %v6072, 16
      %v6303 = vrot.slane %v6301, 4
      %v6304 = vor.u32 %v6303, %v6299
      %v6305 = vrot.slane %v6304, 4
      %v6307 = vshll.u32 %v6073, 16
      %v6309 = vrot.slane %v6307, 5
      %v6310 = vsel %vm1216, %v6305, %v6309
      %v6312 = vshrl.u32 %v6074, 16
      %v6314 = vrot.slane %v6312, 4
      %v6315 = vshll.u32 %v6074, 16
      %v6317 = vrot.slane %v6315, 5
      %v6318 = vor.u32 %v6314, %v6317
      %v6319 = vrot.slane %v6318, 4
      %v6321 = vshll.u32 %v6075, 16
      %v6323 = vrot.slane %v6321, 5
      %v6324 = vsel %vm1216, %v6319, %v6323
      %v6325 = vshrl.u32 %v6075, 16
      %v6327 = vrot.slane %v6325, 4
      %v6328 = vor.u32 %v6327, %v6323
      %v6329 = vrot.slane %v6328, 4
      %v6331 = vshll.u32 %v6076, 16
      %v6333 = vrot.slane %v6331, 5
      %v6334 = vsel %vm1216, %v6329, %v6333
      %v6336 = vshrl.u32 %v6077, 16
      %v6338 = vrot.slane %v6336, 4
      %v6339 = vshll.u32 %v6077, 16
      %v6341 = vrot.slane %v6339, 5
      %v6342 = vor.u32 %v6338, %v6341
      %v6343 = vrot.slane %v6342, 4
      %v6345 = vshll.u32 %v6078, 16
      %v6347 = vrot.slane %v6345, 5
      %v6348 = vsel %vm1216, %v6343, %v6347
      %v6349 = vshrl.u32 %v6078, 16
      %v6351 = vrot.slane %v6349, 4
      %v6352 = vor.u32 %v6351, %v6347
      %v6353 = vrot.slane %v6352, 4
      %v6355 = vshll.u32 %v6079, 16
      %v6357 = vrot.slane %v6355, 5
      %v6358 = vsel %vm1216, %v6353, %v6357
      %v6360 = vshrl.u32 %v6080, 16
      %v6362 = vrot.slane %v6360, 4
      %v6363 = vshll.u32 %v6080, 16
      %v6365 = vrot.slane %v6363, 5
      %v6366 = vor.u32 %v6362, %v6365
      %v6367 = vrot.slane %v6366, 4
      %v6369 = vshll.u32 %v6081, 16
      %v6371 = vrot.slane %v6369, 5
      %v6372 = vsel %vm1216, %v6367, %v6371
      %v6373 = vshrl.u32 %v6081, 16
      %v6375 = vrot.slane %v6373, 4
      %v6376 = vor.u32 %v6375, %v6371
      %v6377 = vrot.slane %v6376, 4
      %v6379 = vshll.u32 %v6082, 16
      %v6381 = vrot.slane %v6379, 5
      %v6382 = vsel %vm1216, %v6377, %v6381
      %v6384 = vshrl.u32 %v6083, 16
      %v6386 = vrot.slane %v6384, 4
      %v6387 = vshll.u32 %v6083, 16
      %v6389 = vrot.slane %v6387, 5
      %v6390 = vor.u32 %v6386, %v6389
      %v6391 = vrot.slane %v6390, 4
      %v6393 = vshll.u32 %v6084, 16
      %v6395 = vrot.slane %v6393, 5
      %v6396 = vsel %vm1216, %v6391, %v6395
      %v6397 = vshrl.u32 %v6084, 16
      %v6399 = vrot.slane %v6397, 4
      %v6400 = vor.u32 %v6399, %v6395
      %v6401 = vrot.slane %v6400, 4
      %v6403 = vshll.u32 %v6085, 16
      %v6405 = vrot.slane %v6403, 5
      %v6406 = vsel %vm1216, %v6401, %v6405
      %v6408 = vshrl.u32 %v6086, 16
      %v6410 = vrot.slane %v6408, 4
      %v6411 = vshll.u32 %v6086, 16
      %v6413 = vrot.slane %v6411, 5
      %v6414 = vor.u32 %v6410, %v6413
      %v6415 = vrot.slane %v6414, 4
      %v6417 = vshll.u32 %v6087, 16
      %v6419 = vrot.slane %v6417, 5
      %v6420 = vsel %vm1216, %v6415, %v6419
      %v6421 = vshrl.u32 %v6087, 16
      %v6423 = vrot.slane %v6421, 4
      %v6424 = vor.u32 %v6423, %v6419
      %v6425 = vrot.slane %v6424, 4
      %v6427 = vshll.u32 %v6088, 16
      %v6429 = vrot.slane %v6427, 5
      %v6430 = vsel %vm1216, %v6425, %v6429
      %v6432 = vshrl.u32 %v6089, 16
      %v6434 = vrot.slane %v6432, 4
      %v6435 = vshll.u32 %v6089, 16
      %v6437 = vrot.slane %v6435, 5
      %v6438 = vor.u32 %v6434, %v6437
      %v6439 = vrot.slane %v6438, 4
      %v6441 = vshll.u32 %v6090, 16
      %v6443 = vrot.slane %v6441, 5
      %v6444 = vsel %vm1216, %v6439, %v6443
      %v6445 = vshrl.u32 %v6090, 16
      %v6447 = vrot.slane %v6445, 4
      %v6448 = vor.u32 %v6447, %v6443
      %v6449 = vrot.slane %v6448, 4
      %v6451 = vshll.u32 %v6091, 16
      %v6453 = vrot.slane %v6451, 5
      %v6454 = vsel %vm1216, %v6449, %v6453
      %v6456 = vshrl.u32 %v6092, 16
      %v6458 = vrot.slane %v6456, 4
      %v6459 = vshll.u32 %v6092, 16
      %v6461 = vrot.slane %v6459, 5
      %v6462 = vor.u32 %v6458, %v6461
      %v6463 = vrot.slane %v6462, 4
      %v6465 = vshll.u32 %v6093, 16
      %v6467 = vrot.slane %v6465, 5
      %v6468 = vsel %vm1216, %v6463, %v6467
      %v6469 = vshrl.u32 %v6093, 16
      %v6471 = vrot.slane %v6469, 4
      %v6472 = vor.u32 %v6471, %v6467
      %v6473 = vrot.slane %v6472, 4
      %v6475 = vshll.u32 %v6094, 16
      %v6477 = vrot.slane %v6475, 5
      %v6478 = vsel %vm1216, %v6473, %v6477
      %v6479 = vld [vmem:[%s4] sm:$0xf]
      %v6480 = vld [vmem:[%s4 + $0x4] sm:$0xf]
      %v6481 = vld [vmem:[%s4 + $0x8] sm:$0xf]
      %v6482 = vld [vmem:[%s4 + $0xc] sm:$0xf]
      %v6483 = vld [vmem:[%s4 + $0x10] sm:$0xf]
      %v6484 = vld [vmem:[%s4 + $0x14] sm:$0xf]
      %v6485 = vld [vmem:[%s4 + $0x18] sm:$0xf]
      %v6486 = vld [vmem:[%s4 + $0x1c] sm:$0xf]
      %v6487 = vld [vmem:[%s4 + $0x20] sm:$0xf]
      %v6488 = vld [vmem:[%s4 + $0x24] sm:$0xf]
      %v6489 = vld [vmem:[%s4 + $0x28] sm:$0xf]
      %v6490 = vld [vmem:[%s4 + $0x2c] sm:$0xf]
      %v6491 = vld [vmem:[%s4 + $0x30] sm:$0xf]
      %v6492 = vld [vmem:[%s4 + $0x34] sm:$0xf]
      %v6493 = vld [vmem:[%s4 + $0x38] sm:$0xf]
      %v6494 = vld [vmem:[%s4 + $0x3c] sm:$0xf]
      %v6495 = vld [vmem:[%s5] sm:$0x1]
      %v6497 = vlaneseq
      %v6498 = vshrl.u32 %v6497, 7
      %v6499 = vsub.s32 0, %v6498
      %v6500 = vrot.slane %v6495, %v6499
      %v6518 = vunpack.c.l.b16 %v6479
      %v6519 = vunpack.c.l.b16 %v6480
      %v6520 = vunpack.c.l.b16 %v6481
      %v6521 = vunpack.c.l.b16 %v6482
      %v6522 = vunpack.c.l.b16 %v6483
      %v6523 = vunpack.c.l.b16 %v6484
      %v6524 = vunpack.c.l.b16 %v6485
      %v6525 = vunpack.c.l.b16 %v6486
      %v6526 = vunpack.c.l.b16 %v6487
      %v6527 = vunpack.c.l.b16 %v6488
      %v6528 = vunpack.c.l.b16 %v6489
      %v6529 = vunpack.c.l.b16 %v6490
      %v6530 = vunpack.c.l.b16 %v6491
      %v6531 = vunpack.c.l.b16 %v6492
      %v6532 = vunpack.c.l.b16 %v6493
      %v6533 = vunpack.c.l.b16 %v6494
      %v6534 = vpack.c.b16 %v6519, %v6518
      %v6535 = vpack.c.b16 %v6521, %v6520
      %v6536 = vpack.c.b16 %v6523, %v6522
      %v6537 = vpack.c.b16 %v6525, %v6524
      %v6538 = vpack.c.b16 %v6527, %v6526
      %v6539 = vpack.c.b16 %v6529, %v6528
      %v6540 = vpack.c.b16 %v6531, %v6530
      %v6541 = vpack.c.b16 %v6533, %v6532
      %6550 = vmatprep.subr.bf16.mxu0 0
      %6551 = vmatpush1.bf16.msra.mxu0 %v6534
      %6552 = vmatprep.subr.bf16.mxu0 0
      %6553 = vmatpush1.bf16.msra.mxu0 %v6535
      %6554 = vmatprep.subr.bf16.mxu0 0
      %6555 = vmatpush1.bf16.msra.mxu0 %v6536
      %6556 = vmatprep.subr.bf16.mxu0 0
      %6557 = vmatpush1.bf16.msra.mxu0 %v6537
      %6558 = vmatprep.subr.bf16.mxu0 0
      %6559 = vmatpush1.bf16.msra.mxu0 %v6538
      %6560 = vmatprep.subr.bf16.mxu0 0
      %6561 = vmatpush1.bf16.msra.mxu0 %v6539
      %6562 = vmatprep.subr.bf16.mxu0 0
      %6563 = vmatpush1.bf16.msra.mxu0 %v6540
      %6564 = vmatprep.subr.bf16.mxu0 0
      %6565 = vmatpush1.bf16.msra.mxu0 %v6541
      %6566 = vmatprep.subr.bf16.mxu0 0
      %6567 = vmatpush1.bf16.msra.mxu0 0
      %6568 = vmatprep.subr.bf16.mxu0 0
      %6569 = vmatpush1.bf16.msra.mxu0 0
      %6570 = vmatprep.subr.bf16.mxu0 0
      %6571 = vmatpush1.bf16.msra.mxu0 0
      %6572 = vmatprep.subr.bf16.mxu0 0
      %6573 = vmatpush1.bf16.msra.mxu0 0
      %6574 = vmatprep.subr.bf16.mxu0 0
      %6575 = vmatpush1.bf16.msra.mxu0 0
      %6576 = vmatprep.subr.bf16.mxu0 0
      %6577 = vmatpush1.bf16.msra.mxu0 0
      %6578 = vmatprep.subr.bf16.mxu0 0
      %6579 = vmatpush1.bf16.msra.mxu0 0
      %6580 = vmatprep.subr.bf16.mxu0 0
      %6581 = vmatpush1.bf16.msra.mxu0 0
      %6582 = vmatprep.mubr.bf16.mxu0 0
      %6583 = vmatmul.mubr.bf16.gmra.mrb[0].mxu0 %v6030
      %v6584 = vpop.f32.mrb[0].mxu0
      %v6585 = vadd.f32 %v6500, %v6584
      %v6586 = vpop.f32.mrb[0].mxu0
      %v6587 = vpop.f32.mrb[0].mxu0
      %v6588 = vadd.f32 %v6500, %v6587
      %v6589 = vpop.f32.mrb[0].mxu0
      %6590 = vmatprep.mubr.bf16.mxu0 0
      %6591 = vmatmul.mubr.bf16.gmra.mrb[0].mxu0 %v6031
      %v6592 = vpop.f32.mrb[0].mxu0
      %v6593 = vadd.f32 %v6500, %v6592
      %v6594 = vpop.f32.mrb[0].mxu0
      %v6595 = vpop.f32.mrb[0].mxu0
      %v6596 = vadd.f32 %v6500, %v6595
      %v6597 = vpop.f32.mrb[0].mxu0
      %6598 = vmatprep.mubr.bf16.mxu0 0
      %6599 = vmatmul.mubr.bf16.gmra.mrb[0].mxu0 %v6032
      %v6600 = vpop.f32.mrb[0].mxu0
      %v6601 = vadd.f32 %v6500, %v6600
      %v6602 = vpop.f32.mrb[0].mxu0
      %v6603 = vpop.f32.mrb[0].mxu0
      %v6604 = vadd.f32 %v6500, %v6603
      %v6605 = vpop.f32.mrb[0].mxu0
      %6606 = vmatprep.mubr.bf16.mxu0 0
      %6607 = vmatmul.mubr.bf16.gmra.mrb[0].mxu0 %v6033
      %v6608 = vpop.f32.mrb[0].mxu0
      %v6609 = vadd.f32 %v6500, %v6608
      %v6610 = vpop.f32.mrb[0].mxu0
      %v6611 = vpop.f32.mrb[0].mxu0
      %v6612 = vadd.f32 %v6500, %v6611
      %v6613 = vpop.f32.mrb[0].mxu0
      %6614 = vmatprep.mubr.bf16.mxu0 0
      %6615 = vmatmul.mubr.bf16.gmra.mrb[0].mxu0 %v6034
      %v6616 = vpop.f32.mrb[0].mxu0
      %v6617 = vadd.f32 %v6500, %v6616
      %v6618 = vpop.f32.mrb[0].mxu0
      %v6619 = vpop.f32.mrb[0].mxu0
      %v6620 = vadd.f32 %v6500, %v6619
      %v6621 = vpop.f32.mrb[0].mxu0
      %6622 = vmatprep.mubr.bf16.mxu0 0
      %6623 = vmatmul.mubr.bf16.gmra.mrb[0].mxu0 %v6035
      %v6624 = vpop.f32.mrb[0].mxu0
      %v6625 = vadd.f32 %v6500, %v6624
      %v6626 = vpop.f32.mrb[0].mxu0
      %v6627 = vpop.f32.mrb[0].mxu0
      %v6628 = vadd.f32 %v6500, %v6627
      %v6629 = vpop.f32.mrb[0].mxu0
      %6630 = vmatprep.mubr.bf16.mxu0 0
      %6631 = vmatmul.mubr.bf16.gmra.mrb[0].mxu0 %v6036
      %v6632 = vpop.f32.mrb[0].mxu0
      %v6633 = vadd.f32 %v6500, %v6632
      %v6634 = vpop.f32.mrb[0].mxu0
      %v6635 = vpop.f32.mrb[0].mxu0
      %v6636 = vadd.f32 %v6500, %v6635
      %v6637 = vpop.f32.mrb[0].mxu0
      %6638 = vmatprep.mubr.bf16.mxu0 0
      %6639 = vmatmul.mubr.bf16.gmra.mrb[0].mxu0 %v6037
      %v6640 = vpop.f32.mrb[0].mxu0
      %v6641 = vadd.f32 %v6500, %v6640
      %v6642 = vpop.f32.mrb[0].mxu0
      %v6643 = vpop.f32.mrb[0].mxu0
      %v6644 = vadd.f32 %v6500, %v6643
      %v6645 = vpop.f32.mrb[0].mxu0
      %6646 = vmatprep.mubr.bf16.mxu0 0
      %6647 = vmatmul.mubr.bf16.gmra.mrb[0].mxu0 %v6038
      %v6648 = vpop.f32.mrb[0].mxu0
      %v6649 = vadd.f32 %v6500, %v6648
      %v6650 = vpop.f32.mrb[0].mxu0
      %v6651 = vpop.f32.mrb[0].mxu0
      %v6652 = vadd.f32 %v6500, %v6651
      %v6653 = vpop.f32.mrb[0].mxu0
      %6654 = vmatprep.mubr.bf16.mxu0 0
      %6655 = vmatmul.mubr.bf16.gmra.mrb[0].mxu0 %v6039
      %v6656 = vpop.f32.mrb[0].mxu0
      %v6657 = vadd.f32 %v6500, %v6656
      %v6658 = vpop.f32.mrb[0].mxu0
      %v6659 = vpop.f32.mrb[0].mxu0
      %v6660 = vadd.f32 %v6500, %v6659
      %v6661 = vpop.f32.mrb[0].mxu0
      %6662 = vmatprep.mubr.bf16.mxu0 0
      %6663 = vmatmul.mubr.bf16.gmra.mrb[0].mxu0 %v6040
      %v6664 = vpop.f32.mrb[0].mxu0
      %v6665 = vadd.f32 %v6500, %v6664
      %v6666 = vpop.f32.mrb[0].mxu0
      %v6667 = vpop.f32.mrb[0].mxu0
      %v6668 = vadd.f32 %v6500, %v6667
      %v6669 = vpop.f32.mrb[0].mxu0
      %6670 = vmatprep.mubr.bf16.mxu0 0
      %6671 = vmatmul.mubr.bf16.gmra.mrb[0].mxu0 %v6041
      %v6672 = vpop.f32.mrb[0].mxu0
      %v6673 = vadd.f32 %v6500, %v6672
      %v6674 = vpop.f32.mrb[0].mxu0
      %v6675 = vpop.f32.mrb[0].mxu0
      %v6676 = vadd.f32 %v6500, %v6675
      %v6677 = vpop.f32.mrb[0].mxu0
      %6678 = vmatprep.mubr.bf16.mxu0 0
      %6679 = vmatmul.mubr.bf16.gmra.mrb[0].mxu0 %v6042
      %v6680 = vpop.f32.mrb[0].mxu0
      %v6681 = vadd.f32 %v6500, %v6680
      %v6682 = vpop.f32.mrb[0].mxu0
      %v6683 = vpop.f32.mrb[0].mxu0
      %v6684 = vadd.f32 %v6500, %v6683
      %v6685 = vpop.f32.mrb[0].mxu0
      %6686 = vmatprep.mubr.bf16.mxu0 0
      %6687 = vmatmul.mubr.bf16.gmra.mrb[0].mxu0 %v6043
      %v6688 = vpop.f32.mrb[0].mxu0
      %v6689 = vadd.f32 %v6500, %v6688
      %v6690 = vpop.f32.mrb[0].mxu0
      %v6691 = vpop.f32.mrb[0].mxu0
      %v6692 = vadd.f32 %v6500, %v6691
      %v6693 = vpop.f32.mrb[0].mxu0
      %6694 = vmatprep.mubr.bf16.mxu0 0
      %6695 = vmatmul.mubr.bf16.gmra.mrb[0].mxu0 %v6044
      %v6696 = vpop.f32.mrb[0].mxu0
      %v6697 = vadd.f32 %v6500, %v6696
      %v6698 = vpop.f32.mrb[0].mxu0
      %v6699 = vpop.f32.mrb[0].mxu0
      %v6700 = vadd.f32 %v6500, %v6699
      %v6701 = vpop.f32.mrb[0].mxu0
      %6702 = vmatprep.mubr.bf16.mxu0 0
      %6703 = vmatmul.mubr.bf16.gmra.mrb[0].mxu0 %v6045
      %v6704 = vpop.f32.mrb[0].mxu0
      %v6705 = vadd.f32 %v6500, %v6704
      %v6706 = vpop.f32.mrb[0].mxu0
      %v6707 = vpop.f32.mrb[0].mxu0
      %v6708 = vadd.f32 %v6500, %v6707
      %v6709 = vpop.f32.mrb[0].mxu0
      %6710 = vdwg.mxu0
      %v6711 = vld [vmem:[%s6] sm:$0x7]
      %v6712 = vunpack.c.l.b16 %v6108
      %v6713 = vunpack.c.l.b16 %v6118
      %v6714 = vunpack.c.l.b16 %v6132
      %v6715 = vunpack.c.l.b16 %v6142
      %v6716 = vunpack.c.l.b16 %v6156
      %v6717 = vunpack.c.l.b16 %v6166
      %v6718 = vunpack.c.l.b16 %v6180
      %v6719 = vunpack.c.l.b16 %v6190
      %v6720 = vunpack.c.l.b16 %v6204
      %v6721 = vunpack.c.l.b16 %v6214
      %v6722 = vunpack.c.l.b16 %v6228
      %v6723 = vunpack.c.l.b16 %v6238
      %v6724 = vunpack.c.l.b16 %v6252
      %v6725 = vunpack.c.l.b16 %v6262
      %v6726 = vunpack.c.l.b16 %v6276
      %v6727 = vunpack.c.l.b16 %v6286
      %v6728 = vunpack.c.l.b16 %v6300
      %v6729 = vunpack.c.l.b16 %v6310
      %v6730 = vunpack.c.l.b16 %v6324
      %v6731 = vunpack.c.l.b16 %v6334
      %v6732 = vunpack.c.l.b16 %v6348
      %v6733 = vunpack.c.l.b16 %v6358
      %v6734 = vunpack.c.l.b16 %v6372
      %v6735 = vunpack.c.l.b16 %v6382
      %v6736 = vunpack.c.l.b16 %v6396
      %v6737 = vunpack.c.l.b16 %v6406
      %v6738 = vunpack.c.l.b16 %v6420
      %v6739 = vunpack.c.l.b16 %v6430
      %v6740 = vunpack.c.l.b16 %v6444
      %v6741 = vunpack.c.l.b16 %v6454
      %v6742 = vunpack.c.l.b16 %v6468
      %v6743 = vunpack.c.l.b16 %v6478
      %v6744 = vpack.c.b16 %v6713, %v6712
      %v6745 = vpack.c.b16 %v6715, %v6714
      %v6746 = vpack.c.b16 %v6717, %v6716
      %v6747 = vpack.c.b16 %v6719, %v6718
      %v6748 = vpack.c.b16 %v6721, %v6720
      %v6749 = vpack.c.b16 %v6723, %v6722
      %v6750 = vpack.c.b16 %v6725, %v6724
      %v6751 = vpack.c.b16 %v6727, %v6726
      %v6752 = vpack.c.b16 %v6729, %v6728
      %v6753 = vpack.c.b16 %v6731, %v6730
      %v6754 = vpack.c.b16 %v6733, %v6732
      %v6755 = vpack.c.b16 %v6735, %v6734
      %v6756 = vpack.c.b16 %v6737, %v6736
      %v6757 = vpack.c.b16 %v6739, %v6738
      %v6758 = vpack.c.b16 %v6741, %v6740
      %v6759 = vpack.c.b16 %v6743, %v6742
      %v6761 = vsel %vm470, %v6744, 0
      %v6764 = vsel %vm470, %v6745, 0
      %v6767 = vsel %vm470, %v6746, 0
      %v6770 = vsel %vm470, %v6747, 0
      %v6773 = vsel %vm470, %v6748, 0
      %v6776 = vsel %vm470, %v6749, 0
      %v6779 = vsel %vm470, %v6750, 0
      %v6782 = vsel %vm470, %v6751, 0
      %v6785 = vsel %vm470, %v6752, 0
      %v6788 = vsel %vm470, %v6753, 0
      %v6791 = vsel %vm470, %v6754, 0
      %v6794 = vsel %vm470, %v6755, 0
      %v6797 = vsel %vm470, %v6756, 0
      %v6800 = vsel %vm470, %v6757, 0
      %v6803 = vsel %vm470, %v6758, 0
      %v6806 = vsel %vm470, %v6759, 0
      %v6809 = vand.u32 %v6711, %v555
      %6811 = vmatprep.subr.bf16.mxu0 0
      %6812 = vmatpush1.bf16.msra.mxu0 %v6809
      %6813 = vmatprep.subr.bf16.mxu0 0
      %6814 = vmatpush1.bf16.msra.mxu0 0
      %6815 = vmatprep.subr.bf16.mxu0 0
      %6816 = vmatpush1.bf16.msra.mxu0 0
      %6817 = vmatprep.subr.bf16.mxu0 0
      %6818 = vmatpush1.bf16.msra.mxu0 0
      %6819 = vmatprep.subr.bf16.mxu0 0
      %6820 = vmatpush1.bf16.msra.mxu0 0
      %6821 = vmatprep.subr.bf16.mxu0 0
      %6822 = vmatpush1.bf16.msra.mxu0 0
      %6823 = vmatprep.subr.bf16.mxu0 0
      %6824 = vmatpush1.bf16.msra.mxu0 0
      %6825 = vmatprep.subr.bf16.mxu0 0
      %6826 = vmatpush1.bf16.msra.mxu0 0
      %6827 = vmatprep.subr.bf16.mxu0 0
      %6828 = vmatpush1.bf16.msra.mxu0 0
      %6829 = vmatprep.subr.bf16.mxu0 0
      %6830 = vmatpush1.bf16.msra.mxu0 0
      %6831 = vmatprep.subr.bf16.mxu0 0
      %6832 = vmatpush1.bf16.msra.mxu0 0
      %6833 = vmatprep.subr.bf16.mxu0 0
      %6834 = vmatpush1.bf16.msra.mxu0 0
      %6835 = vmatprep.subr.bf16.mxu0 0
      %6836 = vmatpush1.bf16.msra.mxu0 0
      %6837 = vmatprep.subr.bf16.mxu0 0
      %6838 = vmatpush1.bf16.msra.mxu0 0
      %6839 = vmatprep.subr.bf16.mxu0 0
      %6840 = vmatpush1.bf16.msra.mxu0 0
      %6841 = vmatprep.subr.bf16.mxu0 0
      %6842 = vmatpush1.bf16.msra.mxu0 0
      %6843 = vmatprep.mubr.bf16.mxu0 0
      %6844 = vmatmul.mubr.bf16.gmra.mrb[0].mxu0 %v6761
      %v6845 = vpop.f32.mrb[0].mxu0
      %v6846 = vadd.f32 0.0, %v6845
      %v6847 = vpop.f32.mrb[0].mxu0
      %v6848 = vpop.f32.mrb[0].mxu0
      %v6849 = vadd.f32 0.0, %v6848
      %v6850 = vpop.f32.mrb[0].mxu0
      %6851 = vmatprep.mubr.bf16.mxu0 0
      %6852 = vmatmul.mubr.bf16.gmra.mrb[0].mxu0 %v6764
      %v6853 = vpop.f32.mrb[0].mxu0
      %v6854 = vadd.f32 0.0, %v6853
      %v6855 = vpop.f32.mrb[0].mxu0
      %v6856 = vpop.f32.mrb[0].mxu0
      %v6857 = vadd.f32 0.0, %v6856
      %v6858 = vpop.f32.mrb[0].mxu0
      %6859 = vmatprep.mubr.bf16.mxu0 0
      %6860 = vmatmul.mubr.bf16.gmra.mrb[0].mxu0 %v6767
      %v6861 = vpop.f32.mrb[0].mxu0
      %v6862 = vadd.f32 0.0, %v6861
      %v6863 = vpop.f32.mrb[0].mxu0
      %v6864 = vpop.f32.mrb[0].mxu0
      %v6865 = vadd.f32 0.0, %v6864
      %v6866 = vpop.f32.mrb[0].mxu0
      %6867 = vmatprep.mubr.bf16.mxu0 0
      %6868 = vmatmul.mubr.bf16.gmra.mrb[0].mxu0 %v6770
      %v6869 = vpop.f32.mrb[0].mxu0
      %v6870 = vadd.f32 0.0, %v6869
      %v6871 = vpop.f32.mrb[0].mxu0
      %v6872 = vpop.f32.mrb[0].mxu0
      %v6873 = vadd.f32 0.0, %v6872
      %v6874 = vpop.f32.mrb[0].mxu0
      %6875 = vmatprep.mubr.bf16.mxu0 0
      %6876 = vmatmul.mubr.bf16.gmra.mrb[0].mxu0 %v6773
      %v6877 = vpop.f32.mrb[0].mxu0
      %v6878 = vadd.f32 0.0, %v6877
      %v6879 = vpop.f32.mrb[0].mxu0
      %v6880 = vpop.f32.mrb[0].mxu0
      %v6881 = vadd.f32 0.0, %v6880
      %v6882 = vpop.f32.mrb[0].mxu0
      %6883 = vmatprep.mubr.bf16.mxu0 0
      %6884 = vmatmul.mubr.bf16.gmra.mrb[0].mxu0 %v6776
      %v6885 = vpop.f32.mrb[0].mxu0
      %v6886 = vadd.f32 0.0, %v6885
      %v6887 = vpop.f32.mrb[0].mxu0
      %v6888 = vpop.f32.mrb[0].mxu0
      %v6889 = vadd.f32 0.0, %v6888
      %v6890 = vpop.f32.mrb[0].mxu0
      %6891 = vmatprep.mubr.bf16.mxu0 0
      %6892 = vmatmul.mubr.bf16.gmra.mrb[0].mxu0 %v6779
      %v6893 = vpop.f32.mrb[0].mxu0
      %v6894 = vadd.f32 0.0, %v6893
      %v6895 = vpop.f32.mrb[0].mxu0
      %v6896 = vpop.f32.mrb[0].mxu0
      %v6897 = vadd.f32 0.0, %v6896
      %v6898 = vpop.f32.mrb[0].mxu0
      %6899 = vmatprep.mubr.bf16.mxu0 0
      %6900 = vmatmul.mubr.bf16.gmra.mrb[0].mxu0 %v6782
      %v6901 = vpop.f32.mrb[0].mxu0
      %v6902 = vadd.f32 0.0, %v6901
      %v6903 = vpop.f32.mrb[0].mxu0
      %v6904 = vpop.f32.mrb[0].mxu0
      %v6905 = vadd.f32 0.0, %v6904
      %v6906 = vpop.f32.mrb[0].mxu0
      %6907 = vmatprep.mubr.bf16.mxu0 0
      %6908 = vmatmul.mubr.bf16.gmra.mrb[0].mxu0 %v6785
      %v6909 = vpop.f32.mrb[0].mxu0
      %v6910 = vadd.f32 0.0, %v6909
      %v6911 = vpop.f32.mrb[0].mxu0
      %v6912 = vpop.f32.mrb[0].mxu0
      %v6913 = vadd.f32 0.0, %v6912
      %v6914 = vpop.f32.mrb[0].mxu0
      %6915 = vmatprep.mubr.bf16.mxu0 0
      %6916 = vmatmul.mubr.bf16.gmra.mrb[0].mxu0 %v6788
      %v6917 = vpop.f32.mrb[0].mxu0
      %v6918 = vadd.f32 0.0, %v6917
      %v6919 = vpop.f32.mrb[0].mxu0
      %v6920 = vpop.f32.mrb[0].mxu0
      %v6921 = vadd.f32 0.0, %v6920
      %v6922 = vpop.f32.mrb[0].mxu0
      %6923 = vmatprep.mubr.bf16.mxu0 0
      %6924 = vmatmul.mubr.bf16.gmra.mrb[0].mxu0 %v6791
      %v6925 = vpop.f32.mrb[0].mxu0
      %v6926 = vadd.f32 0.0, %v6925
      %v6927 = vpop.f32.mrb[0].mxu0
      %v6928 = vpop.f32.mrb[0].mxu0
      %v6929 = vadd.f32 0.0, %v6928
      %v6930 = vpop.f32.mrb[0].mxu0
      %6931 = vmatprep.mubr.bf16.mxu0 0
      %6932 = vmatmul.mubr.bf16.gmra.mrb[0].mxu0 %v6794
      %v6933 = vpop.f32.mrb[0].mxu0
      %v6934 = vadd.f32 0.0, %v6933
      %v6935 = vpop.f32.mrb[0].mxu0
      %v6936 = vpop.f32.mrb[0].mxu0
      %v6937 = vadd.f32 0.0, %v6936
      %v6938 = vpop.f32.mrb[0].mxu0
      %6939 = vmatprep.mubr.bf16.mxu0 0
      %6940 = vmatmul.mubr.bf16.gmra.mrb[0].mxu0 %v6797
      %v6941 = vpop.f32.mrb[0].mxu0
      %v6942 = vadd.f32 0.0, %v6941
      %v6943 = vpop.f32.mrb[0].mxu0
      %v6944 = vpop.f32.mrb[0].mxu0
      %v6945 = vadd.f32 0.0, %v6944
      %v6946 = vpop.f32.mrb[0].mxu0
      %6947 = vmatprep.mubr.bf16.mxu0 0
      %6948 = vmatmul.mubr.bf16.gmra.mrb[0].mxu0 %v6800
      %v6949 = vpop.f32.mrb[0].mxu0
      %v6950 = vadd.f32 0.0, %v6949
      %v6951 = vpop.f32.mrb[0].mxu0
      %v6952 = vpop.f32.mrb[0].mxu0
      %v6953 = vadd.f32 0.0, %v6952
      %v6954 = vpop.f32.mrb[0].mxu0
      %6955 = vmatprep.mubr.bf16.mxu0 0
      %6956 = vmatmul.mubr.bf16.gmra.mrb[0].mxu0 %v6803
      %v6957 = vpop.f32.mrb[0].mxu0
      %v6958 = vadd.f32 0.0, %v6957
      %v6959 = vpop.f32.mrb[0].mxu0
      %v6960 = vpop.f32.mrb[0].mxu0
      %v6961 = vadd.f32 0.0, %v6960
      %v6962 = vpop.f32.mrb[0].mxu0
      %6963 = vmatprep.mubr.bf16.mxu0 0
      %6964 = vmatmul.mubr.bf16.gmra.mrb[0].mxu0 %v6806
      %v6965 = vpop.f32.mrb[0].mxu0
      %v6966 = vadd.f32 0.0, %v6965
      %v6967 = vpop.f32.mrb[0].mxu0
      %v6968 = vpop.f32.mrb[0].mxu0
      %v6969 = vadd.f32 0.0, %v6968
      %v6970 = vpop.f32.mrb[0].mxu0
      %6971 = vdwg.mxu0
      %v6972 = vadd.f32 %v6585, %v6846
      %v6973 = vadd.f32 %v6588, %v6849
      %v6974 = vadd.f32 %v6593, %v6854
      %v6975 = vadd.f32 %v6596, %v6857
      %v6976 = vadd.f32 %v6601, %v6862
      %v6977 = vadd.f32 %v6604, %v6865
      %v6978 = vadd.f32 %v6609, %v6870
      %v6979 = vadd.f32 %v6612, %v6873
      %v6980 = vadd.f32 %v6617, %v6878
      %v6981 = vadd.f32 %v6620, %v6881
      %v6982 = vadd.f32 %v6625, %v6886
      %v6983 = vadd.f32 %v6628, %v6889
      %v6984 = vadd.f32 %v6633, %v6894
      %v6985 = vadd.f32 %v6636, %v6897
      %v6986 = vadd.f32 %v6641, %v6902
      %v6987 = vadd.f32 %v6644, %v6905
      %v6988 = vadd.f32 %v6649, %v6910
      %v6989 = vadd.f32 %v6652, %v6913
      %v6990 = vadd.f32 %v6657, %v6918
      %v6991 = vadd.f32 %v6660, %v6921
      %v6992 = vadd.f32 %v6665, %v6926
      %v6993 = vadd.f32 %v6668, %v6929
      %v6994 = vadd.f32 %v6673, %v6934
      %v6995 = vadd.f32 %v6676, %v6937
      %v6996 = vadd.f32 %v6681, %v6942
      %v6997 = vadd.f32 %v6684, %v6945
      %v6998 = vadd.f32 %v6689, %v6950
      %v6999 = vadd.f32 %v6692, %v6953
      %v7000 = vadd.f32 %v6697, %v6958
      %v7001 = vadd.f32 %v6700, %v6961
      %v7002 = vadd.f32 %v6705, %v6966
      %v7003 = vadd.f32 %v6708, %v6969
      %v7004 = vmax.f32 %v6972, 0.0
      %v7005 = vmax.f32 %v6973, 0.0
      %v7006 = vmax.f32 %v6974, 0.0
      %v7007 = vmax.f32 %v6975, 0.0
      %v7008 = vmax.f32 %v6976, 0.0
      %v7009 = vmax.f32 %v6977, 0.0
      %v7010 = vmax.f32 %v6978, 0.0
      %v7011 = vmax.f32 %v6979, 0.0
      %v7012 = vmax.f32 %v6980, 0.0
      %v7013 = vmax.f32 %v6981, 0.0
      %v7014 = vmax.f32 %v6982, 0.0
      %v7015 = vmax.f32 %v6983, 0.0
      %v7016 = vmax.f32 %v6984, 0.0
      %v7017 = vmax.f32 %v6985, 0.0
      %v7018 = vmax.f32 %v6986, 0.0
      %v7019 = vmax.f32 %v6987, 0.0
      %v7020 = vmax.f32 %v6988, 0.0
      %v7021 = vmax.f32 %v6989, 0.0
      %v7022 = vmax.f32 %v6990, 0.0
      %v7023 = vmax.f32 %v6991, 0.0
      %v7024 = vmax.f32 %v6992, 0.0
      %v7025 = vmax.f32 %v6993, 0.0
      %v7026 = vmax.f32 %v6994, 0.0
      %v7027 = vmax.f32 %v6995, 0.0
      %v7028 = vmax.f32 %v6996, 0.0
      %v7029 = vmax.f32 %v6997, 0.0
      %v7030 = vmax.f32 %v6998, 0.0
      %v7031 = vmax.f32 %v6999, 0.0
      %v7032 = vmax.f32 %v7000, 0.0
      %v7033 = vmax.f32 %v7001, 0.0
      %v7034 = vmax.f32 %v7002, 0.0
      %v7035 = vmax.f32 %v7003, 0.0
      %v7036 = vpack.c.bf16 %v7005, %v7004
      %v7037 = vpack.c.bf16 %v7007, %v7006
      %v7038 = vpack.c.bf16 %v7009, %v7008
      %v7039 = vpack.c.bf16 %v7011, %v7010
      %v7040 = vpack.c.bf16 %v7013, %v7012
      %v7041 = vpack.c.bf16 %v7015, %v7014
      %v7042 = vpack.c.bf16 %v7017, %v7016
      %v7043 = vpack.c.bf16 %v7019, %v7018
      %v7044 = vpack.c.bf16 %v7021, %v7020
      %v7045 = vpack.c.bf16 %v7023, %v7022
      %v7046 = vpack.c.bf16 %v7025, %v7024
      %v7047 = vpack.c.bf16 %v7027, %v7026
      %v7048 = vpack.c.bf16 %v7029, %v7028
      %v7049 = vpack.c.bf16 %v7031, %v7030
      %v7050 = vpack.c.bf16 %v7033, %v7032
      %v7051 = vpack.c.bf16 %v7035, %v7034
      %v7068 = vunpack.c.l.b16 %v7036
      %v7069 = vunpack.c.h.b16 %v7036
      %v7070 = vunpack.c.l.b16 %v7037
      %v7071 = vunpack.c.h.b16 %v7037
      %v7072 = vunpack.c.l.b16 %v7038
      %v7073 = vunpack.c.h.b16 %v7038
      %v7074 = vunpack.c.l.b16 %v7039
      %v7075 = vunpack.c.h.b16 %v7039
      %v7076 = vunpack.c.l.b16 %v7040
      %v7077 = vunpack.c.h.b16 %v7040
      %v7078 = vunpack.c.l.b16 %v7041
      %v7079 = vunpack.c.h.b16 %v7041
      %v7080 = vunpack.c.l.b16 %v7042
      %v7081 = vunpack.c.h.b16 %v7042
      %v7082 = vunpack.c.l.b16 %v7043
      %v7083 = vunpack.c.h.b16 %v7043
      %v7084 = vunpack.c.l.b16 %v7044
      %v7085 = vunpack.c.h.b16 %v7044
      %v7086 = vunpack.c.l.b16 %v7045
      %v7087 = vunpack.c.h.b16 %v7045
      %v7088 = vunpack.c.l.b16 %v7046
      %v7089 = vunpack.c.h.b16 %v7046
      %v7090 = vunpack.c.l.b16 %v7047
      %v7091 = vunpack.c.h.b16 %v7047
      %v7092 = vunpack.c.l.b16 %v7048
      %v7093 = vunpack.c.h.b16 %v7048
      %v7094 = vunpack.c.l.b16 %v7049
      %v7095 = vunpack.c.h.b16 %v7049
      %v7096 = vunpack.c.l.b16 %v7050
      %v7097 = vunpack.c.h.b16 %v7050
      %v7098 = vunpack.c.l.b16 %v7051
      %v7099 = vunpack.c.h.b16 %v7051
      %v7100 = vpack.c.b16 %v7068, %v7068
      %v7101 = vpack.c.b16 %v7069, %v7069
      %v7102 = vpack.c.b16 %v7070, %v7070
      %v7103 = vpack.c.b16 %v7071, %v7071
      %v7104 = vpack.c.b16 %v7072, %v7072
      %v7105 = vpack.c.b16 %v7073, %v7073
      %v7106 = vpack.c.b16 %v7074, %v7074
      %v7107 = vpack.c.b16 %v7075, %v7075
      %v7108 = vpack.c.b16 %v7076, %v7076
      %v7109 = vpack.c.b16 %v7077, %v7077
      %v7110 = vpack.c.b16 %v7078, %v7078
      %v7111 = vpack.c.b16 %v7079, %v7079
      %v7112 = vpack.c.b16 %v7080, %v7080
      %v7113 = vpack.c.b16 %v7081, %v7081
      %v7114 = vpack.c.b16 %v7082, %v7082
      %v7115 = vpack.c.b16 %v7083, %v7083
      %v7116 = vpack.c.b16 %v7084, %v7084
      %v7117 = vpack.c.b16 %v7085, %v7085
      %v7118 = vpack.c.b16 %v7086, %v7086
      %v7119 = vpack.c.b16 %v7087, %v7087
      %v7120 = vpack.c.b16 %v7088, %v7088
      %v7121 = vpack.c.b16 %v7089, %v7089
      %v7122 = vpack.c.b16 %v7090, %v7090
      %v7123 = vpack.c.b16 %v7091, %v7091
      %v7124 = vpack.c.b16 %v7092, %v7092
      %v7125 = vpack.c.b16 %v7093, %v7093
      %v7126 = vpack.c.b16 %v7094, %v7094
      %v7127 = vpack.c.b16 %v7095, %v7095
      %v7128 = vpack.c.b16 %v7096, %v7096
      %v7129 = vpack.c.b16 %v7097, %v7097
      %v7130 = vpack.c.b16 %v7098, %v7098
      %v7131 = vpack.c.b16 %v7099, %v7099
      %7164 = vst [vmem:[%s278] sm:$0xf] %v7100
      %7165 = vst [vmem:[%s278 + $0x4] sm:$0xf] %v7101
      %7166 = vst [vmem:[%s278 + $0x8] sm:$0xf] %v7102
      %7167 = vst [vmem:[%s278 + $0xc] sm:$0xf] %v7103
      %7168 = vst [vmem:[%s278 + $0x10] sm:$0xf] %v7104
      %7169 = vst [vmem:[%s278 + $0x14] sm:$0xf] %v7105
      %7170 = vst [vmem:[%s278 + $0x18] sm:$0xf] %v7106
      %7171 = vst [vmem:[%s278 + $0x1c] sm:$0xf] %v7107
      %7172 = vst [vmem:[%s278 + $0x20] sm:$0xf] %v7108
      %7173 = vst [vmem:[%s278 + $0x24] sm:$0xf] %v7109
      %7174 = vst [vmem:[%s278 + $0x28] sm:$0xf] %v7110
      %7175 = vst [vmem:[%s278 + $0x2c] sm:$0xf] %v7111
      %7176 = vst [vmem:[%s278 + $0x30] sm:$0xf] %v7112
      %7177 = vst [vmem:[%s278 + $0x34] sm:$0xf] %v7113
      %7178 = vst [vmem:[%s278 + $0x38] sm:$0xf] %v7114
      %7179 = vst [vmem:[%s278 + $0x3c] sm:$0xf] %v7115
      %7180 = vst [vmem:[%s278 + $0x40] sm:$0xf] %v7116
      %7181 = vst [vmem:[%s278 + $0x44] sm:$0xf] %v7117
      %7182 = vst [vmem:[%s278 + $0x48] sm:$0xf] %v7118
      %7183 = vst [vmem:[%s278 + $0x4c] sm:$0xf] %v7119
      %7184 = vst [vmem:[%s278 + $0x50] sm:$0xf] %v7120
      %7185 = vst [vmem:[%s278 + $0x54] sm:$0xf] %v7121
      %7186 = vst [vmem:[%s278 + $0x58] sm:$0xf] %v7122
      %7187 = vst [vmem:[%s278 + $0x5c] sm:$0xf] %v7123
      %7188 = vst [vmem:[%s278 + $0x60] sm:$0xf] %v7124
      %7189 = vst [vmem:[%s278 + $0x64] sm:$0xf] %v7125
      %7190 = vst [vmem:[%s278 + $0x68] sm:$0xf] %v7126
      %7191 = vst [vmem:[%s278 + $0x6c] sm:$0xf] %v7127
      %7192 = vst [vmem:[%s278 + $0x70] sm:$0xf] %v7128
      %7193 = vst [vmem:[%s278 + $0x74] sm:$0xf] %v7129
      %7194 = vst [vmem:[%s278 + $0x78] sm:$0xf] %v7130
      %7195 = vst [vmem:[%s278 + $0x7c] sm:$0xf] %v7131
      %p7196 = scmp.lt.s32.totalorder %s18, 1
      %s7197 = scalar_select %p7196, %s18, 1
      %s7198 = smul.addr %s7197, 32
      %s7199 = smul.addr %s7198, 4
      %s7200 = scalar_lea.vmem %s7, %s7199
      // Predicated region
      $region49: #{bottleneck_forward_pallas.1} parent=47 // pred_check
        %p7201 = pneg %p188
      $region50: #{bottleneck_forward_pallas.1} parent=47 // pred_check_branch
        %7203 = sbr.rel (%p7201) target = $region52
      $region51: #{bottleneck_forward_pallas.1} parent=47 // pred_region
        _
      $region52: #{bottleneck_forward_pallas.1} parent=47 // pred_fallthru
        _
    $region48: #{bottleneck_forward_pallas.1} parent=5 // pred_fallthru
      _
    %p7204 = scmp.le.s32.totalorder 2, %s13
    // Predicated region
    $region53: #{bottleneck_forward_pallas.1} parent=5 // pred_check
      %p7205 = pneg %p7204
    $region54: #{bottleneck_forward_pallas.1} parent=5 // pred_check_branch
      %7207 = sbr.rel (%p7205) target = $region56
    $region55: #{bottleneck_forward_pallas.1} parent=5 // pred_region
      %s7208 = ssub.s32 %s13, 2
      // Predicated region
      $region57: #{bottleneck_forward_pallas.1} parent=55 // pred_check
        %p7209 = pneg %p194
      $region58: #{bottleneck_forward_pallas.1} parent=55 // pred_check_branch
        %7211 = sbr.rel (%p7209) target = $region60
      $region59: #{bottleneck_forward_pallas.1} parent=55 // pred_region
        %p7212 = scmp.lt.s32.totalorder %s19, 1
        %s7213 = scalar_select %p7212, %s19, 1
        %s7214 = smul.addr %s7213, 32
        %s7215 = smul.addr %s7214, 4
        %s7216 = scalar_lea.vmem %s7, %s7215
      $region60: #{bottleneck_forward_pallas.1} parent=55 // pred_fallthru
        _
    $region56: #{bottleneck_forward_pallas.1} parent=5 // pred_fallthru
      _
  $region6: #{bottleneck_forward_pallas.1} parent=0 // loop_footer
    %s17 = sadd.s32 1, %s13
  $region7: #{bottleneck_forward_pallas.1} parent=0 // loop_footer_branch
    %12 = sbr.rel target = $region3
  $region8: #{bottleneck_forward_pallas.1} parent=0 // loop_exit
    _

</llo_original>
